<compile_context>
chip_gen: v6e
topology: v6e:2x2x1
jax: 0.10.0
libtpu: 0.0.40
codegen_flags: <defaults>
</compile_context>

<pallas_src>
import numpy as np
import jax
import jax.numpy as jnp
from jax.experimental import pallas as pl
from jax.experimental.pallas import tpu as pltpu


# ---------------------------------------------------------------------------
# Static constants (numpy, baked in at trace time).
# ---------------------------------------------------------------------------
def _tap_masks(hs, ws, width):
    """(9, 1, width) f32: mask[d, 0, i*ws+j] = 1 iff the 3x3 tap d=(dy*3+dx) at output pixel
    (i, j) reads a valid (non-zero-padded) input pixel (i+dy-1, j+dx-1)."""
    m = np.zeros((9, 1, width), np.float32)
    for dy in range(3):
        for dx in range(3):
            d = dy * 3 + dx
            for i in range(hs):
                for j in range(ws):
                    if 0 <= i + dy - 1 < hs and 0 <= j + dx - 1 < ws:
                        m[d, 0, i * ws + j] = 1.0
    return m


def _downsample_mat(hs, ws, width_in, width_out):
    """(width_in, width_out) one-hot: output lane (i*(ws//2)+j) <- source lane (2i*ws + 2j)."""
    ho, wo = hs // 2, ws // 2
    d = np.zeros((width_in, width_out), np.float32)
    for i in range(ho):
        for j in range(wo):
            d[(2 * i) * ws + 2 * j, i * wo + j] = 1.0
    return d


# ---------------------------------------------------------------------------
# Fused kernel factory (static spatial sizes are closed over).
# ---------------------------------------------------------------------------
def _make_fused_kernel(h, w, wide2):
    hw = h * w                 # conv1 / pool1 lane width (multiple of 128)
    w2 = w // 2                # row stride of the 8x8 map embedded in `wide2` lanes
    w3 = w // 4                # row stride of the 4x4 map embedded in `wide2` lanes
    inv_hw3 = 1.0 / float((h // 4) * (w // 4))

    def kernel(x_ref, w1_ref, b1_ref, m1_ref, d1_ref,
               w2_ref, b2_ref, m2_ref, d2_ref,
               w3_ref, b3_ref, m3_ref, wfc_ref, bfc_ref, o_ref):
        f32, bf16 = jnp.float32, jnp.bfloat16

        def shift(a, off, width):
            # a[:, q] <- a[:, q + off] (circular lane roll on the XLU; wrapped lanes are
            # zeroed by the masks or land on lanes that are never read downstream).
            return a if off == 0 else pltpu.roll(a, (-off) % width, 1)

        def taps(a, width, ws, m_ref):
            out = []
            for dy in range(3):
                for dx in range(3):
                    d = dy * 3 + dx
                    off = (dy - 1) * ws + (dx - 1)
                    out.append(shift(a, off, width) * m_ref[d])
            return out

        def pool2x2_max(a, width, ws):
            row = jnp.maximum(a, shift(a, 1, width))       # max over horizontal pair
            return jnp.maximum(row, shift(row, ws, width))  # max over vertical pair

        # ---- conv1 (Cin=1) + ReLU: 9 VPU broadcast multiply-adds (no MXU) ----------------
        x = x_ref[0]                                        # (1, H*W) f32
        t1 = taps(x, hw, w, m1_ref)                         # 9 x (1, H*W)
        a1 = w1_ref[0] * t1[0]
        for d in range(1, 9):
            a1 = a1 + w1_ref[d] * t1[d]
        a1 = jnp.maximum(a1 + b1_ref[...], 0.0)             # (32, H*W)

        # ---- maxpool 2x2 (roll + max) + ONE one-hot downsample matmul --------------------
        m1max = pool2x2_max(a1, hw, w)
        p1 = jnp.dot(m1max.astype(bf16), d1_ref[...],
                     preferred_element_type=f32)            # (32, wide2), valid lanes 0..63

        # ---- conv2 + ReLU: rolled taps -> sublane concat -> ONE im2col matmul ------------
        patches2 = jnp.concatenate(taps(p1, wide2, w2, m2_ref), axis=0).astype(bf16)  # (288, wide2)
        a2 = jnp.dot(w2_ref[...], patches2, preferred_element_type=f32)               # (64, wide2)
        a2 = jnp.maximum(a2 + b2_ref[...], 0.0)

        # ---- maxpool 2x2 + downsample ------------------------------------------------------
        m2max = pool2x2_max(a2, wide2, w2)
        p2 = jnp.dot(m2max.astype(bf16), d2_ref[...],
                     preferred_element_type=f32)            # (64, wide2), valid lanes 0..15

        # ---- conv3 + ReLU: ONE im2col matmul ----------------------------------------------
        patches3 = jnp.concatenate(taps(p2, wide2, w3, m3_ref), axis=0).astype(bf16)  # (576, wide2)
        a3 = jnp.dot(w3_ref[...], patches3, preferred_element_type=f32)               # (128, wide2)
        a3 = jnp.maximum(a3 + b3_ref[...], 0.0)

        # ---- global average pool over the valid lanes + FC head (VPU) --------------------
        # m3_ref[4] (the centre tap mask) is exactly the "lane < h3*w3" validity mask.
        pooled = jnp.sum(a3 * m3_ref[4], axis=1, keepdims=True) * inv_hw3             # (128, 1)
        logits = jnp.sum(pooled * wfc_ref[...], axis=0, keepdims=True) + bfc_ref[...]  # (1, 128)
        o_ref[0] = logits

    return kernel


# ---------------------------------------------------------------------------
# Wrapper: one pallas_call, grid over batch, all constants resident in VMEM.
# ---------------------------------------------------------------------------
def simple_classifier_forward(x_nchw, params):
    B, cin, H, W = x_nchw.shape
    assert cin == 1 and H % 4 == 0 and W % 4 == 0
    hw = H * W
    wide2 = 128
    assert hw % 128 == 0
    assert (H // 2) * (W // 2) <= wide2 and (H // 4) * (W // 4) <= wide2

    f32, bf16 = jnp.float32, jnp.bfloat16
    c1 = params["w1"].shape[-1]
    c2 = params["w2"].shape[-1]
    c3 = params["w3"].shape[-1]
    cin2 = params["w2"].shape[2]
    cin3 = params["w3"].shape[2]
    nc = params["w_fc"].shape[-1]
    nc_pad = 128
    assert nc <= nc_pad

    # Lane-dense raw input (no host-side im2col).
    x = x_nchw.reshape(B, 1, hw).astype(f32)

    # conv1 per-tap column weights (VPU, f32) and fused im2col weights (MXU, bf16):
    # Wbig[o, d*Cin + c] = w[dy, dx, c, o].
    w1k = jnp.transpose(params["w1"].reshape(9, 1, c1), (0, 2, 1)).astype(f32)        # (9, 32, 1)
    b1 = params["b1"].reshape(c1, 1).astype(f32)
    w2big = jnp.transpose(params["w2"].reshape(9, cin2, c2), (2, 0, 1)
                          ).reshape(c2, 9 * cin2).astype(bf16)                         # (64, 288)
    b2 = params["b2"].reshape(c2, 1).astype(f32)
    w3big = jnp.transpose(params["w3"].reshape(9, cin3, c3), (2, 0, 1)
                          ).reshape(c3, 9 * cin3).astype(bf16)                         # (128, 576)
    b3 = params["b3"].reshape(c3, 1).astype(f32)
    wfc = jnp.pad(params["w_fc"].astype(f32), ((0, 0), (0, nc_pad - nc)))              # (128, 128)
    bfc = jnp.pad(params["b_fc"].reshape(1, nc).astype(f32), ((0, 0), (0, nc_pad - nc)))

    # Border masks (f32, VPU) and one-hot 2x2 downsample matrices (bf16, MXU).
    masks1 = jnp.asarray(_tap_masks(H, W, hw))                                         # (9, 1, 256)
    masks2 = jnp.asarray(_tap_masks(H // 2, W // 2, wide2))                            # (9, 1, 128)
    masks3 = jnp.asarray(_tap_masks(H // 4, W // 4, wide2))                            # (9, 1, 128)
    d1 = jnp.asarray(_downsample_mat(H, W, hw, wide2), dtype=bf16)                     # (256, 128)
    d2 = jnp.asarray(_downsample_mat(H // 2, W // 2, wide2, wide2), dtype=bf16)        # (128, 128)

    def const_spec(a):
        return pl.BlockSpec(tuple(a.shape), lambda i: (0,) * a.ndim)

    kernel = _make_fused_kernel(H, W, wide2)

    out = pl.pallas_call(
        kernel,
        out_shape=jax.ShapeDtypeStruct((B, 1, nc_pad), f32),
        grid=(B,),
        in_specs=[
            pl.BlockSpec((1, 1, hw), lambda i: (i, 0, 0)),       # raw image (lane-dense)
            const_spec(w1k), const_spec(b1), const_spec(masks1), const_spec(d1),
            const_spec(w2big), const_spec(b2), const_spec(masks2), const_spec(d2),
            const_spec(w3big), const_spec(b3), const_spec(masks3),
            const_spec(wfc), const_spec(bfc),
        ],
        out_specs=pl.BlockSpec((1, 1, nc_pad), lambda i: (i, 0, 0)),
        compiler_params=pltpu.CompilerParams(dimension_semantics=("parallel",)),
    )(x, w1k, b1, masks1, d1, w2big, b2, masks2, d2, w3big, b3, masks3, wfc, bfc)
    return out[:, 0, :nc]


# ---------------------------------------------------------------------------
# Parameters (synthetic init, architecture-equivalent to the PyTorch module).
# ---------------------------------------------------------------------------
def init_params(key, num_classes=10):
    ks = jax.random.split(key, 8)
    f32 = jnp.float32
    return {
        "w1": jax.random.normal(ks[0], (3, 3, 1, 32), f32) * 0.1,
        "b1": jax.random.normal(ks[1], (1, 32), f32) * 0.01,
        "w2": jax.random.normal(ks[2], (3, 3, 32, 64), f32) * 0.05,
        "b2": jax.random.normal(ks[3], (1, 64), f32) * 0.01,
        "w3": jax.random.normal(ks[4], (3, 3, 64, 128), f32) * 0.05,
        "b3": jax.random.normal(ks[5], (1, 128), f32) * 0.01,
        "w_fc": jax.random.normal(ks[6], (128, num_classes), f32) * 0.05,
        "b_fc": jax.random.normal(ks[7], (1, num_classes), f32) * 0.01,
    }


# Pure-JAX/XLA reference of the same forward pass (correctness cross-check).
def reference_forward(x_nchw, params):
    x = jnp.transpose(x_nchw, (0, 2, 3, 1)).astype(jnp.float32)   # NCHW -> NHWC

    def conv(y, w, b):
        y = jax.lax.conv_general_dilated(
            y, w, window_strides=(1, 1), padding="SAME",
            dimension_numbers=("NHWC", "HWIO", "NHWC"))
        return jax.nn.relu(y + b.reshape(1, 1, 1, -1))

    def pool(y):
        return jax.lax.reduce_window(
            y, -jnp.inf, jax.lax.max, (1, 2, 2, 1), (1, 2, 2, 1), "VALID")

    y = pool(conv(x, params["w1"], params["b1"]))
    y = pool(conv(y, params["w2"], params["b2"]))
    y = conv(y, params["w3"], params["b3"])
    pooled = jnp.mean(y, axis=(1, 2))
    return pooled @ params["w_fc"] + params["b_fc"]


if __name__ == "__main__":
    key = jax.random.PRNGKey(0)
    k_params, k_x = jax.random.split(key)

    params = init_params(k_params, num_classes=10)
    # Input in PyTorch NCHW convention: (batch=2, channels=1, h=16, w=16).
    x = jax.random.normal(k_x, (2, 1, 16, 16), jnp.float32)

    fwd = jax.jit(simple_classifier_forward)
    logits = jax.block_until_ready(fwd(x, params))

    assert logits.shape == (2, 10), logits.shape
    assert bool(jnp.all(jnp.isfinite(logits)))

    # Cross-check against the XLA reference (loose tolerance: both paths run the matmuls in a
    # single bf16 MXU pass).
    ref = jax.block_until_ready(jax.jit(reference_forward)(x, params))
    assert bool(jnp.allclose(logits, ref, rtol=5e-2, atol=5e-2)), (logits, ref)

    print("KERNEL_OK")
</pallas_src>

<mosaic_0001>
module attributes {stable_mosaic.version = 11 : i64} {
  func.func @kernel(%arg0: i32, %arg1: memref<1x1x256xf32, #tpu.memory_space<vmem>>, %arg2: memref<9x32x1xf32, #tpu.memory_space<vmem>>, %arg3: memref<32x1xf32, #tpu.memory_space<vmem>>, %arg4: memref<9x1x256xf32, #tpu.memory_space<vmem>>, %arg5: memref<256x128xbf16, #tpu.memory_space<vmem>>, %arg6: memref<64x288xbf16, #tpu.memory_space<vmem>>, %arg7: memref<64x1xf32, #tpu.memory_space<vmem>>, %arg8: memref<9x1x128xf32, #tpu.memory_space<vmem>>, %arg9: memref<128x128xbf16, #tpu.memory_space<vmem>>, %arg10: memref<128x576xbf16, #tpu.memory_space<vmem>>, %arg11: memref<128x1xf32, #tpu.memory_space<vmem>>, %arg12: memref<9x1x128xf32, #tpu.memory_space<vmem>>, %arg13: memref<128x128xf32, #tpu.memory_space<vmem>>, %arg14: memref<1x128xf32, #tpu.memory_space<vmem>>, %arg15: memref<1x1x128xf32, #tpu.memory_space<vmem>>) attributes {dimension_semantics = [#tpu.dimension_semantics<parallel>], iteration_bounds = array<i64: 2>, scalar_prefetch = 0 : i64, scratch_operands = 0 : i64, tpu.core_type = #tpu.core_type<tc>, window_params = [{transform_indices = @transform_0, window_bounds = array<i64: 1, 1, 256>}, {pipeline_mode = #tpu.pipeline_mode<synchronous>, transform_indices = @transform_1, window_bounds = array<i64: 9, 32, 1>}, {pipeline_mode = #tpu.pipeline_mode<synchronous>, transform_indices = @transform_2, window_bounds = array<i64: 32, 1>}, {pipeline_mode = #tpu.pipeline_mode<synchronous>, transform_indices = @transform_3, window_bounds = array<i64: 9, 1, 256>}, {pipeline_mode = #tpu.pipeline_mode<synchronous>, transform_indices = @transform_4, window_bounds = array<i64: 256, 128>}, {pipeline_mode = #tpu.pipeline_mode<synchronous>, transform_indices = @transform_5, window_bounds = array<i64: 64, 288>}, {pipeline_mode = #tpu.pipeline_mode<synchronous>, transform_indices = @transform_6, window_bounds = array<i64: 64, 1>}, {pipeline_mode = #tpu.pipeline_mode<synchronous>, transform_indices = @transform_7, window_bounds = array<i64: 9, 1, 128>}, {pipeline_mode = #tpu.pipeline_mode<synchronous>, transform_indices = @transform_8, window_bounds = array<i64: 128, 128>}, {pipeline_mode = #tpu.pipeline_mode<synchronous>, transform_indices = @transform_9, window_bounds = array<i64: 128, 576>}, {pipeline_mode = #tpu.pipeline_mode<synchronous>, transform_indices = @transform_10, window_bounds = array<i64: 128, 1>}, {pipeline_mode = #tpu.pipeline_mode<synchronous>, transform_indices = @transform_11, window_bounds = array<i64: 9, 1, 128>}, {pipeline_mode = #tpu.pipeline_mode<synchronous>, transform_indices = @transform_12, window_bounds = array<i64: 128, 128>}, {pipeline_mode = #tpu.pipeline_mode<synchronous>, transform_indices = @transform_13, window_bounds = array<i64: 1, 128>}, {transform_indices = @transform_14, window_bounds = array<i64: 1, 1, 128>}]} {
    %c0 = arith.constant 0 : index
    %c0_0 = arith.constant 0 : index
    %c0_1 = arith.constant 0 : index
    %0 = vector.load %arg1[%c0, %c0_0, %c0_1] : memref<1x1x256xf32, #tpu.memory_space<vmem>>, vector<1x1x256xf32>
    %1 = vector.shape_cast %0 : vector<1x1x256xf32> to vector<1x256xf32>
    %c17_i32 = arith.constant 17 : i32
    %2 = tpu.dynamic_rotate %1 by %c17_i32 dim 1 : vector<1x256xf32>, i32 -> vector<1x256xf32>
    %c0_2 = arith.constant 0 : index
    %c0_3 = arith.constant 0 : index
    %c0_4 = arith.constant 0 : index
    %3 = vector.load %arg4[%c0_2, %c0_3, %c0_4] : memref<9x1x256xf32, #tpu.memory_space<vmem>>, vector<1x1x256xf32>
    %4 = vector.shape_cast %3 : vector<1x1x256xf32> to vector<1x256xf32>
    %5 = arith.mulf %2, %4 : vector<1x256xf32>
    %c16_i32 = arith.constant 16 : i32
    %6 = tpu.dynamic_rotate %1 by %c16_i32 dim 1 : vector<1x256xf32>, i32 -> vector<1x256xf32>
    %c1 = arith.constant 1 : index
    %c0_5 = arith.constant 0 : index
    %c0_6 = arith.constant 0 : index
    %7 = vector.load %arg4[%c1, %c0_5, %c0_6] : memref<9x1x256xf32, #tpu.memory_space<vmem>>, vector<1x1x256xf32>
    %8 = vector.shape_cast %7 : vector<1x1x256xf32> to vector<1x256xf32>
    %9 = arith.mulf %6, %8 : vector<1x256xf32>
    %c15_i32 = arith.constant 15 : i32
    %10 = tpu.dynamic_rotate %1 by %c15_i32 dim 1 : vector<1x256xf32>, i32 -> vector<1x256xf32>
    %c2 = arith.constant 2 : index
    %c0_7 = arith.constant 0 : index
    %c0_8 = arith.constant 0 : index
    %11 = vector.load %arg4[%c2, %c0_7, %c0_8] : memref<9x1x256xf32, #tpu.memory_space<vmem>>, vector<1x1x256xf32>
    %12 = vector.shape_cast %11 : vector<1x1x256xf32> to vector<1x256xf32>
    %13 = arith.mulf %10, %12 : vector<1x256xf32>
    %c1_i32 = arith.constant 1 : i32
    %14 = tpu.dynamic_rotate %1 by %c1_i32 dim 1 : vector<1x256xf32>, i32 -> vector<1x256xf32>
    %c3 = arith.constant 3 : index
    %c0_9 = arith.constant 0 : index
    %c0_10 = arith.constant 0 : index
    %15 = vector.load %arg4[%c3, %c0_9, %c0_10] : memref<9x1x256xf32, #tpu.memory_space<vmem>>, vector<1x1x256xf32>
    %16 = vector.shape_cast %15 : vector<1x1x256xf32> to vector<1x256xf32>
    %17 = arith.mulf %14, %16 : vector<1x256xf32>
    %c4 = arith.constant 4 : index
    %c0_11 = arith.constant 0 : index
    %c0_12 = arith.constant 0 : index
    %18 = vector.load %arg4[%c4, %c0_11, %c0_12] : memref<9x1x256xf32, #tpu.memory_space<vmem>>, vector<1x1x256xf32>
    %19 = vector.shape_cast %18 : vector<1x1x256xf32> to vector<1x256xf32>
    %20 = arith.mulf %1, %19 : vector<1x256xf32>
    %c255_i32 = arith.constant 255 : i32
    %21 = tpu.dynamic_rotate %1 by %c255_i32 dim 1 : vector<1x256xf32>, i32 -> vector<1x256xf32>
    %c5 = arith.constant 5 : index
    %c0_13 = arith.constant 0 : index
    %c0_14 = arith.constant 0 : index
    %22 = vector.load %arg4[%c5, %c0_13, %c0_14] : memref<9x1x256xf32, #tpu.memory_space<vmem>>, vector<1x1x256xf32>
    %23 = vector.shape_cast %22 : vector<1x1x256xf32> to vector<1x256xf32>
    %24 = arith.mulf %21, %23 : vector<1x256xf32>
    %c241_i32 = arith.constant 241 : i32
    %25 = tpu.dynamic_rotate %1 by %c241_i32 dim 1 : vector<1x256xf32>, i32 -> vector<1x256xf32>
    %c6 = arith.constant 6 : index
    %c0_15 = arith.constant 0 : index
    %c0_16 = arith.constant 0 : index
    %26 = vector.load %arg4[%c6, %c0_15, %c0_16] : memref<9x1x256xf32, #tpu.memory_space<vmem>>, vector<1x1x256xf32>
    %27 = vector.shape_cast %26 : vector<1x1x256xf32> to vector<1x256xf32>
    %28 = arith.mulf %25, %27 : vector<1x256xf32>
    %c240_i32 = arith.constant 240 : i32
    %29 = tpu.dynamic_rotate %1 by %c240_i32 dim 1 : vector<1x256xf32>, i32 -> vector<1x256xf32>
    %c7 = arith.constant 7 : index
    %c0_17 = arith.constant 0 : index
    %c0_18 = arith.constant 0 : index
    %30 = vector.load %arg4[%c7, %c0_17, %c0_18] : memref<9x1x256xf32, #tpu.memory_space<vmem>>, vector<1x1x256xf32>
    %31 = vector.shape_cast %30 : vector<1x1x256xf32> to vector<1x256xf32>
    %32 = arith.mulf %29, %31 : vector<1x256xf32>
    %c239_i32 = arith.constant 239 : i32
    %33 = tpu.dynamic_rotate %1 by %c239_i32 dim 1 : vector<1x256xf32>, i32 -> vector<1x256xf32>
    %c8 = arith.constant 8 : index
    %c0_19 = arith.constant 0 : index
    %c0_20 = arith.constant 0 : index
    %34 = vector.load %arg4[%c8, %c0_19, %c0_20] : memref<9x1x256xf32, #tpu.memory_space<vmem>>, vector<1x1x256xf32>
    %35 = vector.shape_cast %34 : vector<1x1x256xf32> to vector<1x256xf32>
    %36 = arith.mulf %33, %35 : vector<1x256xf32>
    %c0_21 = arith.constant 0 : index
    %c0_22 = arith.constant 0 : index
    %c0_23 = arith.constant 0 : index
    %37 = vector.load %arg2[%c0_21, %c0_22, %c0_23] : memref<9x32x1xf32, #tpu.memory_space<vmem>>, vector<1x32x1xf32>
    %38 = vector.shape_cast %37 : vector<1x32x1xf32> to vector<32x1xf32>
    %39 = vector.broadcast %38 : vector<32x1xf32> to vector<32x256xf32>
    %40 = vector.broadcast %5 : vector<1x256xf32> to vector<32x256xf32>
    %41 = arith.mulf %39, %40 : vector<32x256xf32>
    %c1_24 = arith.constant 1 : index
    %c0_25 = arith.constant 0 : index
    %c0_26 = arith.constant 0 : index
    %42 = vector.load %arg2[%c1_24, %c0_25, %c0_26] : memref<9x32x1xf32, #tpu.memory_space<vmem>>, vector<1x32x1xf32>
    %43 = vector.shape_cast %42 : vector<1x32x1xf32> to vector<32x1xf32>
    %44 = vector.broadcast %43 : vector<32x1xf32> to vector<32x256xf32>
    %45 = vector.broadcast %9 : vector<1x256xf32> to vector<32x256xf32>
    %46 = arith.mulf %44, %45 : vector<32x256xf32>
    %47 = arith.addf %41, %46 : vector<32x256xf32>
    %c2_27 = arith.constant 2 : index
    %c0_28 = arith.constant 0 : index
    %c0_29 = arith.constant 0 : index
    %48 = vector.load %arg2[%c2_27, %c0_28, %c0_29] : memref<9x32x1xf32, #tpu.memory_space<vmem>>, vector<1x32x1xf32>
    %49 = vector.shape_cast %48 : vector<1x32x1xf32> to vector<32x1xf32>
    %50 = vector.broadcast %49 : vector<32x1xf32> to vector<32x256xf32>
    %51 = vector.broadcast %13 : vector<1x256xf32> to vector<32x256xf32>
    %52 = arith.mulf %50, %51 : vector<32x256xf32>
    %53 = arith.addf %47, %52 : vector<32x256xf32>
    %c3_30 = arith.constant 3 : index
    %c0_31 = arith.constant 0 : index
    %c0_32 = arith.constant 0 : index
    %54 = vector.load %arg2[%c3_30, %c0_31, %c0_32] : memref<9x32x1xf32, #tpu.memory_space<vmem>>, vector<1x32x1xf32>
    %55 = vector.shape_cast %54 : vector<1x32x1xf32> to vector<32x1xf32>
    %56 = vector.broadcast %55 : vector<32x1xf32> to vector<32x256xf32>
    %57 = vector.broadcast %17 : vector<1x256xf32> to vector<32x256xf32>
    %58 = arith.mulf %56, %57 : vector<32x256xf32>
    %59 = arith.addf %53, %58 : vector<32x256xf32>
    %c4_33 = arith.constant 4 : index
    %c0_34 = arith.constant 0 : index
    %c0_35 = arith.constant 0 : index
    %60 = vector.load %arg2[%c4_33, %c0_34, %c0_35] : memref<9x32x1xf32, #tpu.memory_space<vmem>>, vector<1x32x1xf32>
    %61 = vector.shape_cast %60 : vector<1x32x1xf32> to vector<32x1xf32>
    %62 = vector.broadcast %61 : vector<32x1xf32> to vector<32x256xf32>
    %63 = vector.broadcast %20 : vector<1x256xf32> to vector<32x256xf32>
    %64 = arith.mulf %62, %63 : vector<32x256xf32>
    %65 = arith.addf %59, %64 : vector<32x256xf32>
    %c5_36 = arith.constant 5 : index
    %c0_37 = arith.constant 0 : index
    %c0_38 = arith.constant 0 : index
    %66 = vector.load %arg2[%c5_36, %c0_37, %c0_38] : memref<9x32x1xf32, #tpu.memory_space<vmem>>, vector<1x32x1xf32>
    %67 = vector.shape_cast %66 : vector<1x32x1xf32> to vector<32x1xf32>
    %68 = vector.broadcast %67 : vector<32x1xf32> to vector<32x256xf32>
    %69 = vector.broadcast %24 : vector<1x256xf32> to vector<32x256xf32>
    %70 = arith.mulf %68, %69 : vector<32x256xf32>
    %71 = arith.addf %65, %70 : vector<32x256xf32>
    %c6_39 = arith.constant 6 : index
    %c0_40 = arith.constant 0 : index
    %c0_41 = arith.constant 0 : index
    %72 = vector.load %arg2[%c6_39, %c0_40, %c0_41] : memref<9x32x1xf32, #tpu.memory_space<vmem>>, vector<1x32x1xf32>
    %73 = vector.shape_cast %72 : vector<1x32x1xf32> to vector<32x1xf32>
    %74 = vector.broadcast %73 : vector<32x1xf32> to vector<32x256xf32>
    %75 = vector.broadcast %28 : vector<1x256xf32> to vector<32x256xf32>
    %76 = arith.mulf %74, %75 : vector<32x256xf32>
    %77 = arith.addf %71, %76 : vector<32x256xf32>
    %c7_42 = arith.constant 7 : index
    %c0_43 = arith.constant 0 : index
    %c0_44 = arith.constant 0 : index
    %78 = vector.load %arg2[%c7_42, %c0_43, %c0_44] : memref<9x32x1xf32, #tpu.memory_space<vmem>>, vector<1x32x1xf32>
    %79 = vector.shape_cast %78 : vector<1x32x1xf32> to vector<32x1xf32>
    %80 = vector.broadcast %79 : vector<32x1xf32> to vector<32x256xf32>
    %81 = vector.broadcast %32 : vector<1x256xf32> to vector<32x256xf32>
    %82 = arith.mulf %80, %81 : vector<32x256xf32>
    %83 = arith.addf %77, %82 : vector<32x256xf32>
    %c8_45 = arith.constant 8 : index
    %c0_46 = arith.constant 0 : index
    %c0_47 = arith.constant 0 : index
    %84 = vector.load %arg2[%c8_45, %c0_46, %c0_47] : memref<9x32x1xf32, #tpu.memory_space<vmem>>, vector<1x32x1xf32>
    %85 = vector.shape_cast %84 : vector<1x32x1xf32> to vector<32x1xf32>
    %86 = vector.broadcast %85 : vector<32x1xf32> to vector<32x256xf32>
    %87 = vector.broadcast %36 : vector<1x256xf32> to vector<32x256xf32>
    %88 = arith.mulf %86, %87 : vector<32x256xf32>
    %89 = arith.addf %83, %88 : vector<32x256xf32>
    %c0_48 = arith.constant 0 : index
    %c0_49 = arith.constant 0 : index
    %90 = vector.load %arg3[%c0_48, %c0_49] : memref<32x1xf32, #tpu.memory_space<vmem>>, vector<32x1xf32>
    %91 = vector.broadcast %90 : vector<32x1xf32> to vector<32x256xf32>
    %92 = arith.addf %89, %91 : vector<32x256xf32>
    %cst = arith.constant 0.000000e+00 : f32
    %93 = vector.broadcast %cst : f32 to vector<32x256xf32>
    %94 = arith.maximumf %92, %93 : vector<32x256xf32>
    %c255_i32_50 = arith.constant 255 : i32
    %95 = tpu.dynamic_rotate %94 by %c255_i32_50 dim 1 : vector<32x256xf32>, i32 -> vector<32x256xf32>
    %96 = arith.maximumf %94, %95 : vector<32x256xf32>
    %c240_i32_51 = arith.constant 240 : i32
    %97 = tpu.dynamic_rotate %96 by %c240_i32_51 dim 1 : vector<32x256xf32>, i32 -> vector<32x256xf32>
    %98 = arith.maximumf %96, %97 : vector<32x256xf32>
    %99 = arith.truncf %98 : vector<32x256xf32> to vector<32x256xbf16>
    %c0_52 = arith.constant 0 : index
    %c0_53 = arith.constant 0 : index
    %100 = vector.load %arg5[%c0_52, %c0_53] : memref<256x128xbf16, #tpu.memory_space<vmem>>, vector<256x128xbf16>
    %cst_54 = arith.constant dense<0.000000e+00> : vector<32x128xf32>
    %101 = tpu.matmul %99, %100, %cst_54 {dimension_numbers = #tpu.dot_dimension_numbers<[1], [0], [0], [1], [0, 0, 1, 1], [], []>} : vector<32x256xbf16>, vector<256x128xbf16>, vector<32x128xf32> -> vector<32x128xf32>
    %c9_i32 = arith.constant 9 : i32
    %102 = tpu.dynamic_rotate %101 by %c9_i32 dim 1 : vector<32x128xf32>, i32 -> vector<32x128xf32>
    %c0_55 = arith.constant 0 : index
    %c0_56 = arith.constant 0 : index
    %c0_57 = arith.constant 0 : index
    %103 = vector.load %arg8[%c0_55, %c0_56, %c0_57] : memref<9x1x128xf32, #tpu.memory_space<vmem>>, vector<1x1x128xf32>
    %104 = vector.shape_cast %103 : vector<1x1x128xf32> to vector<1x128xf32>
    %105 = vector.broadcast %104 : vector<1x128xf32> to vector<32x128xf32>
    %106 = arith.mulf %102, %105 : vector<32x128xf32>
    %c8_i32 = arith.constant 8 : i32
    %107 = tpu.dynamic_rotate %101 by %c8_i32 dim 1 : vector<32x128xf32>, i32 -> vector<32x128xf32>
    %c1_58 = arith.constant 1 : index
    %c0_59 = arith.constant 0 : index
    %c0_60 = arith.constant 0 : index
    %108 = vector.load %arg8[%c1_58, %c0_59, %c0_60] : memref<9x1x128xf32, #tpu.memory_space<vmem>>, vector<1x1x128xf32>
    %109 = vector.shape_cast %108 : vector<1x1x128xf32> to vector<1x128xf32>
    %110 = vector.broadcast %109 : vector<1x128xf32> to vector<32x128xf32>
    %111 = arith.mulf %107, %110 : vector<32x128xf32>
    %c7_i32 = arith.constant 7 : i32
    %112 = tpu.dynamic_rotate %101 by %c7_i32 dim 1 : vector<32x128xf32>, i32 -> vector<32x128xf32>
    %c2_61 = arith.constant 2 : index
    %c0_62 = arith.constant 0 : index
    %c0_63 = arith.constant 0 : index
    %113 = vector.load %arg8[%c2_61, %c0_62, %c0_63] : memref<9x1x128xf32, #tpu.memory_space<vmem>>, vector<1x1x128xf32>
    %114 = vector.shape_cast %113 : vector<1x1x128xf32> to vector<1x128xf32>
    %115 = vector.broadcast %114 : vector<1x128xf32> to vector<32x128xf32>
    %116 = arith.mulf %112, %115 : vector<32x128xf32>
    %c1_i32_64 = arith.constant 1 : i32
    %117 = tpu.dynamic_rotate %101 by %c1_i32_64 dim 1 : vector<32x128xf32>, i32 -> vector<32x128xf32>
    %c3_65 = arith.constant 3 : index
    %c0_66 = arith.constant 0 : index
    %c0_67 = arith.constant 0 : index
    %118 = vector.load %arg8[%c3_65, %c0_66, %c0_67] : memref<9x1x128xf32, #tpu.memory_space<vmem>>, vector<1x1x128xf32>
    %119 = vector.shape_cast %118 : vector<1x1x128xf32> to vector<1x128xf32>
    %120 = vector.broadcast %119 : vector<1x128xf32> to vector<32x128xf32>
    %121 = arith.mulf %117, %120 : vector<32x128xf32>
    %c4_68 = arith.constant 4 : index
    %c0_69 = arith.constant 0 : index
    %c0_70 = arith.constant 0 : index
    %122 = vector.load %arg8[%c4_68, %c0_69, %c0_70] : memref<9x1x128xf32, #tpu.memory_space<vmem>>, vector<1x1x128xf32>
    %123 = vector.shape_cast %122 : vector<1x1x128xf32> to vector<1x128xf32>
    %124 = vector.broadcast %123 : vector<1x128xf32> to vector<32x128xf32>
    %125 = arith.mulf %101, %124 : vector<32x128xf32>
    %c127_i32 = arith.constant 127 : i32
    %126 = tpu.dynamic_rotate %101 by %c127_i32 dim 1 : vector<32x128xf32>, i32 -> vector<32x128xf32>
    %c5_71 = arith.constant 5 : index
    %c0_72 = arith.constant 0 : index
    %c0_73 = arith.constant 0 : index
    %127 = vector.load %arg8[%c5_71, %c0_72, %c0_73] : memref<9x1x128xf32, #tpu.memory_space<vmem>>, vector<1x1x128xf32>
    %128 = vector.shape_cast %127 : vector<1x1x128xf32> to vector<1x128xf32>
    %129 = vector.broadcast %128 : vector<1x128xf32> to vector<32x128xf32>
    %130 = arith.mulf %126, %129 : vector<32x128xf32>
    %c121_i32 = arith.constant 121 : i32
    %131 = tpu.dynamic_rotate %101 by %c121_i32 dim 1 : vector<32x128xf32>, i32 -> vector<32x128xf32>
    %c6_74 = arith.constant 6 : index
    %c0_75 = arith.constant 0 : index
    %c0_76 = arith.constant 0 : index
    %132 = vector.load %arg8[%c6_74, %c0_75, %c0_76] : memref<9x1x128xf32, #tpu.memory_space<vmem>>, vector<1x1x128xf32>
    %133 = vector.shape_cast %132 : vector<1x1x128xf32> to vector<1x128xf32>
    %134 = vector.broadcast %133 : vector<1x128xf32> to vector<32x128xf32>
    %135 = arith.mulf %131, %134 : vector<32x128xf32>
    %c120_i32 = arith.constant 120 : i32
    %136 = tpu.dynamic_rotate %101 by %c120_i32 dim 1 : vector<32x128xf32>, i32 -> vector<32x128xf32>
    %c7_77 = arith.constant 7 : index
    %c0_78 = arith.constant 0 : index
    %c0_79 = arith.constant 0 : index
    %137 = vector.load %arg8[%c7_77, %c0_78, %c0_79] : memref<9x1x128xf32, #tpu.memory_space<vmem>>, vector<1x1x128xf32>
    %138 = vector.shape_cast %137 : vector<1x1x128xf32> to vector<1x128xf32>
    %139 = vector.broadcast %138 : vector<1x128xf32> to vector<32x128xf32>
    %140 = arith.mulf %136, %139 : vector<32x128xf32>
    %c119_i32 = arith.constant 119 : i32
    %141 = tpu.dynamic_rotate %101 by %c119_i32 dim 1 : vector<32x128xf32>, i32 -> vector<32x128xf32>
    %c8_80 = arith.constant 8 : index
    %c0_81 = arith.constant 0 : index
    %c0_82 = arith.constant 0 : index
    %142 = vector.load %arg8[%c8_80, %c0_81, %c0_82] : memref<9x1x128xf32, #tpu.memory_space<vmem>>, vector<1x1x128xf32>
    %143 = vector.shape_cast %142 : vector<1x1x128xf32> to vector<1x128xf32>
    %144 = vector.broadcast %143 : vector<1x128xf32> to vector<32x128xf32>
    %145 = arith.mulf %141, %144 : vector<32x128xf32>
    %146 = tpu.concatenate %106, %111, %116, %121, %125, %130, %135, %140, %145 in 0 : vector<32x128xf32>, vector<32x128xf32>, vector<32x128xf32>, vector<32x128xf32>, vector<32x128xf32>, vector<32x128xf32>, vector<32x128xf32>, vector<32x128xf32>, vector<32x128xf32> -> vector<288x128xf32>
    %147 = arith.truncf %146 : vector<288x128xf32> to vector<288x128xbf16>
    %c0_83 = arith.constant 0 : index
    %c0_84 = arith.constant 0 : index
    %148 = vector.load %arg6[%c0_83, %c0_84] : memref<64x288xbf16, #tpu.memory_space<vmem>>, vector<64x288xbf16>
    %cst_85 = arith.constant dense<0.000000e+00> : vector<64x128xf32>
    %149 = tpu.matmul %148, %147, %cst_85 {dimension_numbers = #tpu.dot_dimension_numbers<[1], [0], [0], [1], [0, 0, 1, 1], [], []>} : vector<64x288xbf16>, vector<288x128xbf16>, vector<64x128xf32> -> vector<64x128xf32>
    %c0_86 = arith.constant 0 : index
    %c0_87 = arith.constant 0 : index
    %150 = vector.load %arg7[%c0_86, %c0_87] : memref<64x1xf32, #tpu.memory_space<vmem>>, vector<64x1xf32>
    %151 = vector.broadcast %150 : vector<64x1xf32> to vector<64x128xf32>
    %152 = arith.addf %149, %151 : vector<64x128xf32>
    %cst_88 = arith.constant 0.000000e+00 : f32
    %153 = vector.broadcast %cst_88 : f32 to vector<64x128xf32>
    %154 = arith.maximumf %152, %153 : vector<64x128xf32>
    %c127_i32_89 = arith.constant 127 : i32
    %155 = tpu.dynamic_rotate %154 by %c127_i32_89 dim 1 : vector<64x128xf32>, i32 -> vector<64x128xf32>
    %156 = arith.maximumf %154, %155 : vector<64x128xf32>
    %c120_i32_90 = arith.constant 120 : i32
    %157 = tpu.dynamic_rotate %156 by %c120_i32_90 dim 1 : vector<64x128xf32>, i32 -> vector<64x128xf32>
    %158 = arith.maximumf %156, %157 : vector<64x128xf32>
    %159 = arith.truncf %158 : vector<64x128xf32> to vector<64x128xbf16>
    %c0_91 = arith.constant 0 : index
    %c0_92 = arith.constant 0 : index
    %160 = vector.load %arg9[%c0_91, %c0_92] : memref<128x128xbf16, #tpu.memory_space<vmem>>, vector<128x128xbf16>
    %cst_93 = arith.constant dense<0.000000e+00> : vector<64x128xf32>
    %161 = tpu.matmul %159, %160, %cst_93 {dimension_numbers = #tpu.dot_dimension_numbers<[1], [0], [0], [1], [0, 0, 1, 1], [], []>} : vector<64x128xbf16>, vector<128x128xbf16>, vector<64x128xf32> -> vector<64x128xf32>
    %c5_i32 = arith.constant 5 : i32
    %162 = tpu.dynamic_rotate %161 by %c5_i32 dim 1 : vector<64x128xf32>, i32 -> vector<64x128xf32>
    %c0_94 = arith.constant 0 : index
    %c0_95 = arith.constant 0 : index
    %c0_96 = arith.constant 0 : index
    %163 = vector.load %arg12[%c0_94, %c0_95, %c0_96] : memref<9x1x128xf32, #tpu.memory_space<vmem>>, vector<1x1x128xf32>
    %164 = vector.shape_cast %163 : vector<1x1x128xf32> to vector<1x128xf32>
    %165 = vector.broadcast %164 : vector<1x128xf32> to vector<64x128xf32>
    %166 = arith.mulf %162, %165 : vector<64x128xf32>
    %c4_i32 = arith.constant 4 : i32
    %167 = tpu.dynamic_rotate %161 by %c4_i32 dim 1 : vector<64x128xf32>, i32 -> vector<64x128xf32>
    %c1_97 = arith.constant 1 : index
    %c0_98 = arith.constant 0 : index
    %c0_99 = arith.constant 0 : index
    %168 = vector.load %arg12[%c1_97, %c0_98, %c0_99] : memref<9x1x128xf32, #tpu.memory_space<vmem>>, vector<1x1x128xf32>
    %169 = vector.shape_cast %168 : vector<1x1x128xf32> to vector<1x128xf32>
    %170 = vector.broadcast %169 : vector<1x128xf32> to vector<64x128xf32>
    %171 = arith.mulf %167, %170 : vector<64x128xf32>
    %c3_i32 = arith.constant 3 : i32
    %172 = tpu.dynamic_rotate %161 by %c3_i32 dim 1 : vector<64x128xf32>, i32 -> vector<64x128xf32>
    %c2_100 = arith.constant 2 : index
    %c0_101 = arith.constant 0 : index
    %c0_102 = arith.constant 0 : index
    %173 = vector.load %arg12[%c2_100, %c0_101, %c0_102] : memref<9x1x128xf32, #tpu.memory_space<vmem>>, vector<1x1x128xf32>
    %174 = vector.shape_cast %173 : vector<1x1x128xf32> to vector<1x128xf32>
    %175 = vector.broadcast %174 : vector<1x128xf32> to vector<64x128xf32>
    %176 = arith.mulf %172, %175 : vector<64x128xf32>
    %c1_i32_103 = arith.constant 1 : i32
    %177 = tpu.dynamic_rotate %161 by %c1_i32_103 dim 1 : vector<64x128xf32>, i32 -> vector<64x128xf32>
    %c3_104 = arith.constant 3 : index
    %c0_105 = arith.constant 0 : index
    %c0_106 = arith.constant 0 : index
    %178 = vector.load %arg12[%c3_104, %c0_105, %c0_106] : memref<9x1x128xf32, #tpu.memory_space<vmem>>, vector<1x1x128xf32>
    %179 = vector.shape_cast %178 : vector<1x1x128xf32> to vector<1x128xf32>
    %180 = vector.broadcast %179 : vector<1x128xf32> to vector<64x128xf32>
    %181 = arith.mulf %177, %180 : vector<64x128xf32>
    %c4_107 = arith.constant 4 : index
    %c0_108 = arith.constant 0 : index
    %c0_109 = arith.constant 0 : index
    %182 = vector.load %arg12[%c4_107, %c0_108, %c0_109] : memref<9x1x128xf32, #tpu.memory_space<vmem>>, vector<1x1x128xf32>
    %183 = vector.shape_cast %182 : vector<1x1x128xf32> to vector<1x128xf32>
    %184 = vector.broadcast %183 : vector<1x128xf32> to vector<64x128xf32>
    %185 = arith.mulf %161, %184 : vector<64x128xf32>
    %c127_i32_110 = arith.constant 127 : i32
    %186 = tpu.dynamic_rotate %161 by %c127_i32_110 dim 1 : vector<64x128xf32>, i32 -> vector<64x128xf32>
    %c5_111 = arith.constant 5 : index
    %c0_112 = arith.constant 0 : index
    %c0_113 = arith.constant 0 : index
    %187 = vector.load %arg12[%c5_111, %c0_112, %c0_113] : memref<9x1x128xf32, #tpu.memory_space<vmem>>, vector<1x1x128xf32>
    %188 = vector.shape_cast %187 : vector<1x1x128xf32> to vector<1x128xf32>
    %189 = vector.broadcast %188 : vector<1x128xf32> to vector<64x128xf32>
    %190 = arith.mulf %186, %189 : vector<64x128xf32>
    %c125_i32 = arith.constant 125 : i32
    %191 = tpu.dynamic_rotate %161 by %c125_i32 dim 1 : vector<64x128xf32>, i32 -> vector<64x128xf32>
    %c6_114 = arith.constant 6 : index
    %c0_115 = arith.constant 0 : index
    %c0_116 = arith.constant 0 : index
    %192 = vector.load %arg12[%c6_114, %c0_115, %c0_116] : memref<9x1x128xf32, #tpu.memory_space<vmem>>, vector<1x1x128xf32>
    %193 = vector.shape_cast %192 : vector<1x1x128xf32> to vector<1x128xf32>
    %194 = vector.broadcast %193 : vector<1x128xf32> to vector<64x128xf32>
    %195 = arith.mulf %191, %194 : vector<64x128xf32>
    %c124_i32 = arith.constant 124 : i32
    %196 = tpu.dynamic_rotate %161 by %c124_i32 dim 1 : vector<64x128xf32>, i32 -> vector<64x128xf32>
    %c7_117 = arith.constant 7 : index
    %c0_118 = arith.constant 0 : index
    %c0_119 = arith.constant 0 : index
    %197 = vector.load %arg12[%c7_117, %c0_118, %c0_119] : memref<9x1x128xf32, #tpu.memory_space<vmem>>, vector<1x1x128xf32>
    %198 = vector.shape_cast %197 : vector<1x1x128xf32> to vector<1x128xf32>
    %199 = vector.broadcast %198 : vector<1x128xf32> to vector<64x128xf32>
    %200 = arith.mulf %196, %199 : vector<64x128xf32>
    %c123_i32 = arith.constant 123 : i32
    %201 = tpu.dynamic_rotate %161 by %c123_i32 dim 1 : vector<64x128xf32>, i32 -> vector<64x128xf32>
    %c8_120 = arith.constant 8 : index
    %c0_121 = arith.constant 0 : index
    %c0_122 = arith.constant 0 : index
    %202 = vector.load %arg12[%c8_120, %c0_121, %c0_122] : memref<9x1x128xf32, #tpu.memory_space<vmem>>, vector<1x1x128xf32>
    %203 = vector.shape_cast %202 : vector<1x1x128xf32> to vector<1x128xf32>
    %204 = vector.broadcast %203 : vector<1x128xf32> to vector<64x128xf32>
    %205 = arith.mulf %201, %204 : vector<64x128xf32>
    %206 = tpu.concatenate %166, %171, %176, %181, %185, %190, %195, %200, %205 in 0 : vector<64x128xf32>, vector<64x128xf32>, vector<64x128xf32>, vector<64x128xf32>, vector<64x128xf32>, vector<64x128xf32>, vector<64x128xf32>, vector<64x128xf32>, vector<64x128xf32> -> vector<576x128xf32>
    %207 = arith.truncf %206 : vector<576x128xf32> to vector<576x128xbf16>
    %c0_123 = arith.constant 0 : index
    %c0_124 = arith.constant 0 : index
    %208 = vector.load %arg10[%c0_123, %c0_124] : memref<128x576xbf16, #tpu.memory_space<vmem>>, vector<128x576xbf16>
    %cst_125 = arith.constant dense<0.000000e+00> : vector<128x128xf32>
    %209 = tpu.matmul %208, %207, %cst_125 {dimension_numbers = #tpu.dot_dimension_numbers<[1], [0], [0], [1], [0, 0, 1, 1], [], []>} : vector<128x576xbf16>, vector<576x128xbf16>, vector<128x128xf32> -> vector<128x128xf32>
    %c0_126 = arith.constant 0 : index
    %c0_127 = arith.constant 0 : index
    %210 = vector.load %arg11[%c0_126, %c0_127] : memref<128x1xf32, #tpu.memory_space<vmem>>, vector<128x1xf32>
    %211 = vector.broadcast %210 : vector<128x1xf32> to vector<128x128xf32>
    %212 = arith.addf %209, %211 : vector<128x128xf32>
    %cst_128 = arith.constant 0.000000e+00 : f32
    %213 = vector.broadcast %cst_128 : f32 to vector<128x128xf32>
    %214 = arith.maximumf %212, %213 : vector<128x128xf32>
    %c4_129 = arith.constant 4 : index
    %c0_130 = arith.constant 0 : index
    %c0_131 = arith.constant 0 : index
    %215 = vector.load %arg12[%c4_129, %c0_130, %c0_131] : memref<9x1x128xf32, #tpu.memory_space<vmem>>, vector<1x1x128xf32>
    %216 = vector.shape_cast %215 : vector<1x1x128xf32> to vector<1x128xf32>
    %217 = vector.broadcast %216 : vector<1x128xf32> to vector<128x128xf32>
    %218 = arith.mulf %214, %217 : vector<128x128xf32>
    %cst_132 = arith.constant dense<0.000000e+00> : vector<128xf32>
    %219 = vector.multi_reduction <add>, %218, %cst_132 [1] : vector<128x128xf32> to vector<128xf32>
    %220 = vector.shape_cast %219 : vector<128xf32> to vector<128x1xf32>
    %cst_133 = arith.constant 6.250000e-02 : f32
    %221 = vector.broadcast %cst_133 : f32 to vector<128x1xf32>
    %222 = arith.mulf %220, %221 : vector<128x1xf32>
    %c0_134 = arith.constant 0 : index
    %c0_135 = arith.constant 0 : index
    %223 = vector.load %arg13[%c0_134, %c0_135] : memref<128x128xf32, #tpu.memory_space<vmem>>, vector<128x128xf32>
    %224 = vector.broadcast %222 : vector<128x1xf32> to vector<128x128xf32>
    %225 = arith.mulf %224, %223 : vector<128x128xf32>
    %cst_136 = arith.constant dense<0.000000e+00> : vector<128xf32>
    %226 = vector.multi_reduction <add>, %225, %cst_136 [0] : vector<128x128xf32> to vector<128xf32>
    %227 = vector.shape_cast %226 : vector<128xf32> to vector<1x128xf32>
    %c0_137 = arith.constant 0 : index
    %c0_138 = arith.constant 0 : index
    %228 = vector.load %arg14[%c0_137, %c0_138] : memref<1x128xf32, #tpu.memory_space<vmem>>, vector<1x128xf32>
    %229 = arith.addf %227, %228 : vector<1x128xf32>
    %c0_139 = arith.constant 0 : index
    %c0_140 = arith.constant 0 : index
    %c0_141 = arith.constant 0 : index
    %230 = vector.load %arg15[%c0_139, %c0_140, %c0_141] : memref<1x1x128xf32, #tpu.memory_space<vmem>>, vector<1x1x128xf32>
    %231 = vector.shape_cast %230 : vector<1x1x128xf32> to vector<1x128xf32>
    %232 = vector.shape_cast %229 : vector<1x128xf32> to vector<1x1x128xf32>
    tpu.vector_store %arg15[%c0_139, %c0_140, %c0_141], %232 {strides = array<i32>} : memref<1x1x128xf32, #tpu.memory_space<vmem>>, vector<1x1x128xf32>,
    return
  }
  func.func @transform_0(%arg0: i32) -> (i32, i32, i32) {
    %c0_i32 = arith.constant 0 : i32
    %c0_i32_0 = arith.constant 0 : i32
    %c0_i32_1 = arith.constant 0 : i32
    return %arg0, %c0_i32, %c0_i32_0 : i32, i32, i32
  }
  func.func @transform_1(%arg0: i32) -> (i32, i32, i32) {
    %c0_i32 = arith.constant 0 : i32
    %c0_i32_0 = arith.constant 0 : i32
    %c0_i32_1 = arith.constant 0 : i32
    %c0_i32_2 = arith.constant 0 : i32
    return %c0_i32, %c0_i32_0, %c0_i32_1 : i32, i32, i32
  }
  func.func @transform_2(%arg0: i32) -> (i32, i32) {
    %c0_i32 = arith.constant 0 : i32
    %c0_i32_0 = arith.constant 0 : i32
    %c0_i32_1 = arith.constant 0 : i32
    return %c0_i32, %c0_i32_0 : i32, i32
  }
  func.func @transform_3(%arg0: i32) -> (i32, i32, i32) {
    %c0_i32 = arith.constant 0 : i32
    %c0_i32_0 = arith.constant 0 : i32
    %c0_i32_1 = arith.constant 0 : i32
    %c0_i32_2 = arith.constant 0 : i32
    return %c0_i32, %c0_i32_0, %c0_i32_1 : i32, i32, i32
  }
  func.func @transform_4(%arg0: i32) -> (i32, i32) {
    %c0_i32 = arith.constant 0 : i32
    %c0_i32_0 = arith.constant 0 : i32
    %c0_i32_1 = arith.constant 0 : i32
    return %c0_i32, %c0_i32_0 : i32, i32
  }
  func.func @transform_5(%arg0: i32) -> (i32, i32) {
    %c0_i32 = arith.constant 0 : i32
    %c0_i32_0 = arith.constant 0 : i32
    %c0_i32_1 = arith.constant 0 : i32
    return %c0_i32, %c0_i32_0 : i32, i32
  }
  func.func @transform_6(%arg0: i32) -> (i32, i32) {
    %c0_i32 = arith.constant 0 : i32
    %c0_i32_0 = arith.constant 0 : i32
    %c0_i32_1 = arith.constant 0 : i32
    return %c0_i32, %c0_i32_0 : i32, i32
  }
  func.func @transform_7(%arg0: i32) -> (i32, i32, i32) {
    %c0_i32 = arith.constant 0 : i32
    %c0_i32_0 = arith.constant 0 : i32
    %c0_i32_1 = arith.constant 0 : i32
    %c0_i32_2 = arith.constant 0 : i32
    return %c0_i32, %c0_i32_0, %c0_i32_1 : i32, i32, i32
  }
  func.func @transform_8(%arg0: i32) -> (i32, i32) {
    %c0_i32 = arith.constant 0 : i32
    %c0_i32_0 = arith.constant 0 : i32
    %c0_i32_1 = arith.constant 0 : i32
    return %c0_i32, %c0_i32_0 : i32, i32
  }
  func.func @transform_9(%arg0: i32) -> (i32, i32) {
    %c0_i32 = arith.constant 0 : i32
    %c0_i32_0 = arith.constant 0 : i32
    %c0_i32_1 = arith.constant 0 : i32
    return %c0_i32, %c0_i32_0 : i32, i32
  }
  func.func @transform_10(%arg0: i32) -> (i32, i32) {
    %c0_i32 = arith.constant 0 : i32
    %c0_i32_0 = arith.constant 0 : i32
    %c0_i32_1 = arith.constant 0 : i32
    return %c0_i32, %c0_i32_0 : i32, i32
  }
  func.func @transform_11(%arg0: i32) -> (i32, i32, i32) {
    %c0_i32 = arith.constant 0 : i32
    %c0_i32_0 = arith.constant 0 : i32
    %c0_i32_1 = arith.constant 0 : i32
    %c0_i32_2 = arith.constant 0 : i32
    return %c0_i32, %c0_i32_0, %c0_i32_1 : i32, i32, i32
  }
  func.func @transform_12(%arg0: i32) -> (i32, i32) {
    %c0_i32 = arith.constant 0 : i32
    %c0_i32_0 = arith.constant 0 : i32
    %c0_i32_1 = arith.constant 0 : i32
    return %c0_i32, %c0_i32_0 : i32, i32
  }
  func.func @transform_13(%arg0: i32) -> (i32, i32) {
    %c0_i32 = arith.constant 0 : i32
    %c0_i32_0 = arith.constant 0 : i32
    %c0_i32_1 = arith.constant 0 : i32
    return %c0_i32, %c0_i32_0 : i32, i32
  }
  func.func @transform_14(%arg0: i32) -> (i32, i32, i32) {
    %c0_i32 = arith.constant 0 : i32
    %c0_i32_0 = arith.constant 0 : i32
    %c0_i32_1 = arith.constant 0 : i32
    return %arg0, %c0_i32, %c0_i32_0 : i32, i32, i32
  }
}

</mosaic_0001>

<llo_original>
// kernel: simple_classifier_forward.1
$region0: #{simple_classifier_forward.1}
  #allocation0 [shape = 'u32[]', space=smem, size = 0x4, offset = 0x4, fixed_abs, tag = 'smem constant byte address 0x4 - core index']
  #allocation1 [shape = 'u32[144,128]{1,0:T(1,128)}', space=vmem, size = 0x12000, scoped, tag = 'internal scratch']
  %s0 = inlined_call_operand.vmem [shape: f32[2,1,256], index: 0, kind: input, shape index: {}]
  %s1 = inlined_call_operand.vmem [shape: f32[9,32,1], index: 1, kind: input, shape index: {}]
  %s2 = inlined_call_operand.vmem [shape: f32[32,1], index: 2, kind: input, shape index: {}]
  %s3 = inlined_call_operand.vmem [shape: f32[9,1,256], index: 3, kind: input, shape index: {}]
  %s4 = inlined_call_operand.vmem [shape: bf16[256,128], index: 4, kind: input, shape index: {}]
  %s5 = inlined_call_operand.vmem [shape: bf16[64,288], index: 5, kind: input, shape index: {}]
  %s6 = inlined_call_operand.vmem [shape: f32[64,1], index: 6, kind: input, shape index: {}]
  %s7 = inlined_call_operand.vmem [shape: f32[9,1,128], index: 7, kind: input, shape index: {}]
  %s8 = inlined_call_operand.vmem [shape: bf16[128,128], index: 8, kind: input, shape index: {}]
  %s9 = inlined_call_operand.vmem [shape: bf16[128,576], index: 9, kind: input, shape index: {}]
  %s10 = inlined_call_operand.vmem [shape: f32[128,1], index: 10, kind: input, shape index: {}]
  %s11 = inlined_call_operand.vmem [shape: f32[9,1,128], index: 11, kind: input, shape index: {}]
  %s12 = inlined_call_operand.vmem [shape: f32[128,128], index: 12, kind: input, shape index: {}]
  %s13 = inlined_call_operand.vmem [shape: f32[1,128], index: 13, kind: input, shape index: {}]
  %s14 = inlined_call_operand.hbm [shape: f32[2,1,128], index: 14, kind: output, shape index: {}]
  %s15 = sld [smem:[#allocation0]]
  $region89: #{simple_classifier_forward.1} parent=0
    _
  %s17 = ssub.s32 1, %s15
  %s18 = scalar_select 0, %s17, %s15
  $region1: #{simple_classifier_forward.1} parent=0
    #allocation2 [shape = 'u8[1024]{0}', space=vmem, size = 0x400, scoped, tag = 'output window, operand 0']
    #allocation3 [shape = 's32[2]{0}', space=sflag, size = 0x8, scoped, tag = 'scoped memory for simple_classifier_forward.1']
    %19 = vsyncpa [#allocation3], 0
    %s20 = scalar_lea.sflag [#allocation3], 1
    %21 = vsyncpa %s20, 0
    loop: start=0, step=1, limit=4
    $region2: #{simple_classifier_forward.1} parent=1 // loop_pre_header
      _
    $region3: #{simple_classifier_forward.1} parent=1 // loop_header
      %s23 = sphi 0, %s27
      %p24 = scmp.ge.s32.totalorder %s23, 4
      %s33 = sphi 0, %s35
      %s36 = sphi 0, %s33
      %s37 = sphi 0, %s36
      %s53 = sphi 0, %s37
      %s57 = sphi 0, %s57
      %s59 = sphi 0, %s57
      %s60 = sphi 0, %s59
      %s74 = sphi 0, %s60
      %s78 = sphi 0, %s78
      %s80 = sphi 0, %s78
      %s81 = sphi 0, %s80
      %s95 = sphi 0, %s81
      %s99 = sphi 0, %s99
      %s101 = sphi 0, %s99
      %s102 = sphi 0, %s101
      %s116 = sphi 0, %s102
      %s120 = sphi 0, %s120
      %s122 = sphi 0, %s120
      %s123 = sphi 0, %s122
      %s137 = sphi 0, %s123
      %s141 = sphi 0, %s141
      %s143 = sphi 0, %s141
      %s144 = sphi 0, %s143
      %s158 = sphi 0, %s144
      %s162 = sphi 0, %s162
      %s164 = sphi 0, %s162
      %s165 = sphi 0, %s164
      %s179 = sphi 0, %s165
      %s183 = sphi 0, %s183
      %s185 = sphi 0, %s183
      %s186 = sphi 0, %s185
      %s200 = sphi 0, %s186
      %s204 = sphi 0, %s204
      %s206 = sphi 0, %s204
      %s207 = sphi 0, %s206
      %s221 = sphi 0, %s207
      %s225 = sphi 0, %s225
      %s227 = sphi 0, %s225
      %s228 = sphi 0, %s227
      %s242 = sphi 0, %s228
      %s246 = sphi 0, %s246
      %s248 = sphi 0, %s246
      %s249 = sphi 0, %s248
      %s263 = sphi 0, %s249
      %s267 = sphi 0, %s267
      %s269 = sphi 0, %s267
      %s270 = sphi 0, %s269
      %s284 = sphi 0, %s270
      %s288 = sphi 0, %s288
      %s290 = sphi 0, %s288
      %s291 = sphi 0, %s290
      %s305 = sphi 0, %s291
      %s309 = sphi 0, %s309
      %s311 = sphi 0, %s309
      %s312 = sphi 0, %s311
      %s326 = sphi 0, %s312
      %s332 = sphi 0, %s334
      %s335 = sphi 0, %s332
      %s336 = sphi 0, %s335
      %s352 = sphi 0, %s336
    $region4: #{simple_classifier_forward.1} parent=1 // loop_header_branch
      %26 = sbr.rel (%p24) target = $region8
    $region5: #{simple_classifier_forward.1} parent=1 // loop_body
      %s28 = ssub.s32 %s23, 1
      %s29 = ssub.s32 %s23, 2
      %s30 = sadd.s32 %s23, 1
      %s31 = ssub.s32 %s23, %s30
      %p32 = scmp.eq.s32.totalorder %s31, 0
      %s34 = sadd.s32 %s33, 1
      %s35 = scalar_select %p32, %s33, %s34
      %p38 = pneg %p32
      %p39 = scmp.eq.s32.totalorder %s23, 1
      %p40 = por %p38, %p39
      %p41 = scmp.ne.s32.totalorder %s33, %s36
      %p42 = scmp.eq.s32.totalorder %s23, 0
      %p43 = por %p41, %p42
      %p44 = scmp.ne.s32.totalorder %s33, %s36
      %p45 = scmp.eq.s32.totalorder %s28, 1
      %p46 = por %p44, %p45
      %p47 = scmp.ne.s32.totalorder %s36, %s37
      %p48 = scmp.eq.s32.totalorder %s28, 0
      %p49 = por %p47, %p48
      %p50 = scmp.ne.s32.totalorder %s36, %s37
      %p51 = scmp.eq.s32.totalorder %s29, 1
      %p52 = por %p50, %p51
      %p54 = scmp.ne.s32.totalorder %s37, %s53
      %p55 = scmp.eq.s32.totalorder %s29, 0
      %p56 = por %p54, %p55
      %s58 = sadd.s32 %s57, 1
      %p61 = scmp.eq.s32.totalorder %s23, 1
      %p62 = scmp.ne.s32.totalorder %s57, %s59
      %p63 = scmp.eq.s32.totalorder %s23, 0
      %p64 = por %p62, %p63
      %p65 = scmp.ne.s32.totalorder %s57, %s59
      %p66 = scmp.eq.s32.totalorder %s28, 1
      %p67 = por %p65, %p66
      %p68 = scmp.ne.s32.totalorder %s59, %s60
      %p69 = scmp.eq.s32.totalorder %s28, 0
      %p70 = por %p68, %p69
      %p71 = scmp.ne.s32.totalorder %s59, %s60
      %p72 = scmp.eq.s32.totalorder %s29, 1
      %p73 = por %p71, %p72
      %p75 = scmp.ne.s32.totalorder %s60, %s74
      %p76 = scmp.eq.s32.totalorder %s29, 0
      %p77 = por %p75, %p76
      %s79 = sadd.s32 %s78, 1
      %p82 = scmp.eq.s32.totalorder %s23, 1
      %p83 = scmp.ne.s32.totalorder %s78, %s80
      %p84 = scmp.eq.s32.totalorder %s23, 0
      %p85 = por %p83, %p84
      %p86 = scmp.ne.s32.totalorder %s78, %s80
      %p87 = scmp.eq.s32.totalorder %s28, 1
      %p88 = por %p86, %p87
      %p89 = scmp.ne.s32.totalorder %s80, %s81
      %p90 = scmp.eq.s32.totalorder %s28, 0
      %p91 = por %p89, %p90
      %p92 = scmp.ne.s32.totalorder %s80, %s81
      %p93 = scmp.eq.s32.totalorder %s29, 1
      %p94 = por %p92, %p93
      %p96 = scmp.ne.s32.totalorder %s81, %s95
      %p97 = scmp.eq.s32.totalorder %s29, 0
      %p98 = por %p96, %p97
      %s100 = sadd.s32 %s99, 1
      %p103 = scmp.eq.s32.totalorder %s23, 1
      %p104 = scmp.ne.s32.totalorder %s99, %s101
      %p105 = scmp.eq.s32.totalorder %s23, 0
      %p106 = por %p104, %p105
      %p107 = scmp.ne.s32.totalorder %s99, %s101
      %p108 = scmp.eq.s32.totalorder %s28, 1
      %p109 = por %p107, %p108
      %p110 = scmp.ne.s32.totalorder %s101, %s102
      %p111 = scmp.eq.s32.totalorder %s28, 0
      %p112 = por %p110, %p111
      %p113 = scmp.ne.s32.totalorder %s101, %s102
      %p114 = scmp.eq.s32.totalorder %s29, 1
      %p115 = por %p113, %p114
      %p117 = scmp.ne.s32.totalorder %s102, %s116
      %p118 = scmp.eq.s32.totalorder %s29, 0
      %p119 = por %p117, %p118
      %s121 = sadd.s32 %s120, 1
      %p124 = scmp.eq.s32.totalorder %s23, 1
      %p125 = scmp.ne.s32.totalorder %s120, %s122
      %p126 = scmp.eq.s32.totalorder %s23, 0
      %p127 = por %p125, %p126
      %p128 = scmp.ne.s32.totalorder %s120, %s122
      %p129 = scmp.eq.s32.totalorder %s28, 1
      %p130 = por %p128, %p129
      %p131 = scmp.ne.s32.totalorder %s122, %s123
      %p132 = scmp.eq.s32.totalorder %s28, 0
      %p133 = por %p131, %p132
      %p134 = scmp.ne.s32.totalorder %s122, %s123
      %p135 = scmp.eq.s32.totalorder %s29, 1
      %p136 = por %p134, %p135
      %p138 = scmp.ne.s32.totalorder %s123, %s137
      %p139 = scmp.eq.s32.totalorder %s29, 0
      %p140 = por %p138, %p139
      %s142 = sadd.s32 %s141, 1
      %p145 = scmp.eq.s32.totalorder %s23, 1
      %p146 = scmp.ne.s32.totalorder %s141, %s143
      %p147 = scmp.eq.s32.totalorder %s23, 0
      %p148 = por %p146, %p147
      %p149 = scmp.ne.s32.totalorder %s141, %s143
      %p150 = scmp.eq.s32.totalorder %s28, 1
      %p151 = por %p149, %p150
      %p152 = scmp.ne.s32.totalorder %s143, %s144
      %p153 = scmp.eq.s32.totalorder %s28, 0
      %p154 = por %p152, %p153
      %p155 = scmp.ne.s32.totalorder %s143, %s144
      %p156 = scmp.eq.s32.totalorder %s29, 1
      %p157 = por %p155, %p156
      %p159 = scmp.ne.s32.totalorder %s144, %s158
      %p160 = scmp.eq.s32.totalorder %s29, 0
      %p161 = por %p159, %p160
      %s163 = sadd.s32 %s162, 1
      %p166 = scmp.eq.s32.totalorder %s23, 1
      %p167 = scmp.ne.s32.totalorder %s162, %s164
      %p168 = scmp.eq.s32.totalorder %s23, 0
      %p169 = por %p167, %p168
      %p170 = scmp.ne.s32.totalorder %s162, %s164
      %p171 = scmp.eq.s32.totalorder %s28, 1
      %p172 = por %p170, %p171
      %p173 = scmp.ne.s32.totalorder %s164, %s165
      %p174 = scmp.eq.s32.totalorder %s28, 0
      %p175 = por %p173, %p174
      %p176 = scmp.ne.s32.totalorder %s164, %s165
      %p177 = scmp.eq.s32.totalorder %s29, 1
      %p178 = por %p176, %p177
      %p180 = scmp.ne.s32.totalorder %s165, %s179
      %p181 = scmp.eq.s32.totalorder %s29, 0
      %p182 = por %p180, %p181
      %s184 = sadd.s32 %s183, 1
      %p187 = scmp.eq.s32.totalorder %s23, 1
      %p188 = scmp.ne.s32.totalorder %s183, %s185
      %p189 = scmp.eq.s32.totalorder %s23, 0
      %p190 = por %p188, %p189
      %p191 = scmp.ne.s32.totalorder %s183, %s185
      %p192 = scmp.eq.s32.totalorder %s28, 1
      %p193 = por %p191, %p192
      %p194 = scmp.ne.s32.totalorder %s185, %s186
      %p195 = scmp.eq.s32.totalorder %s28, 0
      %p196 = por %p194, %p195
      %p197 = scmp.ne.s32.totalorder %s185, %s186
      %p198 = scmp.eq.s32.totalorder %s29, 1
      %p199 = por %p197, %p198
      %p201 = scmp.ne.s32.totalorder %s186, %s200
      %p202 = scmp.eq.s32.totalorder %s29, 0
      %p203 = por %p201, %p202
      %s205 = sadd.s32 %s204, 1
      %p208 = scmp.eq.s32.totalorder %s23, 1
      %p209 = scmp.ne.s32.totalorder %s204, %s206
      %p210 = scmp.eq.s32.totalorder %s23, 0
      %p211 = por %p209, %p210
      %p212 = scmp.ne.s32.totalorder %s204, %s206
      %p213 = scmp.eq.s32.totalorder %s28, 1
      %p214 = por %p212, %p213
      %p215 = scmp.ne.s32.totalorder %s206, %s207
      %p216 = scmp.eq.s32.totalorder %s28, 0
      %p217 = por %p215, %p216
      %p218 = scmp.ne.s32.totalorder %s206, %s207
      %p219 = scmp.eq.s32.totalorder %s29, 1
      %p220 = por %p218, %p219
      %p222 = scmp.ne.s32.totalorder %s207, %s221
      %p223 = scmp.eq.s32.totalorder %s29, 0
      %p224 = por %p222, %p223
      %s226 = sadd.s32 %s225, 1
      %p229 = scmp.eq.s32.totalorder %s23, 1
      %p230 = scmp.ne.s32.totalorder %s225, %s227
      %p231 = scmp.eq.s32.totalorder %s23, 0
      %p232 = por %p230, %p231
      %p233 = scmp.ne.s32.totalorder %s225, %s227
      %p234 = scmp.eq.s32.totalorder %s28, 1
      %p235 = por %p233, %p234
      %p236 = scmp.ne.s32.totalorder %s227, %s228
      %p237 = scmp.eq.s32.totalorder %s28, 0
      %p238 = por %p236, %p237
      %p239 = scmp.ne.s32.totalorder %s227, %s228
      %p240 = scmp.eq.s32.totalorder %s29, 1
      %p241 = por %p239, %p240
      %p243 = scmp.ne.s32.totalorder %s228, %s242
      %p244 = scmp.eq.s32.totalorder %s29, 0
      %p245 = por %p243, %p244
      %s247 = sadd.s32 %s246, 1
      %p250 = scmp.eq.s32.totalorder %s23, 1
      %p251 = scmp.ne.s32.totalorder %s246, %s248
      %p252 = scmp.eq.s32.totalorder %s23, 0
      %p253 = por %p251, %p252
      %p254 = scmp.ne.s32.totalorder %s246, %s248
      %p255 = scmp.eq.s32.totalorder %s28, 1
      %p256 = por %p254, %p255
      %p257 = scmp.ne.s32.totalorder %s248, %s249
      %p258 = scmp.eq.s32.totalorder %s28, 0
      %p259 = por %p257, %p258
      %p260 = scmp.ne.s32.totalorder %s248, %s249
      %p261 = scmp.eq.s32.totalorder %s29, 1
      %p262 = por %p260, %p261
      %p264 = scmp.ne.s32.totalorder %s249, %s263
      %p265 = scmp.eq.s32.totalorder %s29, 0
      %p266 = por %p264, %p265
      %s268 = sadd.s32 %s267, 1
      %p271 = scmp.eq.s32.totalorder %s23, 1
      %p272 = scmp.ne.s32.totalorder %s267, %s269
      %p273 = scmp.eq.s32.totalorder %s23, 0
      %p274 = por %p272, %p273
      %p275 = scmp.ne.s32.totalorder %s267, %s269
      %p276 = scmp.eq.s32.totalorder %s28, 1
      %p277 = por %p275, %p276
      %p278 = scmp.ne.s32.totalorder %s269, %s270
      %p279 = scmp.eq.s32.totalorder %s28, 0
      %p280 = por %p278, %p279
      %p281 = scmp.ne.s32.totalorder %s269, %s270
      %p282 = scmp.eq.s32.totalorder %s29, 1
      %p283 = por %p281, %p282
      %p285 = scmp.ne.s32.totalorder %s270, %s284
      %p286 = scmp.eq.s32.totalorder %s29, 0
      %p287 = por %p285, %p286
      %s289 = sadd.s32 %s288, 1
      %p292 = scmp.eq.s32.totalorder %s23, 1
      %p293 = scmp.ne.s32.totalorder %s288, %s290
      %p294 = scmp.eq.s32.totalorder %s23, 0
      %p295 = por %p293, %p294
      %p296 = scmp.ne.s32.totalorder %s288, %s290
      %p297 = scmp.eq.s32.totalorder %s28, 1
      %p298 = por %p296, %p297
      %p299 = scmp.ne.s32.totalorder %s290, %s291
      %p300 = scmp.eq.s32.totalorder %s28, 0
      %p301 = por %p299, %p300
      %p302 = scmp.ne.s32.totalorder %s290, %s291
      %p303 = scmp.eq.s32.totalorder %s29, 1
      %p304 = por %p302, %p303
      %p306 = scmp.ne.s32.totalorder %s291, %s305
      %p307 = scmp.eq.s32.totalorder %s29, 0
      %p308 = por %p306, %p307
      %s310 = sadd.s32 %s309, 1
      %p313 = scmp.eq.s32.totalorder %s23, 1
      %p314 = scmp.ne.s32.totalorder %s309, %s311
      %p315 = scmp.eq.s32.totalorder %s23, 0
      %p316 = por %p314, %p315
      %p317 = scmp.ne.s32.totalorder %s309, %s311
      %p318 = scmp.eq.s32.totalorder %s28, 1
      %p319 = por %p317, %p318
      %p320 = scmp.ne.s32.totalorder %s311, %s312
      %p321 = scmp.eq.s32.totalorder %s28, 0
      %p322 = por %p320, %p321
      %p323 = scmp.ne.s32.totalorder %s311, %s312
      %p324 = scmp.eq.s32.totalorder %s29, 1
      %p325 = por %p323, %p324
      %p327 = scmp.ne.s32.totalorder %s312, %s326
      %p328 = scmp.eq.s32.totalorder %s29, 0
      %p329 = por %p327, %p328
      %s330 = ssub.s32 %s23, %s30
      %p331 = scmp.eq.s32.totalorder %s330, 0
      %s333 = sadd.s32 %s332, 1
      %s334 = scalar_select %p331, %s332, %s333
      %p337 = pneg %p331
      %p338 = scmp.eq.s32.totalorder %s23, 1
      %p339 = por %p337, %p338
      %p340 = scmp.ne.s32.totalorder %s332, %s335
      %p341 = scmp.eq.s32.totalorder %s23, 0
      %p342 = por %p340, %p341
      %p343 = scmp.ne.s32.totalorder %s332, %s335
      %p344 = scmp.eq.s32.totalorder %s28, 1
      %p345 = por %p343, %p344
      %p346 = scmp.ne.s32.totalorder %s335, %s336
      %p347 = scmp.eq.s32.totalorder %s28, 0
      %p348 = por %p346, %p347
      %p349 = scmp.ne.s32.totalorder %s335, %s336
      %p350 = scmp.eq.s32.totalorder %s29, 1
      %p351 = por %p349, %p350
      %p353 = scmp.ne.s32.totalorder %s336, %s352
      %p354 = scmp.eq.s32.totalorder %s29, 0
      %p355 = por %p353, %p354
      %p356 = scmp.le.s32.totalorder 1, %s23
      %p357 = scmp.lt.s32.totalorder %s23, 3
      %p358 = pnand %p356, %p357
      %p359 = pneg %p358
      // Predicated region
      $region9: #{simple_classifier_forward.1} parent=5 // pred_check
        _
      $region10: #{simple_classifier_forward.1} parent=5 // pred_check_branch
        %361 = sbr.rel (%p358) target = $region12
      $region11: #{simple_classifier_forward.1} parent=5 // pred_region
        %s362 = ssub.s32 %s23, 1
        // Predicated region
        $region13: #{simple_classifier_forward.1} parent=11 // pred_check
          %p363 = pneg %p70
        $region14: #{simple_classifier_forward.1} parent=11 // pred_check_branch
          %365 = sbr.rel (%p363) target = $region16
        $region15: #{simple_classifier_forward.1} parent=11 // pred_region
          _
        $region16: #{simple_classifier_forward.1} parent=11 // pred_fallthru
          _
        // Predicated region
        $region17: #{simple_classifier_forward.1} parent=11 // pred_check
          %p366 = pneg %p91
        $region18: #{simple_classifier_forward.1} parent=11 // pred_check_branch
          %368 = sbr.rel (%p366) target = $region20
        $region19: #{simple_classifier_forward.1} parent=11 // pred_region
          _
        $region20: #{simple_classifier_forward.1} parent=11 // pred_fallthru
          _
        // Predicated region
        $region21: #{simple_classifier_forward.1} parent=11 // pred_check
          %p369 = pneg %p112
        $region22: #{simple_classifier_forward.1} parent=11 // pred_check_branch
          %371 = sbr.rel (%p369) target = $region24
        $region23: #{simple_classifier_forward.1} parent=11 // pred_region
          _
        $region24: #{simple_classifier_forward.1} parent=11 // pred_fallthru
          _
        // Predicated region
        $region25: #{simple_classifier_forward.1} parent=11 // pred_check
          %p372 = pneg %p133
        $region26: #{simple_classifier_forward.1} parent=11 // pred_check_branch
          %374 = sbr.rel (%p372) target = $region28
        $region27: #{simple_classifier_forward.1} parent=11 // pred_region
          _
        $region28: #{simple_classifier_forward.1} parent=11 // pred_fallthru
          _
        // Predicated region
        $region29: #{simple_classifier_forward.1} parent=11 // pred_check
          %p375 = pneg %p154
        $region30: #{simple_classifier_forward.1} parent=11 // pred_check_branch
          %377 = sbr.rel (%p375) target = $region32
        $region31: #{simple_classifier_forward.1} parent=11 // pred_region
          _
        $region32: #{simple_classifier_forward.1} parent=11 // pred_fallthru
          _
        // Predicated region
        $region33: #{simple_classifier_forward.1} parent=11 // pred_check
          %p378 = pneg %p175
        $region34: #{simple_classifier_forward.1} parent=11 // pred_check_branch
          %380 = sbr.rel (%p378) target = $region36
        $region35: #{simple_classifier_forward.1} parent=11 // pred_region
          _
        $region36: #{simple_classifier_forward.1} parent=11 // pred_fallthru
          _
        // Predicated region
        $region37: #{simple_classifier_forward.1} parent=11 // pred_check
          %p381 = pneg %p196
        $region38: #{simple_classifier_forward.1} parent=11 // pred_check_branch
          %383 = sbr.rel (%p381) target = $region40
        $region39: #{simple_classifier_forward.1} parent=11 // pred_region
          _
        $region40: #{simple_classifier_forward.1} parent=11 // pred_fallthru
          _
        // Predicated region
        $region41: #{simple_classifier_forward.1} parent=11 // pred_check
          %p384 = pneg %p217
        $region42: #{simple_classifier_forward.1} parent=11 // pred_check_branch
          %386 = sbr.rel (%p384) target = $region44
        $region43: #{simple_classifier_forward.1} parent=11 // pred_region
          _
        $region44: #{simple_classifier_forward.1} parent=11 // pred_fallthru
          _
        // Predicated region
        $region45: #{simple_classifier_forward.1} parent=11 // pred_check
          %p387 = pneg %p238
        $region46: #{simple_classifier_forward.1} parent=11 // pred_check_branch
          %389 = sbr.rel (%p387) target = $region48
        $region47: #{simple_classifier_forward.1} parent=11 // pred_region
          _
        $region48: #{simple_classifier_forward.1} parent=11 // pred_fallthru
          _
        // Predicated region
        $region49: #{simple_classifier_forward.1} parent=11 // pred_check
          %p390 = pneg %p259
        $region50: #{simple_classifier_forward.1} parent=11 // pred_check_branch
          %392 = sbr.rel (%p390) target = $region52
        $region51: #{simple_classifier_forward.1} parent=11 // pred_region
          _
        $region52: #{simple_classifier_forward.1} parent=11 // pred_fallthru
          _
        // Predicated region
        $region53: #{simple_classifier_forward.1} parent=11 // pred_check
          %p393 = pneg %p280
        $region54: #{simple_classifier_forward.1} parent=11 // pred_check_branch
          %395 = sbr.rel (%p393) target = $region56
        $region55: #{simple_classifier_forward.1} parent=11 // pred_region
          _
        $region56: #{simple_classifier_forward.1} parent=11 // pred_fallthru
          _
        // Predicated region
        $region57: #{simple_classifier_forward.1} parent=11 // pred_check
          %p396 = pneg %p301
        $region58: #{simple_classifier_forward.1} parent=11 // pred_check_branch
          %398 = sbr.rel (%p396) target = $region60
        $region59: #{simple_classifier_forward.1} parent=11 // pred_region
          _
        $region60: #{simple_classifier_forward.1} parent=11 // pred_fallthru
          _
        // Predicated region
        $region61: #{simple_classifier_forward.1} parent=11 // pred_check
          %p399 = pneg %p322
        $region62: #{simple_classifier_forward.1} parent=11 // pred_check_branch
          %401 = sbr.rel (%p399) target = $region64
        $region63: #{simple_classifier_forward.1} parent=11 // pred_region
          _
        $region64: #{simple_classifier_forward.1} parent=11 // pred_fallthru
          _
      $region12: #{simple_classifier_forward.1} parent=5 // pred_fallthru
        _
      %p402 = scmp.lt.s32.totalorder %s23, 2
      // Predicated region
      $region65: #{simple_classifier_forward.1} parent=5 // pred_check
        %p403 = pneg %p402
      $region66: #{simple_classifier_forward.1} parent=5 // pred_check_branch
        %405 = sbr.rel (%p403) target = $region68
      $region67: #{simple_classifier_forward.1} parent=5 // pred_region
        // Predicated region
        $region69: #{simple_classifier_forward.1} parent=67 // pred_check
          %p406 = pneg %p43
        $region70: #{simple_classifier_forward.1} parent=67 // pred_check_branch
          %408 = sbr.rel (%p406) target = $region72
        $region71: #{simple_classifier_forward.1} parent=67 // pred_region
          %p409 = scmp.lt.s32.totalorder %s23, 1
          %s410 = scalar_select %p409, %s23, 1
          %s411 = smul.addr %s410, 2
          %s412 = scalar_lea.vmem %s0, %s411
        $region72: #{simple_classifier_forward.1} parent=67 // pred_fallthru
          _
      $region68: #{simple_classifier_forward.1} parent=5 // pred_fallthru
        _
      %p413 = scmp.le.s32.totalorder 1, %s23
      %p414 = scmp.lt.s32.totalorder %s23, 3
      %p415 = pnand %p413, %p414
      %p416 = pneg %p415
      // Predicated region
      $region73: #{simple_classifier_forward.1} parent=5 // pred_check
        _
      $region74: #{simple_classifier_forward.1} parent=5 // pred_check_branch
        %418 = sbr.rel (%p415) target = $region76
      $region75: #{simple_classifier_forward.1} parent=5 // pred_region
        %s419 = ssub.s32 %s23, 1
        %p420 = scmp.lt.s32.totalorder %s28, 1
        %s421 = scalar_select %p420, %s28, 1
        %s422 = smul.addr %s421, 2
        %s423 = scalar_lea.vmem %s0, %s422
        %p424 = pneg %p49
        %p425 = pneg %p46
        %p426 = pneg %p70
        %p427 = pneg %p67
        %p428 = pneg %p91
        %p429 = pneg %p88
        %p430 = pneg %p112
        %p431 = pneg %p109
        %p432 = pneg %p133
        %p433 = pneg %p130
        %p434 = pneg %p154
        %p435 = pneg %p151
        %p436 = pneg %p175
        %p437 = pneg %p172
        %p438 = pneg %p196
        %p439 = pneg %p193
        %p440 = pneg %p217
        %p441 = pneg %p214
        %p442 = pneg %p238
        %p443 = pneg %p235
        %p444 = pneg %p259
        %p445 = pneg %p256
        %p446 = pneg %p280
        %p447 = pneg %p277
        %p448 = pneg %p301
        %p449 = pneg %p298
        %p450 = pneg %p322
        %p451 = pneg %p319
        %p452 = pneg %p348
        %p453 = pneg %p345
        %s454 = sand.u32 %s335, 1
        %s455 = scalar_lea.sflag [#allocation3], %s454
        %s456 = sand.u32 %s335, 1
        %s457 = scalar_lea.vmem [#allocation2], %s456
        %p458 = scmp.lt.s32.totalorder %s28, 1
        %s459 = scalar_select %p458, %s28, 1
        %s460 = smul.addr %s459, 2
        %s461 = scalar_lea.vmem %s0, %s460
        %v463 = vld [vmem:[%s461] sm:$0x3]
        %v465 = vlaneseq
        %v466 = vshrl.u32 %v465, 7
        %v467 = vsub.s32 0, %v466
        %v468 = vrot.slane %v463, %v467
        %v469 = vlaneseq
        %v470 = vshrl.u32 %v469, 7
        %v471 = vsub.s32 1, %v470
        %v472 = vrot.slane %v463, %v471
        %475 = vrot.lane.b32.xlu0 %v468, 17
        %v476 = vpop.permute.xlu0 %475
        %477 = vrot.lane.b32.xlu0 %v472, 17
        %v478 = vpop.permute.xlu0 %477
        %v479 = vlaneseq
        %v480 = vand.u32 %v479, 127
        %vm481 = vcmp.lt.s32.totalorder %v480, 17
        %v482 = vsel %vm481, %v476, %v478
        %v483 = vsel %vm481, %v478, %v476
        %v484 = vld [vmem:[%s3] sm:$0x3]
        %v486 = vlaneseq
        %v487 = vshrl.u32 %v486, 7
        %v488 = vsub.s32 0, %v487
        %v489 = vrot.slane %v484, %v488
        %v490 = vlaneseq
        %v491 = vshrl.u32 %v490, 7
        %v492 = vsub.s32 1, %v491
        %v493 = vrot.slane %v484, %v492
        %v496 = vmul.f32 %v483, %v489
        %v497 = vmul.f32 %v482, %v493
        %498 = vrot.lane.b32.xlu0 %v468, 16
        %v499 = vpop.permute.xlu0 %498
        %500 = vrot.lane.b32.xlu0 %v472, 16
        %v501 = vpop.permute.xlu0 %500
        %vm502 = vcmp.lt.s32.totalorder %v480, 16
        %v503 = vsel %vm502, %v499, %v501
        %v504 = vsel %vm502, %v501, %v499
        %s505 = scalar_lea.vmem %s3, 2
        %v506 = vld [vmem:[%s505] sm:$0x3]
        %v508 = vlaneseq
        %v509 = vshrl.u32 %v508, 7
        %v510 = vsub.s32 0, %v509
        %v511 = vrot.slane %v506, %v510
        %v512 = vlaneseq
        %v513 = vshrl.u32 %v512, 7
        %v514 = vsub.s32 1, %v513
        %v515 = vrot.slane %v506, %v514
        %v518 = vmul.f32 %v504, %v511
        %v519 = vmul.f32 %v503, %v515
        %520 = vrot.lane.b32.xlu0 %v468, 15
        %v521 = vpop.permute.xlu0 %520
        %522 = vrot.lane.b32.xlu0 %v472, 15
        %v523 = vpop.permute.xlu0 %522
        %vm524 = vcmp.lt.s32.totalorder %v480, 15
        %v525 = vsel %vm524, %v521, %v523
        %v526 = vsel %vm524, %v523, %v521
        %s527 = scalar_lea.vmem %s3, 4
        %v528 = vld [vmem:[%s527] sm:$0x3]
        %v530 = vlaneseq
        %v531 = vshrl.u32 %v530, 7
        %v532 = vsub.s32 0, %v531
        %v533 = vrot.slane %v528, %v532
        %v534 = vlaneseq
        %v535 = vshrl.u32 %v534, 7
        %v536 = vsub.s32 1, %v535
        %v537 = vrot.slane %v528, %v536
        %v540 = vmul.f32 %v526, %v533
        %v541 = vmul.f32 %v525, %v537
        %542 = vrot.lane.b32.xlu0 %v468, 1
        %v543 = vpop.permute.xlu0 %542
        %544 = vrot.lane.b32.xlu0 %v472, 1
        %v545 = vpop.permute.xlu0 %544
        %vm546 = vcmp.lt.s32.totalorder %v480, 1
        %v547 = vsel %vm546, %v543, %v545
        %v548 = vsel %vm546, %v545, %v543
        %s549 = scalar_lea.vmem %s3, 6
        %v550 = vld [vmem:[%s549] sm:$0x3]
        %v552 = vlaneseq
        %v553 = vshrl.u32 %v552, 7
        %v554 = vsub.s32 0, %v553
        %v555 = vrot.slane %v550, %v554
        %v556 = vlaneseq
        %v557 = vshrl.u32 %v556, 7
        %v558 = vsub.s32 1, %v557
        %v559 = vrot.slane %v550, %v558
        %v562 = vmul.f32 %v548, %v555
        %v563 = vmul.f32 %v547, %v559
        %s564 = scalar_lea.vmem %s3, 8
        %v565 = vld [vmem:[%s564] sm:$0x3]
        %v566 = vmul.f32 %v463, %v565
        %567 = vrot.lane.b32.xlu0 %v468, 127
        %v568 = vpop.permute.xlu0 %567
        %569 = vrot.lane.b32.xlu0 %v472, 127
        %v570 = vpop.permute.xlu0 %569
        %vm571 = vcmp.lt.s32.totalorder %v480, 127
        %v572 = vsel %vm571, %v568, %v570
        %v573 = vsel %vm571, %v570, %v568
        %s574 = scalar_lea.vmem %s3, 10
        %v575 = vld [vmem:[%s574] sm:$0x3]
        %v577 = vlaneseq
        %v578 = vshrl.u32 %v577, 7
        %v579 = vsub.s32 0, %v578
        %v580 = vrot.slane %v575, %v579
        %v581 = vlaneseq
        %v582 = vshrl.u32 %v581, 7
        %v583 = vsub.s32 1, %v582
        %v584 = vrot.slane %v575, %v583
        %v587 = vmul.f32 %v572, %v580
        %v588 = vmul.f32 %v573, %v584
        %589 = vrot.lane.b32.xlu0 %v468, 113
        %v590 = vpop.permute.xlu0 %589
        %591 = vrot.lane.b32.xlu0 %v472, 113
        %v592 = vpop.permute.xlu0 %591
        %vm593 = vcmp.lt.s32.totalorder %v480, 113
        %v594 = vsel %vm593, %v590, %v592
        %v595 = vsel %vm593, %v592, %v590
        %s596 = scalar_lea.vmem %s3, 12
        %v597 = vld [vmem:[%s596] sm:$0x3]
        %v599 = vlaneseq
        %v600 = vshrl.u32 %v599, 7
        %v601 = vsub.s32 0, %v600
        %v602 = vrot.slane %v597, %v601
        %v603 = vlaneseq
        %v604 = vshrl.u32 %v603, 7
        %v605 = vsub.s32 1, %v604
        %v606 = vrot.slane %v597, %v605
        %v609 = vmul.f32 %v594, %v602
        %v610 = vmul.f32 %v595, %v606
        %611 = vrot.lane.b32.xlu0 %v468, 112
        %v612 = vpop.permute.xlu0 %611
        %613 = vrot.lane.b32.xlu0 %v472, 112
        %v614 = vpop.permute.xlu0 %613
        %vm615 = vcmp.lt.s32.totalorder %v480, 112
        %v616 = vsel %vm615, %v612, %v614
        %v617 = vsel %vm615, %v614, %v612
        %s618 = scalar_lea.vmem %s3, 14
        %v619 = vld [vmem:[%s618] sm:$0x3]
        %v621 = vlaneseq
        %v622 = vshrl.u32 %v621, 7
        %v623 = vsub.s32 0, %v622
        %v624 = vrot.slane %v619, %v623
        %v625 = vlaneseq
        %v626 = vshrl.u32 %v625, 7
        %v627 = vsub.s32 1, %v626
        %v628 = vrot.slane %v619, %v627
        %v631 = vmul.f32 %v616, %v624
        %v632 = vmul.f32 %v617, %v628
        %633 = vrot.lane.b32.xlu0 %v468, 111
        %v634 = vpop.permute.xlu0 %633
        %635 = vrot.lane.b32.xlu0 %v472, 111
        %v636 = vpop.permute.xlu0 %635
        %vm637 = vcmp.lt.s32.totalorder %v480, 111
        %v638 = vsel %vm637, %v634, %v636
        %v639 = vsel %vm637, %v636, %v634
        %s640 = scalar_lea.vmem %s3, 16
        %v641 = vld [vmem:[%s640] sm:$0x3]
        %v643 = vlaneseq
        %v644 = vshrl.u32 %v643, 7
        %v645 = vsub.s32 0, %v644
        %v646 = vrot.slane %v641, %v645
        %v647 = vlaneseq
        %v648 = vshrl.u32 %v647, 7
        %v649 = vsub.s32 1, %v648
        %v650 = vrot.slane %v641, %v649
        %v653 = vmul.f32 %v638, %v646
        %v654 = vmul.f32 %v639, %v650
        %v655 = vld [vmem:[%s1] sm:$0xff]
        %v656 = vld [vmem:[%s1 + $0x8] sm:$0xff]
        %v657 = vld [vmem:[%s1 + $0x10] sm:$0xff]
        %v658 = vld [vmem:[%s1 + $0x18] sm:$0xff]
        %660 = vset.pattern.permute.xlu0 0
        %661 = vperm.xlu0 %660, %v655
        %v662 = vpop.permute.xlu0 %661
        %665 = vset.pattern.permute.xlu0 0
        %666 = vperm.xlu0 %665, %v656
        %v667 = vpop.permute.xlu0 %666
        %670 = vset.pattern.permute.xlu0 0
        %671 = vperm.xlu0 %670, %v657
        %v672 = vpop.permute.xlu0 %671
        %675 = vset.pattern.permute.xlu0 0
        %676 = vperm.xlu0 %675, %v658
        %v677 = vpop.permute.xlu0 %676
        %v679 = vlaneseq
        %v680 = vshrl.u32 %v679, 7
        %v681 = vsub.s32 0, %v680
        %v682 = vrot.slane %v496, %v681
        %v683 = vlaneseq
        %v684 = vshrl.u32 %v683, 7
        %v685 = vsub.s32 0, %v684
        %v686 = vrot.slane %v497, %v685
        %v687 = vmul.f32 %v662, %v682
        %v688 = vmul.f32 %v662, %v686
        %v689 = vmul.f32 %v667, %v682
        %v690 = vmul.f32 %v667, %v686
        %v691 = vmul.f32 %v672, %v682
        %v692 = vmul.f32 %v672, %v686
        %v693 = vmul.f32 %v677, %v682
        %v694 = vmul.f32 %v677, %v686
        %s695 = scalar_lea.vmem %s1, 32
        %v696 = vld [vmem:[%s695] sm:$0xff]
        %v697 = vld [vmem:[%s695 + $0x8] sm:$0xff]
        %v698 = vld [vmem:[%s695 + $0x10] sm:$0xff]
        %v699 = vld [vmem:[%s695 + $0x18] sm:$0xff]
        %701 = vset.pattern.permute.xlu0 0
        %702 = vperm.xlu0 %701, %v696
        %v703 = vpop.permute.xlu0 %702
        %706 = vset.pattern.permute.xlu0 0
        %707 = vperm.xlu0 %706, %v697
        %v708 = vpop.permute.xlu0 %707
        %711 = vset.pattern.permute.xlu0 0
        %712 = vperm.xlu0 %711, %v698
        %v713 = vpop.permute.xlu0 %712
        %716 = vset.pattern.permute.xlu0 0
        %717 = vperm.xlu0 %716, %v699
        %v718 = vpop.permute.xlu0 %717
        %v720 = vlaneseq
        %v721 = vshrl.u32 %v720, 7
        %v722 = vsub.s32 0, %v721
        %v723 = vrot.slane %v518, %v722
        %v724 = vlaneseq
        %v725 = vshrl.u32 %v724, 7
        %v726 = vsub.s32 0, %v725
        %v727 = vrot.slane %v519, %v726
        %v728 = vmul.f32 %v703, %v723
        %v729 = vmul.f32 %v703, %v727
        %v730 = vmul.f32 %v708, %v723
        %v731 = vmul.f32 %v708, %v727
        %v732 = vmul.f32 %v713, %v723
        %v733 = vmul.f32 %v713, %v727
        %v734 = vmul.f32 %v718, %v723
        %v735 = vmul.f32 %v718, %v727
        %v736 = vadd.f32 %v687, %v728
        %v737 = vadd.f32 %v688, %v729
        %v738 = vadd.f32 %v689, %v730
        %v739 = vadd.f32 %v690, %v731
        %v740 = vadd.f32 %v691, %v732
        %v741 = vadd.f32 %v692, %v733
        %v742 = vadd.f32 %v693, %v734
        %v743 = vadd.f32 %v694, %v735
        %s744 = scalar_lea.vmem %s1, 64
        %v745 = vld [vmem:[%s744] sm:$0xff]
        %v746 = vld [vmem:[%s744 + $0x8] sm:$0xff]
        %v747 = vld [vmem:[%s744 + $0x10] sm:$0xff]
        %v748 = vld [vmem:[%s744 + $0x18] sm:$0xff]
        %750 = vset.pattern.permute.xlu0 0
        %751 = vperm.xlu0 %750, %v745
        %v752 = vpop.permute.xlu0 %751
        %755 = vset.pattern.permute.xlu0 0
        %756 = vperm.xlu0 %755, %v746
        %v757 = vpop.permute.xlu0 %756
        %760 = vset.pattern.permute.xlu0 0
        %761 = vperm.xlu0 %760, %v747
        %v762 = vpop.permute.xlu0 %761
        %765 = vset.pattern.permute.xlu0 0
        %766 = vperm.xlu0 %765, %v748
        %v767 = vpop.permute.xlu0 %766
        %v769 = vlaneseq
        %v770 = vshrl.u32 %v769, 7
        %v771 = vsub.s32 0, %v770
        %v772 = vrot.slane %v540, %v771
        %v773 = vlaneseq
        %v774 = vshrl.u32 %v773, 7
        %v775 = vsub.s32 0, %v774
        %v776 = vrot.slane %v541, %v775
        %v777 = vmul.f32 %v752, %v772
        %v778 = vmul.f32 %v752, %v776
        %v779 = vmul.f32 %v757, %v772
        %v780 = vmul.f32 %v757, %v776
        %v781 = vmul.f32 %v762, %v772
        %v782 = vmul.f32 %v762, %v776
        %v783 = vmul.f32 %v767, %v772
        %v784 = vmul.f32 %v767, %v776
        %v785 = vadd.f32 %v736, %v777
        %v786 = vadd.f32 %v737, %v778
        %v787 = vadd.f32 %v738, %v779
        %v788 = vadd.f32 %v739, %v780
        %v789 = vadd.f32 %v740, %v781
        %v790 = vadd.f32 %v741, %v782
        %v791 = vadd.f32 %v742, %v783
        %v792 = vadd.f32 %v743, %v784
        %s793 = scalar_lea.vmem %s1, 96
        %v794 = vld [vmem:[%s793] sm:$0xff]
        %v795 = vld [vmem:[%s793 + $0x8] sm:$0xff]
        %v796 = vld [vmem:[%s793 + $0x10] sm:$0xff]
        %v797 = vld [vmem:[%s793 + $0x18] sm:$0xff]
        %799 = vset.pattern.permute.xlu0 0
        %800 = vperm.xlu0 %799, %v794
        %v801 = vpop.permute.xlu0 %800
        %804 = vset.pattern.permute.xlu0 0
        %805 = vperm.xlu0 %804, %v795
        %v806 = vpop.permute.xlu0 %805
        %809 = vset.pattern.permute.xlu0 0
        %810 = vperm.xlu0 %809, %v796
        %v811 = vpop.permute.xlu0 %810
        %814 = vset.pattern.permute.xlu0 0
        %815 = vperm.xlu0 %814, %v797
        %v816 = vpop.permute.xlu0 %815
        %v818 = vlaneseq
        %v819 = vshrl.u32 %v818, 7
        %v820 = vsub.s32 0, %v819
        %v821 = vrot.slane %v562, %v820
        %v822 = vlaneseq
        %v823 = vshrl.u32 %v822, 7
        %v824 = vsub.s32 0, %v823
        %v825 = vrot.slane %v563, %v824
        %v826 = vmul.f32 %v801, %v821
        %v827 = vmul.f32 %v801, %v825
        %v828 = vmul.f32 %v806, %v821
        %v829 = vmul.f32 %v806, %v825
        %v830 = vmul.f32 %v811, %v821
        %v831 = vmul.f32 %v811, %v825
        %v832 = vmul.f32 %v816, %v821
        %v833 = vmul.f32 %v816, %v825
        %v834 = vadd.f32 %v785, %v826
        %v835 = vadd.f32 %v786, %v827
        %v836 = vadd.f32 %v787, %v828
        %v837 = vadd.f32 %v788, %v829
        %v838 = vadd.f32 %v789, %v830
        %v839 = vadd.f32 %v790, %v831
        %v840 = vadd.f32 %v791, %v832
        %v841 = vadd.f32 %v792, %v833
        %s842 = scalar_lea.vmem %s1, 128
        %v843 = vld [vmem:[%s842] sm:$0xff]
        %v844 = vld [vmem:[%s842 + $0x8] sm:$0xff]
        %v845 = vld [vmem:[%s842 + $0x10] sm:$0xff]
        %v846 = vld [vmem:[%s842 + $0x18] sm:$0xff]
        %848 = vset.pattern.permute.xlu0 0
        %849 = vperm.xlu0 %848, %v843
        %v850 = vpop.permute.xlu0 %849
        %853 = vset.pattern.permute.xlu0 0
        %854 = vperm.xlu0 %853, %v844
        %v855 = vpop.permute.xlu0 %854
        %858 = vset.pattern.permute.xlu0 0
        %859 = vperm.xlu0 %858, %v845
        %v860 = vpop.permute.xlu0 %859
        %863 = vset.pattern.permute.xlu0 0
        %864 = vperm.xlu0 %863, %v846
        %v865 = vpop.permute.xlu0 %864
        %v868 = vlaneseq
        %v869 = vshrl.u32 %v868, 7
        %v870 = vsub.s32 0, %v869
        %v871 = vrot.slane %v566, %v870
        %v872 = vlaneseq
        %v873 = vshrl.u32 %v872, 7
        %v874 = vsub.s32 1, %v873
        %v875 = vrot.slane %v566, %v874
        %v878 = vmul.f32 %v850, %v871
        %v879 = vmul.f32 %v850, %v875
        %v880 = vmul.f32 %v855, %v871
        %v881 = vmul.f32 %v855, %v875
        %v882 = vmul.f32 %v860, %v871
        %v883 = vmul.f32 %v860, %v875
        %v884 = vmul.f32 %v865, %v871
        %v885 = vmul.f32 %v865, %v875
        %v886 = vadd.f32 %v834, %v878
        %v887 = vadd.f32 %v835, %v879
        %v888 = vadd.f32 %v836, %v880
        %v889 = vadd.f32 %v837, %v881
        %v890 = vadd.f32 %v838, %v882
        %v891 = vadd.f32 %v839, %v883
        %v892 = vadd.f32 %v840, %v884
        %v893 = vadd.f32 %v841, %v885
        %s894 = scalar_lea.vmem %s1, 160
        %v895 = vld [vmem:[%s894] sm:$0xff]
        %v896 = vld [vmem:[%s894 + $0x8] sm:$0xff]
        %v897 = vld [vmem:[%s894 + $0x10] sm:$0xff]
        %v898 = vld [vmem:[%s894 + $0x18] sm:$0xff]
        %900 = vset.pattern.permute.xlu0 0
        %901 = vperm.xlu0 %900, %v895
        %v902 = vpop.permute.xlu0 %901
        %905 = vset.pattern.permute.xlu0 0
        %906 = vperm.xlu0 %905, %v896
        %v907 = vpop.permute.xlu0 %906
        %910 = vset.pattern.permute.xlu0 0
        %911 = vperm.xlu0 %910, %v897
        %v912 = vpop.permute.xlu0 %911
        %915 = vset.pattern.permute.xlu0 0
        %916 = vperm.xlu0 %915, %v898
        %v917 = vpop.permute.xlu0 %916
        %v919 = vlaneseq
        %v920 = vshrl.u32 %v919, 7
        %v921 = vsub.s32 0, %v920
        %v922 = vrot.slane %v587, %v921
        %v923 = vlaneseq
        %v924 = vshrl.u32 %v923, 7
        %v925 = vsub.s32 0, %v924
        %v926 = vrot.slane %v588, %v925
        %v927 = vmul.f32 %v902, %v922
        %v928 = vmul.f32 %v902, %v926
        %v929 = vmul.f32 %v907, %v922
        %v930 = vmul.f32 %v907, %v926
        %v931 = vmul.f32 %v912, %v922
        %v932 = vmul.f32 %v912, %v926
        %v933 = vmul.f32 %v917, %v922
        %v934 = vmul.f32 %v917, %v926
        %v935 = vadd.f32 %v886, %v927
        %v936 = vadd.f32 %v887, %v928
        %v937 = vadd.f32 %v888, %v929
        %v938 = vadd.f32 %v889, %v930
        %v939 = vadd.f32 %v890, %v931
        %v940 = vadd.f32 %v891, %v932
        %v941 = vadd.f32 %v892, %v933
        %v942 = vadd.f32 %v893, %v934
        %s943 = scalar_lea.vmem %s1, 192
        %v944 = vld [vmem:[%s943] sm:$0xff]
        %v945 = vld [vmem:[%s943 + $0x8] sm:$0xff]
        %v946 = vld [vmem:[%s943 + $0x10] sm:$0xff]
        %v947 = vld [vmem:[%s943 + $0x18] sm:$0xff]
        %949 = vset.pattern.permute.xlu0 0
        %950 = vperm.xlu0 %949, %v944
        %v951 = vpop.permute.xlu0 %950
        %954 = vset.pattern.permute.xlu0 0
        %955 = vperm.xlu0 %954, %v945
        %v956 = vpop.permute.xlu0 %955
        %959 = vset.pattern.permute.xlu0 0
        %960 = vperm.xlu0 %959, %v946
        %v961 = vpop.permute.xlu0 %960
        %964 = vset.pattern.permute.xlu0 0
        %965 = vperm.xlu0 %964, %v947
        %v966 = vpop.permute.xlu0 %965
        %v968 = vlaneseq
        %v969 = vshrl.u32 %v968, 7
        %v970 = vsub.s32 0, %v969
        %v971 = vrot.slane %v609, %v970
        %v972 = vlaneseq
        %v973 = vshrl.u32 %v972, 7
        %v974 = vsub.s32 0, %v973
        %v975 = vrot.slane %v610, %v974
        %v976 = vmul.f32 %v951, %v971
        %v977 = vmul.f32 %v951, %v975
        %v978 = vmul.f32 %v956, %v971
        %v979 = vmul.f32 %v956, %v975
        %v980 = vmul.f32 %v961, %v971
        %v981 = vmul.f32 %v961, %v975
        %v982 = vmul.f32 %v966, %v971
        %v983 = vmul.f32 %v966, %v975
        %v984 = vadd.f32 %v935, %v976
        %v985 = vadd.f32 %v936, %v977
        %v986 = vadd.f32 %v937, %v978
        %v987 = vadd.f32 %v938, %v979
        %v988 = vadd.f32 %v939, %v980
        %v989 = vadd.f32 %v940, %v981
        %v990 = vadd.f32 %v941, %v982
        %v991 = vadd.f32 %v942, %v983
        %s992 = scalar_lea.vmem %s1, 224
        %v993 = vld [vmem:[%s992] sm:$0xff]
        %v994 = vld [vmem:[%s992 + $0x8] sm:$0xff]
        %v995 = vld [vmem:[%s992 + $0x10] sm:$0xff]
        %v996 = vld [vmem:[%s992 + $0x18] sm:$0xff]
        %998 = vset.pattern.permute.xlu0 0
        %999 = vperm.xlu0 %998, %v993
        %v1000 = vpop.permute.xlu0 %999
        %1003 = vset.pattern.permute.xlu0 0
        %1004 = vperm.xlu0 %1003, %v994
        %v1005 = vpop.permute.xlu0 %1004
        %1008 = vset.pattern.permute.xlu0 0
        %1009 = vperm.xlu0 %1008, %v995
        %v1010 = vpop.permute.xlu0 %1009
        %1013 = vset.pattern.permute.xlu0 0
        %1014 = vperm.xlu0 %1013, %v996
        %v1015 = vpop.permute.xlu0 %1014
        %v1017 = vlaneseq
        %v1018 = vshrl.u32 %v1017, 7
        %v1019 = vsub.s32 0, %v1018
        %v1020 = vrot.slane %v631, %v1019
        %v1021 = vlaneseq
        %v1022 = vshrl.u32 %v1021, 7
        %v1023 = vsub.s32 0, %v1022
        %v1024 = vrot.slane %v632, %v1023
        %v1025 = vmul.f32 %v1000, %v1020
        %v1026 = vmul.f32 %v1000, %v1024
        %v1027 = vmul.f32 %v1005, %v1020
        %v1028 = vmul.f32 %v1005, %v1024
        %v1029 = vmul.f32 %v1010, %v1020
        %v1030 = vmul.f32 %v1010, %v1024
        %v1031 = vmul.f32 %v1015, %v1020
        %v1032 = vmul.f32 %v1015, %v1024
        %v1033 = vadd.f32 %v984, %v1025
        %v1034 = vadd.f32 %v985, %v1026
        %v1035 = vadd.f32 %v986, %v1027
        %v1036 = vadd.f32 %v987, %v1028
        %v1037 = vadd.f32 %v988, %v1029
        %v1038 = vadd.f32 %v989, %v1030
        %v1039 = vadd.f32 %v990, %v1031
        %v1040 = vadd.f32 %v991, %v1032
        %s1041 = scalar_lea.vmem %s1, 256
        %v1042 = vld [vmem:[%s1041] sm:$0xff]
        %v1043 = vld [vmem:[%s1041 + $0x8] sm:$0xff]
        %v1044 = vld [vmem:[%s1041 + $0x10] sm:$0xff]
        %v1045 = vld [vmem:[%s1041 + $0x18] sm:$0xff]
        %1047 = vset.pattern.permute.xlu0 0
        %1048 = vperm.xlu0 %1047, %v1042
        %v1049 = vpop.permute.xlu0 %1048
        %1052 = vset.pattern.permute.xlu0 0
        %1053 = vperm.xlu0 %1052, %v1043
        %v1054 = vpop.permute.xlu0 %1053
        %1057 = vset.pattern.permute.xlu0 0
        %1058 = vperm.xlu0 %1057, %v1044
        %v1059 = vpop.permute.xlu0 %1058
        %1062 = vset.pattern.permute.xlu0 0
        %1063 = vperm.xlu0 %1062, %v1045
        %v1064 = vpop.permute.xlu0 %1063
        %v1066 = vlaneseq
        %v1067 = vshrl.u32 %v1066, 7
        %v1068 = vsub.s32 0, %v1067
        %v1069 = vrot.slane %v653, %v1068
        %v1070 = vlaneseq
        %v1071 = vshrl.u32 %v1070, 7
        %v1072 = vsub.s32 0, %v1071
        %v1073 = vrot.slane %v654, %v1072
        %v1074 = vmul.f32 %v1049, %v1069
        %v1075 = vmul.f32 %v1049, %v1073
        %v1076 = vmul.f32 %v1054, %v1069
        %v1077 = vmul.f32 %v1054, %v1073
        %v1078 = vmul.f32 %v1059, %v1069
        %v1079 = vmul.f32 %v1059, %v1073
        %v1080 = vmul.f32 %v1064, %v1069
        %v1081 = vmul.f32 %v1064, %v1073
        %v1082 = vadd.f32 %v1033, %v1074
        %v1083 = vadd.f32 %v1034, %v1075
        %v1084 = vadd.f32 %v1035, %v1076
        %v1085 = vadd.f32 %v1036, %v1077
        %v1086 = vadd.f32 %v1037, %v1078
        %v1087 = vadd.f32 %v1038, %v1079
        %v1088 = vadd.f32 %v1039, %v1080
        %v1089 = vadd.f32 %v1040, %v1081
        %v1090 = vld [vmem:[%s2] sm:$0xff]
        %v1091 = vld [vmem:[%s2 + $0x8] sm:$0xff]
        %v1092 = vld [vmem:[%s2 + $0x10] sm:$0xff]
        %v1093 = vld [vmem:[%s2 + $0x18] sm:$0xff]
        %1095 = vset.pattern.permute.xlu0 0
        %1096 = vperm.xlu0 %1095, %v1090
        %v1097 = vpop.permute.xlu0 %1096
        %1100 = vset.pattern.permute.xlu0 0
        %1101 = vperm.xlu0 %1100, %v1091
        %v1102 = vpop.permute.xlu0 %1101
        %1105 = vset.pattern.permute.xlu0 0
        %1106 = vperm.xlu0 %1105, %v1092
        %v1107 = vpop.permute.xlu0 %1106
        %1110 = vset.pattern.permute.xlu0 0
        %1111 = vperm.xlu0 %1110, %v1093
        %v1112 = vpop.permute.xlu0 %1111
        %v1114 = vadd.f32 %v1082, %v1097
        %v1115 = vadd.f32 %v1083, %v1097
        %v1116 = vadd.f32 %v1084, %v1102
        %v1117 = vadd.f32 %v1085, %v1102
        %v1118 = vadd.f32 %v1086, %v1107
        %v1119 = vadd.f32 %v1087, %v1107
        %v1120 = vadd.f32 %v1088, %v1112
        %v1121 = vadd.f32 %v1089, %v1112
        %v1122 = vmax.f32 %v1114, 0.0
        %v1123 = vmax.f32 %v1115, 0.0
        %v1124 = vmax.f32 %v1116, 0.0
        %v1125 = vmax.f32 %v1117, 0.0
        %v1126 = vmax.f32 %v1118, 0.0
        %v1127 = vmax.f32 %v1119, 0.0
        %v1128 = vmax.f32 %v1120, 0.0
        %v1129 = vmax.f32 %v1121, 0.0
        %1130 = vrot.lane.b32.xlu0 %v1122, 127
        %v1131 = vpop.permute.xlu0 %1130
        %1132 = vrot.lane.b32.xlu0 %v1124, 127
        %v1133 = vpop.permute.xlu0 %1132
        %1134 = vrot.lane.b32.xlu0 %v1126, 127
        %v1135 = vpop.permute.xlu0 %1134
        %1136 = vrot.lane.b32.xlu0 %v1128, 127
        %v1137 = vpop.permute.xlu0 %1136
        %1138 = vrot.lane.b32.xlu0 %v1123, 127
        %v1139 = vpop.permute.xlu0 %1138
        %1140 = vrot.lane.b32.xlu0 %v1125, 127
        %v1141 = vpop.permute.xlu0 %1140
        %1142 = vrot.lane.b32.xlu0 %v1127, 127
        %v1143 = vpop.permute.xlu0 %1142
        %1144 = vrot.lane.b32.xlu0 %v1129, 127
        %v1145 = vpop.permute.xlu0 %1144
        %v1146 = vsel %vm571, %v1131, %v1139
        %v1147 = vsel %vm571, %v1133, %v1141
        %v1148 = vsel %vm571, %v1135, %v1143
        %v1149 = vsel %vm571, %v1137, %v1145
        %v1150 = vsel %vm571, %v1139, %v1131
        %v1151 = vsel %vm571, %v1141, %v1133
        %v1152 = vsel %vm571, %v1143, %v1135
        %v1153 = vsel %vm571, %v1145, %v1137
        %v1154 = vmax.f32 %v1122, %v1146
        %v1155 = vmax.f32 %v1123, %v1150
        %v1156 = vmax.f32 %v1124, %v1147
        %v1157 = vmax.f32 %v1125, %v1151
        %v1158 = vmax.f32 %v1126, %v1148
        %v1159 = vmax.f32 %v1127, %v1152
        %v1160 = vmax.f32 %v1128, %v1149
        %v1161 = vmax.f32 %v1129, %v1153
        %1162 = vrot.lane.b32.xlu0 %v1154, 112
        %v1163 = vpop.permute.xlu0 %1162
        %1164 = vrot.lane.b32.xlu0 %v1156, 112
        %v1165 = vpop.permute.xlu0 %1164
        %1166 = vrot.lane.b32.xlu0 %v1158, 112
        %v1167 = vpop.permute.xlu0 %1166
        %1168 = vrot.lane.b32.xlu0 %v1160, 112
        %v1169 = vpop.permute.xlu0 %1168
        %1170 = vrot.lane.b32.xlu0 %v1155, 112
        %v1171 = vpop.permute.xlu0 %1170
        %1172 = vrot.lane.b32.xlu0 %v1157, 112
        %v1173 = vpop.permute.xlu0 %1172
        %1174 = vrot.lane.b32.xlu0 %v1159, 112
        %v1175 = vpop.permute.xlu0 %1174
        %1176 = vrot.lane.b32.xlu0 %v1161, 112
        %v1177 = vpop.permute.xlu0 %1176
        %v1178 = vsel %vm615, %v1163, %v1171
        %v1179 = vsel %vm615, %v1165, %v1173
        %v1180 = vsel %vm615, %v1167, %v1175
        %v1181 = vsel %vm615, %v1169, %v1177
        %v1182 = vsel %vm615, %v1171, %v1163
        %v1183 = vsel %vm615, %v1173, %v1165
        %v1184 = vsel %vm615, %v1175, %v1167
        %v1185 = vsel %vm615, %v1177, %v1169
        %v1186 = vmax.f32 %v1154, %v1178
        %v1187 = vmax.f32 %v1155, %v1182
        %v1188 = vmax.f32 %v1156, %v1179
        %v1189 = vmax.f32 %v1157, %v1183
        %v1190 = vmax.f32 %v1158, %v1180
        %v1191 = vmax.f32 %v1159, %v1184
        %v1192 = vmax.f32 %v1160, %v1181
        %v1193 = vmax.f32 %v1161, %v1185
        %v1194 = vpack.c.bf16 %v1188, %v1186
        %v1195 = vpack.c.bf16 %v1189, %v1187
        %v1196 = vpack.c.bf16 %v1192, %v1190
        %v1197 = vpack.c.bf16 %v1193, %v1191
        %v1198 = vld [vmem:[%s4] sm:$0xf]
        %v1199 = vld [vmem:[%s4 + $0x4] sm:$0xf]
        %v1200 = vld [vmem:[%s4 + $0x8] sm:$0xf]
        %v1201 = vld [vmem:[%s4 + $0xc] sm:$0xf]
        %v1202 = vld [vmem:[%s4 + $0x10] sm:$0xf]
        %v1203 = vld [vmem:[%s4 + $0x14] sm:$0xf]
        %v1204 = vld [vmem:[%s4 + $0x18] sm:$0xf]
        %v1205 = vld [vmem:[%s4 + $0x1c] sm:$0xf]
        %v1206 = vld [vmem:[%s4 + $0x20] sm:$0xf]
        %v1207 = vld [vmem:[%s4 + $0x24] sm:$0xf]
        %v1208 = vld [vmem:[%s4 + $0x28] sm:$0xf]
        %v1209 = vld [vmem:[%s4 + $0x2c] sm:$0xf]
        %v1210 = vld [vmem:[%s4 + $0x30] sm:$0xf]
        %v1211 = vld [vmem:[%s4 + $0x34] sm:$0xf]
        %v1212 = vld [vmem:[%s4 + $0x38] sm:$0xf]
        %v1213 = vld [vmem:[%s4 + $0x3c] sm:$0xf]
        %v1214 = vld [vmem:[%s4 + $0x40] sm:$0xf]
        %v1215 = vld [vmem:[%s4 + $0x44] sm:$0xf]
        %v1216 = vld [vmem:[%s4 + $0x48] sm:$0xf]
        %v1217 = vld [vmem:[%s4 + $0x4c] sm:$0xf]
        %v1218 = vld [vmem:[%s4 + $0x50] sm:$0xf]
        %v1219 = vld [vmem:[%s4 + $0x54] sm:$0xf]
        %v1220 = vld [vmem:[%s4 + $0x58] sm:$0xf]
        %v1221 = vld [vmem:[%s4 + $0x5c] sm:$0xf]
        %v1222 = vld [vmem:[%s4 + $0x60] sm:$0xf]
        %v1223 = vld [vmem:[%s4 + $0x64] sm:$0xf]
        %v1224 = vld [vmem:[%s4 + $0x68] sm:$0xf]
        %v1225 = vld [vmem:[%s4 + $0x6c] sm:$0xf]
        %v1226 = vld [vmem:[%s4 + $0x70] sm:$0xf]
        %v1227 = vld [vmem:[%s4 + $0x74] sm:$0xf]
        %v1228 = vld [vmem:[%s4 + $0x78] sm:$0xf]
        %v1229 = vld [vmem:[%s4 + $0x7c] sm:$0xf]
        %v1262 = vunpack.c.l.b16 %v1198
        %v1263 = vunpack.c.l.b16 %v1199
        %v1264 = vunpack.c.l.b16 %v1200
        %v1265 = vunpack.c.l.b16 %v1201
        %v1266 = vunpack.c.l.b16 %v1202
        %v1267 = vunpack.c.l.b16 %v1203
        %v1268 = vunpack.c.l.b16 %v1204
        %v1269 = vunpack.c.l.b16 %v1205
        %v1270 = vunpack.c.l.b16 %v1206
        %v1271 = vunpack.c.l.b16 %v1207
        %v1272 = vunpack.c.l.b16 %v1208
        %v1273 = vunpack.c.l.b16 %v1209
        %v1274 = vunpack.c.l.b16 %v1210
        %v1275 = vunpack.c.l.b16 %v1211
        %v1276 = vunpack.c.l.b16 %v1212
        %v1277 = vunpack.c.l.b16 %v1213
        %v1278 = vunpack.c.l.b16 %v1214
        %v1279 = vunpack.c.l.b16 %v1215
        %v1280 = vunpack.c.l.b16 %v1216
        %v1281 = vunpack.c.l.b16 %v1217
        %v1282 = vunpack.c.l.b16 %v1218
        %v1283 = vunpack.c.l.b16 %v1219
        %v1284 = vunpack.c.l.b16 %v1220
        %v1285 = vunpack.c.l.b16 %v1221
        %v1286 = vunpack.c.l.b16 %v1222
        %v1287 = vunpack.c.l.b16 %v1223
        %v1288 = vunpack.c.l.b16 %v1224
        %v1289 = vunpack.c.l.b16 %v1225
        %v1290 = vunpack.c.l.b16 %v1226
        %v1291 = vunpack.c.l.b16 %v1227
        %v1292 = vunpack.c.l.b16 %v1228
        %v1293 = vunpack.c.l.b16 %v1229
        %v1294 = vpack.c.b16 %v1263, %v1262
        %v1295 = vpack.c.b16 %v1265, %v1264
        %v1296 = vpack.c.b16 %v1267, %v1266
        %v1297 = vpack.c.b16 %v1269, %v1268
        %v1298 = vpack.c.b16 %v1271, %v1270
        %v1299 = vpack.c.b16 %v1273, %v1272
        %v1300 = vpack.c.b16 %v1275, %v1274
        %v1301 = vpack.c.b16 %v1277, %v1276
        %v1302 = vpack.c.b16 %v1279, %v1278
        %v1303 = vpack.c.b16 %v1281, %v1280
        %v1304 = vpack.c.b16 %v1283, %v1282
        %v1305 = vpack.c.b16 %v1285, %v1284
        %v1306 = vpack.c.b16 %v1287, %v1286
        %v1307 = vpack.c.b16 %v1289, %v1288
        %v1308 = vpack.c.b16 %v1291, %v1290
        %v1309 = vpack.c.b16 %v1293, %v1292
        %1326 = vmatprep.subr.bf16.mxu0 0
        %1327 = vmatpush1.bf16.msra.mxu0 %v1301
        %1328 = vmatprep.subr.bf16.mxu0 0
        %1329 = vmatpush1.bf16.msra.mxu0 %v1300
        %1330 = vmatprep.subr.bf16.mxu0 0
        %1331 = vmatpush1.bf16.msra.mxu0 %v1299
        %1332 = vmatprep.subr.bf16.mxu0 0
        %1333 = vmatpush1.bf16.msra.mxu0 %v1298
        %1334 = vmatprep.subr.bf16.mxu0 0
        %1335 = vmatpush1.bf16.msra.mxu0 %v1297
        %1336 = vmatprep.subr.bf16.mxu0 0
        %1337 = vmatpush1.bf16.msra.mxu0 %v1296
        %1338 = vmatprep.subr.bf16.mxu0 0
        %1339 = vmatpush1.bf16.msra.mxu0 %v1295
        %1340 = vmatprep.subr.bf16.mxu0 0
        %1341 = vmatpush1.bf16.msra.mxu0 %v1294
        %1342 = vmatprep.subr.bf16.mxu0 0
        %1343 = vmatpush2.bf16.msra.mxu0 %v1309
        %1344 = vmatprep.subr.bf16.mxu0 0
        %1345 = vmatpush2.bf16.msra.mxu0 %v1308
        %1346 = vmatprep.subr.bf16.mxu0 0
        %1347 = vmatpush2.bf16.msra.mxu0 %v1307
        %1348 = vmatprep.subr.bf16.mxu0 0
        %1349 = vmatpush2.bf16.msra.mxu0 %v1306
        %1350 = vmatprep.subr.bf16.mxu0 0
        %1351 = vmatpush2.bf16.msra.mxu0 %v1305
        %1352 = vmatprep.subr.bf16.mxu0 0
        %1353 = vmatpush2.bf16.msra.mxu0 %v1304
        %1354 = vmatprep.subr.bf16.mxu0 0
        %1355 = vmatpush2.bf16.msra.mxu0 %v1303
        %1356 = vmatprep.subr.bf16.mxu0 0
        %1357 = vmatpush2.bf16.msra.mxu0 %v1302
        %1358 = vmatprep.mubr.bf16.mxu0 %v1195
        %1359 = vmatmul.mubr.bf16.gmra.mxu0 %v1194
        %v1360 = vpop.f32.mrf.mxu0
        %v1361 = vadd.f32 0.0, %v1360
        %v1362 = vpop.f32.mrf.mxu0
        %v1363 = vpop.f32.mrf.mxu0
        %v1364 = vadd.f32 0.0, %v1363
        %v1365 = vpop.f32.mrf.mxu0
        %1366 = vmatprep.mubr.bf16.mxu0 %v1197
        %1367 = vmatmul.mubr.bf16.gmra.mxu0 %v1196
        %v1368 = vpop.f32.mrf.mxu0
        %v1369 = vadd.f32 0.0, %v1368
        %v1370 = vpop.f32.mrf.mxu0
        %v1371 = vpop.f32.mrf.mxu0
        %v1372 = vadd.f32 0.0, %v1371
        %v1373 = vpop.f32.mrf.mxu0
        %1374 = vdwg.mxu0
        %1375 = vrot.lane.b32.xlu0 %v1361, 9
        %v1376 = vpop.permute.xlu0 %1375
        %1377 = vrot.lane.b32.xlu0 %v1364, 9
        %v1378 = vpop.permute.xlu0 %1377
        %1379 = vrot.lane.b32.xlu0 %v1369, 9
        %v1380 = vpop.permute.xlu0 %1379
        %1381 = vrot.lane.b32.xlu0 %v1372, 9
        %v1382 = vpop.permute.xlu0 %1381
        %v1383 = vld [vmem:[%s7] sm:$0x1]
        %v1385 = vlaneseq
        %v1386 = vshrl.u32 %v1385, 7
        %v1387 = vsub.s32 0, %v1386
        %v1388 = vrot.slane %v1383, %v1387
        %v1390 = vmul.f32 %v1376, %v1388
        %v1391 = vmul.f32 %v1378, %v1388
        %v1392 = vmul.f32 %v1380, %v1388
        %v1393 = vmul.f32 %v1382, %v1388
        %1394 = vrot.lane.b32.xlu0 %v1361, 8
        %v1395 = vpop.permute.xlu0 %1394
        %1396 = vrot.lane.b32.xlu0 %v1364, 8
        %v1397 = vpop.permute.xlu0 %1396
        %1398 = vrot.lane.b32.xlu0 %v1369, 8
        %v1399 = vpop.permute.xlu0 %1398
        %1400 = vrot.lane.b32.xlu0 %v1372, 8
        %v1401 = vpop.permute.xlu0 %1400
        %s1402 = scalar_lea.vmem %s7, 1
        %v1403 = vld [vmem:[%s1402] sm:$0x1]
        %v1405 = vlaneseq
        %v1406 = vshrl.u32 %v1405, 7
        %v1407 = vsub.s32 0, %v1406
        %v1408 = vrot.slane %v1403, %v1407
        %v1410 = vmul.f32 %v1395, %v1408
        %v1411 = vmul.f32 %v1397, %v1408
        %v1412 = vmul.f32 %v1399, %v1408
        %v1413 = vmul.f32 %v1401, %v1408
        %1414 = vrot.lane.b32.xlu0 %v1361, 7
        %v1415 = vpop.permute.xlu0 %1414
        %1416 = vrot.lane.b32.xlu0 %v1364, 7
        %v1417 = vpop.permute.xlu0 %1416
        %1418 = vrot.lane.b32.xlu0 %v1369, 7
        %v1419 = vpop.permute.xlu0 %1418
        %1420 = vrot.lane.b32.xlu0 %v1372, 7
        %v1421 = vpop.permute.xlu0 %1420
        %s1422 = scalar_lea.vmem %s7, 2
        %v1423 = vld [vmem:[%s1422] sm:$0x1]
        %v1425 = vlaneseq
        %v1426 = vshrl.u32 %v1425, 7
        %v1427 = vsub.s32 0, %v1426
        %v1428 = vrot.slane %v1423, %v1427
        %v1430 = vmul.f32 %v1415, %v1428
        %v1431 = vmul.f32 %v1417, %v1428
        %v1432 = vmul.f32 %v1419, %v1428
        %v1433 = vmul.f32 %v1421, %v1428
        %1434 = vrot.lane.b32.xlu0 %v1361, 1
        %v1435 = vpop.permute.xlu0 %1434
        %1436 = vrot.lane.b32.xlu0 %v1364, 1
        %v1437 = vpop.permute.xlu0 %1436
        %1438 = vrot.lane.b32.xlu0 %v1369, 1
        %v1439 = vpop.permute.xlu0 %1438
        %1440 = vrot.lane.b32.xlu0 %v1372, 1
        %v1441 = vpop.permute.xlu0 %1440
        %s1442 = scalar_lea.vmem %s7, 3
        %v1443 = vld [vmem:[%s1442] sm:$0x1]
        %v1445 = vlaneseq
        %v1446 = vshrl.u32 %v1445, 7
        %v1447 = vsub.s32 0, %v1446
        %v1448 = vrot.slane %v1443, %v1447
        %v1450 = vmul.f32 %v1435, %v1448
        %v1451 = vmul.f32 %v1437, %v1448
        %v1452 = vmul.f32 %v1439, %v1448
        %v1453 = vmul.f32 %v1441, %v1448
        %s1454 = scalar_lea.vmem %s7, 4
        %v1455 = vld [vmem:[%s1454] sm:$0x1]
        %v1457 = vlaneseq
        %v1458 = vshrl.u32 %v1457, 7
        %v1459 = vsub.s32 0, %v1458
        %v1460 = vrot.slane %v1455, %v1459
        %v1462 = vmul.f32 %v1361, %v1460
        %v1463 = vmul.f32 %v1364, %v1460
        %v1464 = vmul.f32 %v1369, %v1460
        %v1465 = vmul.f32 %v1372, %v1460
        %1466 = vrot.lane.b32.xlu0 %v1361, 127
        %v1467 = vpop.permute.xlu0 %1466
        %1468 = vrot.lane.b32.xlu0 %v1364, 127
        %v1469 = vpop.permute.xlu0 %1468
        %1470 = vrot.lane.b32.xlu0 %v1369, 127
        %v1471 = vpop.permute.xlu0 %1470
        %1472 = vrot.lane.b32.xlu0 %v1372, 127
        %v1473 = vpop.permute.xlu0 %1472
        %s1474 = scalar_lea.vmem %s7, 5
        %v1475 = vld [vmem:[%s1474] sm:$0x1]
        %v1477 = vlaneseq
        %v1478 = vshrl.u32 %v1477, 7
        %v1479 = vsub.s32 0, %v1478
        %v1480 = vrot.slane %v1475, %v1479
        %v1482 = vmul.f32 %v1467, %v1480
        %v1483 = vmul.f32 %v1469, %v1480
        %v1484 = vmul.f32 %v1471, %v1480
        %v1485 = vmul.f32 %v1473, %v1480
        %1486 = vrot.lane.b32.xlu0 %v1361, 121
        %v1487 = vpop.permute.xlu0 %1486
        %1488 = vrot.lane.b32.xlu0 %v1364, 121
        %v1489 = vpop.permute.xlu0 %1488
        %1490 = vrot.lane.b32.xlu0 %v1369, 121
        %v1491 = vpop.permute.xlu0 %1490
        %1492 = vrot.lane.b32.xlu0 %v1372, 121
        %v1493 = vpop.permute.xlu0 %1492
        %s1494 = scalar_lea.vmem %s7, 6
        %v1495 = vld [vmem:[%s1494] sm:$0x1]
        %v1497 = vlaneseq
        %v1498 = vshrl.u32 %v1497, 7
        %v1499 = vsub.s32 0, %v1498
        %v1500 = vrot.slane %v1495, %v1499
        %v1502 = vmul.f32 %v1487, %v1500
        %v1503 = vmul.f32 %v1489, %v1500
        %v1504 = vmul.f32 %v1491, %v1500
        %v1505 = vmul.f32 %v1493, %v1500
        %1506 = vrot.lane.b32.xlu0 %v1361, 120
        %v1507 = vpop.permute.xlu0 %1506
        %1508 = vrot.lane.b32.xlu0 %v1364, 120
        %v1509 = vpop.permute.xlu0 %1508
        %1510 = vrot.lane.b32.xlu0 %v1369, 120
        %v1511 = vpop.permute.xlu0 %1510
        %1512 = vrot.lane.b32.xlu0 %v1372, 120
        %v1513 = vpop.permute.xlu0 %1512
        %s1514 = scalar_lea.vmem %s7, 7
        %v1515 = vld [vmem:[%s1514] sm:$0x1]
        %v1517 = vlaneseq
        %v1518 = vshrl.u32 %v1517, 7
        %v1519 = vsub.s32 0, %v1518
        %v1520 = vrot.slane %v1515, %v1519
        %v1522 = vmul.f32 %v1507, %v1520
        %v1523 = vmul.f32 %v1509, %v1520
        %v1524 = vmul.f32 %v1511, %v1520
        %v1525 = vmul.f32 %v1513, %v1520
        %1526 = vrot.lane.b32.xlu0 %v1361, 119
        %v1527 = vpop.permute.xlu0 %1526
        %1528 = vrot.lane.b32.xlu0 %v1364, 119
        %v1529 = vpop.permute.xlu0 %1528
        %1530 = vrot.lane.b32.xlu0 %v1369, 119
        %v1531 = vpop.permute.xlu0 %1530
        %1532 = vrot.lane.b32.xlu0 %v1372, 119
        %v1533 = vpop.permute.xlu0 %1532
        %s1534 = scalar_lea.vmem %s7, 8
        %v1535 = vld [vmem:[%s1534] sm:$0x1]
        %v1537 = vlaneseq
        %v1538 = vshrl.u32 %v1537, 7
        %v1539 = vsub.s32 0, %v1538
        %v1540 = vrot.slane %v1535, %v1539
        %v1542 = vmul.f32 %v1527, %v1540
        %v1543 = vmul.f32 %v1529, %v1540
        %v1544 = vmul.f32 %v1531, %v1540
        %v1545 = vmul.f32 %v1533, %v1540
        %v1546 = vpack.c.bf16 %v1391, %v1390
        %v1547 = vpack.c.bf16 %v1393, %v1392
        %v1548 = vpack.c.bf16 %v1411, %v1410
        %v1549 = vpack.c.bf16 %v1413, %v1412
        %v1550 = vpack.c.bf16 %v1431, %v1430
        %v1551 = vpack.c.bf16 %v1433, %v1432
        %v1552 = vpack.c.bf16 %v1451, %v1450
        %v1553 = vpack.c.bf16 %v1453, %v1452
        %v1554 = vpack.c.bf16 %v1463, %v1462
        %v1555 = vpack.c.bf16 %v1465, %v1464
        %v1556 = vpack.c.bf16 %v1483, %v1482
        %v1557 = vpack.c.bf16 %v1485, %v1484
        %v1558 = vpack.c.bf16 %v1503, %v1502
        %v1559 = vpack.c.bf16 %v1505, %v1504
        %v1560 = vpack.c.bf16 %v1523, %v1522
        %v1561 = vpack.c.bf16 %v1525, %v1524
        %v1562 = vpack.c.bf16 %v1543, %v1542
        %v1563 = vpack.c.bf16 %v1545, %v1544
        %v1564 = vld [vmem:[%s5] sm:$0xff]
        %v1565 = vld [vmem:[%s5 + $0x8] sm:$0xf]
        %v1566 = vld [vmem:[%s5 + $0xc] sm:$0xff]
        %v1567 = vld [vmem:[%s5 + $0x14] sm:$0xf]
        %v1568 = vld [vmem:[%s5 + $0x18] sm:$0xff]
        %v1569 = vld [vmem:[%s5 + $0x20] sm:$0xf]
        %v1570 = vld [vmem:[%s5 + $0x24] sm:$0xff]
        %v1571 = vld [vmem:[%s5 + $0x2c] sm:$0xf]
        %v1572 = vld [vmem:[%s5 + $0x30] sm:$0xff]
        %v1573 = vld [vmem:[%s5 + $0x38] sm:$0xf]
        %v1574 = vld [vmem:[%s5 + $0x3c] sm:$0xff]
        %v1575 = vld [vmem:[%s5 + $0x44] sm:$0xf]
        %v1576 = vld [vmem:[%s5 + $0x48] sm:$0xff]
        %v1577 = vld [vmem:[%s5 + $0x50] sm:$0xf]
        %v1578 = vld [vmem:[%s5 + $0x54] sm:$0xff]
        %v1579 = vld [vmem:[%s5 + $0x5c] sm:$0xf]
        %v1580 = vld [vmem:[%s6] sm:$0xff]
        %v1581 = vld [vmem:[%s6 + $0x8] sm:$0xff]
        %v1582 = vld [vmem:[%s6 + $0x10] sm:$0xff]
        %v1583 = vld [vmem:[%s6 + $0x18] sm:$0xff]
        %v1584 = vld [vmem:[%s6 + $0x20] sm:$0xff]
        %v1585 = vld [vmem:[%s6 + $0x28] sm:$0xff]
        %v1586 = vld [vmem:[%s6 + $0x30] sm:$0xff]
        %v1587 = vld [vmem:[%s6 + $0x38] sm:$0xff]
        %1589 = vset.pattern.permute.xlu0 0
        %1590 = vperm.xlu0 %1589, %v1580
        %v1591 = vpop.permute.xlu0 %1590
        %1594 = vset.pattern.permute.xlu0 0
        %1595 = vperm.xlu0 %1594, %v1581
        %v1596 = vpop.permute.xlu0 %1595
        %1599 = vset.pattern.permute.xlu0 0
        %1600 = vperm.xlu0 %1599, %v1582
        %v1601 = vpop.permute.xlu0 %1600
        %1604 = vset.pattern.permute.xlu0 0
        %1605 = vperm.xlu0 %1604, %v1583
        %v1606 = vpop.permute.xlu0 %1605
        %1609 = vset.pattern.permute.xlu0 0
        %1610 = vperm.xlu0 %1609, %v1584
        %v1611 = vpop.permute.xlu0 %1610
        %1614 = vset.pattern.permute.xlu0 0
        %1615 = vperm.xlu0 %1614, %v1585
        %v1616 = vpop.permute.xlu0 %1615
        %1619 = vset.pattern.permute.xlu0 0
        %1620 = vperm.xlu0 %1619, %v1586
        %v1621 = vpop.permute.xlu0 %1620
        %1624 = vset.pattern.permute.xlu0 0
        %1625 = vperm.xlu0 %1624, %v1587
        %v1626 = vpop.permute.xlu0 %1625
        %v1644 = vunpack.c.l.b16 %v1564
        %v1645 = vunpack.c.h.b16 %v1564
        %v1646 = vunpack.c.l.b16 %v1565
        %v1647 = vunpack.c.l.b16 %v1566
        %v1648 = vunpack.c.h.b16 %v1566
        %v1649 = vunpack.c.l.b16 %v1567
        %v1650 = vunpack.c.l.b16 %v1568
        %v1651 = vunpack.c.h.b16 %v1568
        %v1652 = vunpack.c.l.b16 %v1569
        %v1653 = vunpack.c.l.b16 %v1570
        %v1654 = vunpack.c.h.b16 %v1570
        %v1655 = vunpack.c.l.b16 %v1571
        %v1656 = vunpack.c.l.b16 %v1572
        %v1657 = vunpack.c.h.b16 %v1572
        %v1658 = vunpack.c.l.b16 %v1573
        %v1659 = vunpack.c.l.b16 %v1574
        %v1660 = vunpack.c.h.b16 %v1574
        %v1661 = vunpack.c.l.b16 %v1575
        %v1662 = vunpack.c.l.b16 %v1576
        %v1663 = vunpack.c.h.b16 %v1576
        %v1664 = vunpack.c.l.b16 %v1577
        %v1665 = vunpack.c.l.b16 %v1578
        %v1666 = vunpack.c.h.b16 %v1578
        %v1667 = vunpack.c.l.b16 %v1579
        %v1668 = vpack.c.b16 %v1647, %v1644
        %v1669 = vpack.c.b16 %v1648, %v1645
        %v1670 = vpack.c.b16 %v1649, %v1646
        %v1671 = vpack.c.b16 %v1653, %v1650
        %v1672 = vpack.c.b16 %v1654, %v1651
        %v1673 = vpack.c.b16 %v1655, %v1652
        %v1674 = vpack.c.b16 %v1659, %v1656
        %v1675 = vpack.c.b16 %v1660, %v1657
        %v1676 = vpack.c.b16 %v1661, %v1658
        %v1677 = vpack.c.b16 %v1665, %v1662
        %v1678 = vpack.c.b16 %v1666, %v1663
        %v1679 = vpack.c.b16 %v1667, %v1664
        %vm1688 = vcmask 261120
        %v1690 = vsel %vm1688, %v1670, 0
        %v1693 = vsel %vm1688, %v1673, 0
        %v1696 = vsel %vm1688, %v1676, 0
        %v1699 = vsel %vm1688, %v1679, 0
        %1701 = vmatprep.subr.bf16.mxu0 0
        %1702 = vmatpush1.bf16.msra.mxu0 %v1553
        %1703 = vmatprep.subr.bf16.mxu0 0
        %1704 = vmatpush1.bf16.msra.mxu0 %v1552
        %1705 = vmatprep.subr.bf16.mxu0 0
        %1706 = vmatpush1.bf16.msra.mxu0 %v1551
        %1707 = vmatprep.subr.bf16.mxu0 0
        %1708 = vmatpush1.bf16.msra.mxu0 %v1550
        %1709 = vmatprep.subr.bf16.mxu0 0
        %1710 = vmatpush1.bf16.msra.mxu0 %v1549
        %1711 = vmatprep.subr.bf16.mxu0 0
        %1712 = vmatpush1.bf16.msra.mxu0 %v1548
        %1713 = vmatprep.subr.bf16.mxu0 0
        %1714 = vmatpush1.bf16.msra.mxu0 %v1547
        %1715 = vmatprep.subr.bf16.mxu0 0
        %1716 = vmatpush1.bf16.msra.mxu0 %v1546
        %1717 = vmatprep.subr.bf16.mxu0 0
        %1718 = vmatpush2.bf16.msra.mxu0 %v1561
        %1719 = vmatprep.subr.bf16.mxu0 0
        %1720 = vmatpush2.bf16.msra.mxu0 %v1560
        %1721 = vmatprep.subr.bf16.mxu0 0
        %1722 = vmatpush2.bf16.msra.mxu0 %v1559
        %1723 = vmatprep.subr.bf16.mxu0 0
        %1724 = vmatpush2.bf16.msra.mxu0 %v1558
        %1725 = vmatprep.subr.bf16.mxu0 0
        %1726 = vmatpush2.bf16.msra.mxu0 %v1557
        %1727 = vmatprep.subr.bf16.mxu0 0
        %1728 = vmatpush2.bf16.msra.mxu0 %v1556
        %1729 = vmatprep.subr.bf16.mxu0 0
        %1730 = vmatpush2.bf16.msra.mxu0 %v1555
        %1731 = vmatprep.subr.bf16.mxu0 0
        %1732 = vmatpush2.bf16.msra.mxu0 %v1554
        %1733 = vmatprep.mubr.bf16.mxu0 %v1669
        %1734 = vmatmul.mubr.bf16.gmra.mxu0 %v1668
        %v1735 = vpop.f32.mrf.mxu0
        %v1736 = vadd.f32 %v1591, %v1735
        %v1737 = vpop.f32.mrf.mxu0
        %v1738 = vpop.f32.mrf.mxu0
        %v1739 = vadd.f32 %v1596, %v1738
        %v1740 = vpop.f32.mrf.mxu0
        %1741 = vmatprep.mubr.bf16.mxu0 %v1672
        %1742 = vmatmul.mubr.bf16.gmra.mxu0 %v1671
        %v1743 = vpop.f32.mrf.mxu0
        %v1744 = vadd.f32 %v1601, %v1743
        %v1745 = vpop.f32.mrf.mxu0
        %v1746 = vpop.f32.mrf.mxu0
        %v1747 = vadd.f32 %v1606, %v1746
        %v1748 = vpop.f32.mrf.mxu0
        %1749 = vmatprep.mubr.bf16.mxu0 %v1675
        %1750 = vmatmul.mubr.bf16.gmra.mxu0 %v1674
        %v1751 = vpop.f32.mrf.mxu0
        %v1752 = vadd.f32 %v1611, %v1751
        %v1753 = vpop.f32.mrf.mxu0
        %v1754 = vpop.f32.mrf.mxu0
        %v1755 = vadd.f32 %v1616, %v1754
        %v1756 = vpop.f32.mrf.mxu0
        %1757 = vmatprep.mubr.bf16.mxu0 %v1678
        %1758 = vmatmul.mubr.bf16.gmra.mxu0 %v1677
        %v1759 = vpop.f32.mrf.mxu0
        %v1760 = vadd.f32 %v1621, %v1759
        %v1761 = vpop.f32.mrf.mxu0
        %v1762 = vpop.f32.mrf.mxu0
        %v1763 = vadd.f32 %v1626, %v1762
        %v1764 = vpop.f32.mrf.mxu0
        %1765 = vdwg.mxu0
        %1766 = vmatprep.subr.bf16.mxu0 0
        %1767 = vmatpush1.bf16.msra.mxu0 0
        %1768 = vmatprep.subr.bf16.mxu0 0
        %1769 = vmatpush1.bf16.msra.mxu0 0
        %1770 = vmatprep.subr.bf16.mxu0 0
        %1771 = vmatpush1.bf16.msra.mxu0 0
        %1772 = vmatprep.subr.bf16.mxu0 0
        %1773 = vmatpush1.bf16.msra.mxu0 0
        %1774 = vmatprep.subr.bf16.mxu0 0
        %1775 = vmatpush1.bf16.msra.mxu0 0
        %1776 = vmatprep.subr.bf16.mxu0 0
        %1777 = vmatpush1.bf16.msra.mxu0 0
        %1778 = vmatprep.subr.bf16.mxu0 0
        %1779 = vmatpush1.bf16.msra.mxu0 %v1563
        %1780 = vmatprep.subr.bf16.mxu0 0
        %1781 = vmatpush1.bf16.msra.mxu0 %v1562
        %1782 = vmatprep.subr.bf16.mxu0 0
        %1783 = vmatpush2.bf16.msra.mxu0 0
        %1784 = vmatprep.subr.bf16.mxu0 0
        %1785 = vmatpush2.bf16.msra.mxu0 0
        %1786 = vmatprep.subr.bf16.mxu0 0
        %1787 = vmatpush2.bf16.msra.mxu0 0
        %1788 = vmatprep.subr.bf16.mxu0 0
        %1789 = vmatpush2.bf16.msra.mxu0 0
        %1790 = vmatprep.subr.bf16.mxu0 0
        %1791 = vmatpush2.bf16.msra.mxu0 0
        %1792 = vmatprep.subr.bf16.mxu0 0
        %1793 = vmatpush2.bf16.msra.mxu0 0
        %1794 = vmatprep.subr.bf16.mxu0 0
        %1795 = vmatpush2.bf16.msra.mxu0 0
        %1796 = vmatprep.subr.bf16.mxu0 0
        %1797 = vmatpush2.bf16.msra.mxu0 0
        %1798 = vmatprep.mubr.bf16.mxu0 0
        %1799 = vmatmul.mubr.bf16.gmra.mxu0 %v1690
        %v1800 = vpop.f32.mrf.mxu0
        %v1801 = vadd.f32 %v1736, %v1800
        %v1802 = vpop.f32.mrf.mxu0
        %v1803 = vpop.f32.mrf.mxu0
        %v1804 = vadd.f32 %v1739, %v1803
        %v1805 = vpop.f32.mrf.mxu0
        %1806 = vmatprep.mubr.bf16.mxu0 0
        %1807 = vmatmul.mubr.bf16.gmra.mxu0 %v1693
        %v1808 = vpop.f32.mrf.mxu0
        %v1809 = vadd.f32 %v1744, %v1808
        %v1810 = vpop.f32.mrf.mxu0
        %v1811 = vpop.f32.mrf.mxu0
        %v1812 = vadd.f32 %v1747, %v1811
        %v1813 = vpop.f32.mrf.mxu0
        %1814 = vmatprep.mubr.bf16.mxu0 0
        %1815 = vmatmul.mubr.bf16.gmra.mxu0 %v1696
        %v1816 = vpop.f32.mrf.mxu0
        %v1817 = vadd.f32 %v1752, %v1816
        %v1818 = vpop.f32.mrf.mxu0
        %v1819 = vpop.f32.mrf.mxu0
        %v1820 = vadd.f32 %v1755, %v1819
        %v1821 = vpop.f32.mrf.mxu0
        %1822 = vmatprep.mubr.bf16.mxu0 0
        %1823 = vmatmul.mubr.bf16.gmra.mxu0 %v1699
        %v1824 = vpop.f32.mrf.mxu0
        %v1825 = vadd.f32 %v1760, %v1824
        %v1826 = vpop.f32.mrf.mxu0
        %v1827 = vpop.f32.mrf.mxu0
        %v1828 = vadd.f32 %v1763, %v1827
        %v1829 = vpop.f32.mrf.mxu0
        %1830 = vdwg.mxu0
        %v1831 = vmax.f32 %v1801, 0.0
        %v1832 = vmax.f32 %v1804, 0.0
        %v1833 = vmax.f32 %v1809, 0.0
        %v1834 = vmax.f32 %v1812, 0.0
        %v1835 = vmax.f32 %v1817, 0.0
        %v1836 = vmax.f32 %v1820, 0.0
        %v1837 = vmax.f32 %v1825, 0.0
        %v1838 = vmax.f32 %v1828, 0.0
        %1839 = vrot.lane.b32.xlu0 %v1831, 127
        %v1840 = vpop.permute.xlu0 %1839
        %1841 = vrot.lane.b32.xlu0 %v1832, 127
        %v1842 = vpop.permute.xlu0 %1841
        %1843 = vrot.lane.b32.xlu0 %v1833, 127
        %v1844 = vpop.permute.xlu0 %1843
        %1845 = vrot.lane.b32.xlu0 %v1834, 127
        %v1846 = vpop.permute.xlu0 %1845
        %1847 = vrot.lane.b32.xlu0 %v1835, 127
        %v1848 = vpop.permute.xlu0 %1847
        %1849 = vrot.lane.b32.xlu0 %v1836, 127
        %v1850 = vpop.permute.xlu0 %1849
        %1851 = vrot.lane.b32.xlu0 %v1837, 127
        %v1852 = vpop.permute.xlu0 %1851
        %1853 = vrot.lane.b32.xlu0 %v1838, 127
        %v1854 = vpop.permute.xlu0 %1853
        %v1855 = vmax.f32 %v1831, %v1840
        %v1856 = vmax.f32 %v1832, %v1842
        %v1857 = vmax.f32 %v1833, %v1844
        %v1858 = vmax.f32 %v1834, %v1846
        %v1859 = vmax.f32 %v1835, %v1848
        %v1860 = vmax.f32 %v1836, %v1850
        %v1861 = vmax.f32 %v1837, %v1852
        %v1862 = vmax.f32 %v1838, %v1854
        %1863 = vrot.lane.b32.xlu0 %v1855, 120
        %v1864 = vpop.permute.xlu0 %1863
        %1865 = vrot.lane.b32.xlu0 %v1856, 120
        %v1866 = vpop.permute.xlu0 %1865
        %1867 = vrot.lane.b32.xlu0 %v1857, 120
        %v1868 = vpop.permute.xlu0 %1867
        %1869 = vrot.lane.b32.xlu0 %v1858, 120
        %v1870 = vpop.permute.xlu0 %1869
        %1871 = vrot.lane.b32.xlu0 %v1859, 120
        %v1872 = vpop.permute.xlu0 %1871
        %1873 = vrot.lane.b32.xlu0 %v1860, 120
        %v1874 = vpop.permute.xlu0 %1873
        %1875 = vrot.lane.b32.xlu0 %v1861, 120
        %v1876 = vpop.permute.xlu0 %1875
        %1877 = vrot.lane.b32.xlu0 %v1862, 120
        %v1878 = vpop.permute.xlu0 %1877
        %v1879 = vmax.f32 %v1855, %v1864
        %v1880 = vmax.f32 %v1856, %v1866
        %v1881 = vmax.f32 %v1857, %v1868
        %v1882 = vmax.f32 %v1858, %v1870
        %v1883 = vmax.f32 %v1859, %v1872
        %v1884 = vmax.f32 %v1860, %v1874
        %v1885 = vmax.f32 %v1861, %v1876
        %v1886 = vmax.f32 %v1862, %v1878
        %v1887 = vpack.c.bf16 %v1880, %v1879
        %v1888 = vpack.c.bf16 %v1882, %v1881
        %v1889 = vpack.c.bf16 %v1884, %v1883
        %v1890 = vpack.c.bf16 %v1886, %v1885
        %v1891 = vld [vmem:[%s8] sm:$0xf]
        %v1892 = vld [vmem:[%s8 + $0x4] sm:$0xf]
        %v1893 = vld [vmem:[%s8 + $0x8] sm:$0xf]
        %v1894 = vld [vmem:[%s8 + $0xc] sm:$0xf]
        %v1895 = vld [vmem:[%s8 + $0x10] sm:$0xf]
        %v1896 = vld [vmem:[%s8 + $0x14] sm:$0xf]
        %v1897 = vld [vmem:[%s8 + $0x18] sm:$0xf]
        %v1898 = vld [vmem:[%s8 + $0x1c] sm:$0xf]
        %v1899 = vld [vmem:[%s8 + $0x20] sm:$0xf]
        %v1900 = vld [vmem:[%s8 + $0x24] sm:$0xf]
        %v1901 = vld [vmem:[%s8 + $0x28] sm:$0xf]
        %v1902 = vld [vmem:[%s8 + $0x2c] sm:$0xf]
        %v1903 = vld [vmem:[%s8 + $0x30] sm:$0xf]
        %v1904 = vld [vmem:[%s8 + $0x34] sm:$0xf]
        %v1905 = vld [vmem:[%s8 + $0x38] sm:$0xf]
        %v1906 = vld [vmem:[%s8 + $0x3c] sm:$0xf]
        %v1923 = vunpack.c.l.b16 %v1891
        %v1924 = vunpack.c.l.b16 %v1892
        %v1925 = vunpack.c.l.b16 %v1893
        %v1926 = vunpack.c.l.b16 %v1894
        %v1927 = vunpack.c.l.b16 %v1895
        %v1928 = vunpack.c.l.b16 %v1896
        %v1929 = vunpack.c.l.b16 %v1897
        %v1930 = vunpack.c.l.b16 %v1898
        %v1931 = vunpack.c.l.b16 %v1899
        %v1932 = vunpack.c.l.b16 %v1900
        %v1933 = vunpack.c.l.b16 %v1901
        %v1934 = vunpack.c.l.b16 %v1902
        %v1935 = vunpack.c.l.b16 %v1903
        %v1936 = vunpack.c.l.b16 %v1904
        %v1937 = vunpack.c.l.b16 %v1905
        %v1938 = vunpack.c.l.b16 %v1906
        %v1939 = vpack.c.b16 %v1924, %v1923
        %v1940 = vpack.c.b16 %v1926, %v1925
        %v1941 = vpack.c.b16 %v1928, %v1927
        %v1942 = vpack.c.b16 %v1930, %v1929
        %v1943 = vpack.c.b16 %v1932, %v1931
        %v1944 = vpack.c.b16 %v1934, %v1933
        %v1945 = vpack.c.b16 %v1936, %v1935
        %v1946 = vpack.c.b16 %v1938, %v1937
        %1955 = vmatprep.subr.bf16.mxu0 0
        %1956 = vmatpush1.bf16.msra.mxu0 %v1946
        %1957 = vmatprep.subr.bf16.mxu0 0
        %1958 = vmatpush1.bf16.msra.mxu0 %v1945
        %1959 = vmatprep.subr.bf16.mxu0 0
        %1960 = vmatpush1.bf16.msra.mxu0 %v1944
        %1961 = vmatprep.subr.bf16.mxu0 0
        %1962 = vmatpush1.bf16.msra.mxu0 %v1943
        %1963 = vmatprep.subr.bf16.mxu0 0
        %1964 = vmatpush1.bf16.msra.mxu0 %v1942
        %1965 = vmatprep.subr.bf16.mxu0 0
        %1966 = vmatpush1.bf16.msra.mxu0 %v1941
        %1967 = vmatprep.subr.bf16.mxu0 0
        %1968 = vmatpush1.bf16.msra.mxu0 %v1940
        %1969 = vmatprep.subr.bf16.mxu0 0
        %1970 = vmatpush1.bf16.msra.mxu0 %v1939
        %1971 = vmatprep.subr.bf16.mxu0 0
        %1972 = vmatpush2.bf16.msra.mxu0 0
        %1973 = vmatprep.subr.bf16.mxu0 0
        %1974 = vmatpush2.bf16.msra.mxu0 0
        %1975 = vmatprep.subr.bf16.mxu0 0
        %1976 = vmatpush2.bf16.msra.mxu0 0
        %1977 = vmatprep.subr.bf16.mxu0 0
        %1978 = vmatpush2.bf16.msra.mxu0 0
        %1979 = vmatprep.subr.bf16.mxu0 0
        %1980 = vmatpush2.bf16.msra.mxu0 0
        %1981 = vmatprep.subr.bf16.mxu0 0
        %1982 = vmatpush2.bf16.msra.mxu0 0
        %1983 = vmatprep.subr.bf16.mxu0 0
        %1984 = vmatpush2.bf16.msra.mxu0 0
        %1985 = vmatprep.subr.bf16.mxu0 0
        %1986 = vmatpush2.bf16.msra.mxu0 0
        %1987 = vmatprep.mubr.bf16.mxu0 0
        %1988 = vmatmul.mubr.bf16.gmra.mxu0 %v1887
        %v1989 = vpop.f32.mrf.mxu0
        %v1990 = vadd.f32 0.0, %v1989
        %v1991 = vpop.f32.mrf.mxu0
        %v1992 = vpop.f32.mrf.mxu0
        %v1993 = vadd.f32 0.0, %v1992
        %v1994 = vpop.f32.mrf.mxu0
        %1995 = vmatprep.mubr.bf16.mxu0 0
        %1996 = vmatmul.mubr.bf16.gmra.mxu0 %v1888
        %v1997 = vpop.f32.mrf.mxu0
        %v1998 = vadd.f32 0.0, %v1997
        %v1999 = vpop.f32.mrf.mxu0
        %v2000 = vpop.f32.mrf.mxu0
        %v2001 = vadd.f32 0.0, %v2000
        %v2002 = vpop.f32.mrf.mxu0
        %2003 = vmatprep.mubr.bf16.mxu0 0
        %2004 = vmatmul.mubr.bf16.gmra.mxu0 %v1889
        %v2005 = vpop.f32.mrf.mxu0
        %v2006 = vadd.f32 0.0, %v2005
        %v2007 = vpop.f32.mrf.mxu0
        %v2008 = vpop.f32.mrf.mxu0
        %v2009 = vadd.f32 0.0, %v2008
        %v2010 = vpop.f32.mrf.mxu0
        %2011 = vmatprep.mubr.bf16.mxu0 0
        %2012 = vmatmul.mubr.bf16.gmra.mxu0 %v1890
        %v2013 = vpop.f32.mrf.mxu0
        %v2014 = vadd.f32 0.0, %v2013
        %v2015 = vpop.f32.mrf.mxu0
        %v2016 = vpop.f32.mrf.mxu0
        %v2017 = vadd.f32 0.0, %v2016
        %v2018 = vpop.f32.mrf.mxu0
        %2019 = vdwg.mxu0
        %2020 = vrot.lane.b32.xlu0 %v1990, 5
        %v2021 = vpop.permute.xlu0 %2020
        %2022 = vrot.lane.b32.xlu0 %v1993, 5
        %v2023 = vpop.permute.xlu0 %2022
        %2024 = vrot.lane.b32.xlu0 %v1998, 5
        %v2025 = vpop.permute.xlu0 %2024
        %2026 = vrot.lane.b32.xlu0 %v2001, 5
        %v2027 = vpop.permute.xlu0 %2026
        %2028 = vrot.lane.b32.xlu0 %v2006, 5
        %v2029 = vpop.permute.xlu0 %2028
        %2030 = vrot.lane.b32.xlu0 %v2009, 5
        %v2031 = vpop.permute.xlu0 %2030
        %2032 = vrot.lane.b32.xlu0 %v2014, 5
        %v2033 = vpop.permute.xlu0 %2032
        %2034 = vrot.lane.b32.xlu0 %v2017, 5
        %v2035 = vpop.permute.xlu0 %2034
        %v2036 = vld [vmem:[%s11] sm:$0x1]
        %v2038 = vlaneseq
        %v2039 = vshrl.u32 %v2038, 7
        %v2040 = vsub.s32 0, %v2039
        %v2041 = vrot.slane %v2036, %v2040
        %v2043 = vmul.f32 %v2021, %v2041
        %v2044 = vmul.f32 %v2023, %v2041
        %v2045 = vmul.f32 %v2025, %v2041
        %v2046 = vmul.f32 %v2027, %v2041
        %v2047 = vmul.f32 %v2029, %v2041
        %v2048 = vmul.f32 %v2031, %v2041
        %v2049 = vmul.f32 %v2033, %v2041
        %v2050 = vmul.f32 %v2035, %v2041
        %2051 = vrot.lane.b32.xlu0 %v1990, 4
        %v2052 = vpop.permute.xlu0 %2051
        %2053 = vrot.lane.b32.xlu0 %v1993, 4
        %v2054 = vpop.permute.xlu0 %2053
        %2055 = vrot.lane.b32.xlu0 %v1998, 4
        %v2056 = vpop.permute.xlu0 %2055
        %2057 = vrot.lane.b32.xlu0 %v2001, 4
        %v2058 = vpop.permute.xlu0 %2057
        %2059 = vrot.lane.b32.xlu0 %v2006, 4
        %v2060 = vpop.permute.xlu0 %2059
        %2061 = vrot.lane.b32.xlu0 %v2009, 4
        %v2062 = vpop.permute.xlu0 %2061
        %2063 = vrot.lane.b32.xlu0 %v2014, 4
        %v2064 = vpop.permute.xlu0 %2063
        %2065 = vrot.lane.b32.xlu0 %v2017, 4
        %v2066 = vpop.permute.xlu0 %2065
        %s2067 = scalar_lea.vmem %s11, 1
        %v2068 = vld [vmem:[%s2067] sm:$0x1]
        %v2070 = vlaneseq
        %v2071 = vshrl.u32 %v2070, 7
        %v2072 = vsub.s32 0, %v2071
        %v2073 = vrot.slane %v2068, %v2072
        %v2075 = vmul.f32 %v2052, %v2073
        %v2076 = vmul.f32 %v2054, %v2073
        %v2077 = vmul.f32 %v2056, %v2073
        %v2078 = vmul.f32 %v2058, %v2073
        %v2079 = vmul.f32 %v2060, %v2073
        %v2080 = vmul.f32 %v2062, %v2073
        %v2081 = vmul.f32 %v2064, %v2073
        %v2082 = vmul.f32 %v2066, %v2073
        %2083 = vrot.lane.b32.xlu0 %v1990, 3
        %v2084 = vpop.permute.xlu0 %2083
        %2085 = vrot.lane.b32.xlu0 %v1993, 3
        %v2086 = vpop.permute.xlu0 %2085
        %2087 = vrot.lane.b32.xlu0 %v1998, 3
        %v2088 = vpop.permute.xlu0 %2087
        %2089 = vrot.lane.b32.xlu0 %v2001, 3
        %v2090 = vpop.permute.xlu0 %2089
        %2091 = vrot.lane.b32.xlu0 %v2006, 3
        %v2092 = vpop.permute.xlu0 %2091
        %2093 = vrot.lane.b32.xlu0 %v2009, 3
        %v2094 = vpop.permute.xlu0 %2093
        %2095 = vrot.lane.b32.xlu0 %v2014, 3
        %v2096 = vpop.permute.xlu0 %2095
        %2097 = vrot.lane.b32.xlu0 %v2017, 3
        %v2098 = vpop.permute.xlu0 %2097
        %s2099 = scalar_lea.vmem %s11, 2
        %v2100 = vld [vmem:[%s2099] sm:$0x1]
        %v2102 = vlaneseq
        %v2103 = vshrl.u32 %v2102, 7
        %v2104 = vsub.s32 0, %v2103
        %v2105 = vrot.slane %v2100, %v2104
        %v2107 = vmul.f32 %v2084, %v2105
        %v2108 = vmul.f32 %v2086, %v2105
        %v2109 = vmul.f32 %v2088, %v2105
        %v2110 = vmul.f32 %v2090, %v2105
        %v2111 = vmul.f32 %v2092, %v2105
        %v2112 = vmul.f32 %v2094, %v2105
        %v2113 = vmul.f32 %v2096, %v2105
        %v2114 = vmul.f32 %v2098, %v2105
        %2115 = vrot.lane.b32.xlu0 %v1990, 1
        %v2116 = vpop.permute.xlu0 %2115
        %2117 = vrot.lane.b32.xlu0 %v1993, 1
        %v2118 = vpop.permute.xlu0 %2117
        %2119 = vrot.lane.b32.xlu0 %v1998, 1
        %v2120 = vpop.permute.xlu0 %2119
        %2121 = vrot.lane.b32.xlu0 %v2001, 1
        %v2122 = vpop.permute.xlu0 %2121
        %2123 = vrot.lane.b32.xlu0 %v2006, 1
        %v2124 = vpop.permute.xlu0 %2123
        %2125 = vrot.lane.b32.xlu0 %v2009, 1
        %v2126 = vpop.permute.xlu0 %2125
        %2127 = vrot.lane.b32.xlu0 %v2014, 1
        %v2128 = vpop.permute.xlu0 %2127
        %2129 = vrot.lane.b32.xlu0 %v2017, 1
        %v2130 = vpop.permute.xlu0 %2129
        %s2131 = scalar_lea.vmem %s11, 3
        %v2132 = vld [vmem:[%s2131] sm:$0x1]
        %v2134 = vlaneseq
        %v2135 = vshrl.u32 %v2134, 7
        %v2136 = vsub.s32 0, %v2135
        %v2137 = vrot.slane %v2132, %v2136
        %v2139 = vmul.f32 %v2116, %v2137
        %v2140 = vmul.f32 %v2118, %v2137
        %v2141 = vmul.f32 %v2120, %v2137
        %v2142 = vmul.f32 %v2122, %v2137
        %v2143 = vmul.f32 %v2124, %v2137
        %v2144 = vmul.f32 %v2126, %v2137
        %v2145 = vmul.f32 %v2128, %v2137
        %v2146 = vmul.f32 %v2130, %v2137
        %s2147 = scalar_lea.vmem %s11, 4
        %v2148 = vld [vmem:[%s2147] sm:$0x1]
        %v2150 = vlaneseq
        %v2151 = vshrl.u32 %v2150, 7
        %v2152 = vsub.s32 0, %v2151
        %v2153 = vrot.slane %v2148, %v2152
        %v2155 = vmul.f32 %v1990, %v2153
        %v2156 = vmul.f32 %v1993, %v2153
        %v2157 = vmul.f32 %v1998, %v2153
        %v2158 = vmul.f32 %v2001, %v2153
        %v2159 = vmul.f32 %v2006, %v2153
        %v2160 = vmul.f32 %v2009, %v2153
        %v2161 = vmul.f32 %v2014, %v2153
        %v2162 = vmul.f32 %v2017, %v2153
        %2163 = vrot.lane.b32.xlu0 %v1990, 127
        %v2164 = vpop.permute.xlu0 %2163
        %2165 = vrot.lane.b32.xlu0 %v1993, 127
        %v2166 = vpop.permute.xlu0 %2165
        %2167 = vrot.lane.b32.xlu0 %v1998, 127
        %v2168 = vpop.permute.xlu0 %2167
        %2169 = vrot.lane.b32.xlu0 %v2001, 127
        %v2170 = vpop.permute.xlu0 %2169
        %2171 = vrot.lane.b32.xlu0 %v2006, 127
        %v2172 = vpop.permute.xlu0 %2171
        %2173 = vrot.lane.b32.xlu0 %v2009, 127
        %v2174 = vpop.permute.xlu0 %2173
        %2175 = vrot.lane.b32.xlu0 %v2014, 127
        %v2176 = vpop.permute.xlu0 %2175
        %2177 = vrot.lane.b32.xlu0 %v2017, 127
        %v2178 = vpop.permute.xlu0 %2177
        %s2179 = scalar_lea.vmem %s11, 5
        %v2180 = vld [vmem:[%s2179] sm:$0x1]
        %v2182 = vlaneseq
        %v2183 = vshrl.u32 %v2182, 7
        %v2184 = vsub.s32 0, %v2183
        %v2185 = vrot.slane %v2180, %v2184
        %v2187 = vmul.f32 %v2164, %v2185
        %v2188 = vmul.f32 %v2166, %v2185
        %v2189 = vmul.f32 %v2168, %v2185
        %v2190 = vmul.f32 %v2170, %v2185
        %v2191 = vmul.f32 %v2172, %v2185
        %v2192 = vmul.f32 %v2174, %v2185
        %v2193 = vmul.f32 %v2176, %v2185
        %v2194 = vmul.f32 %v2178, %v2185
        %2195 = vrot.lane.b32.xlu0 %v1990, 125
        %v2196 = vpop.permute.xlu0 %2195
        %2197 = vrot.lane.b32.xlu0 %v1993, 125
        %v2198 = vpop.permute.xlu0 %2197
        %2199 = vrot.lane.b32.xlu0 %v1998, 125
        %v2200 = vpop.permute.xlu0 %2199
        %2201 = vrot.lane.b32.xlu0 %v2001, 125
        %v2202 = vpop.permute.xlu0 %2201
        %2203 = vrot.lane.b32.xlu0 %v2006, 125
        %v2204 = vpop.permute.xlu0 %2203
        %2205 = vrot.lane.b32.xlu0 %v2009, 125
        %v2206 = vpop.permute.xlu0 %2205
        %2207 = vrot.lane.b32.xlu0 %v2014, 125
        %v2208 = vpop.permute.xlu0 %2207
        %2209 = vrot.lane.b32.xlu0 %v2017, 125
        %v2210 = vpop.permute.xlu0 %2209
        %s2211 = scalar_lea.vmem %s11, 6
        %v2212 = vld [vmem:[%s2211] sm:$0x1]
        %v2214 = vlaneseq
        %v2215 = vshrl.u32 %v2214, 7
        %v2216 = vsub.s32 0, %v2215
        %v2217 = vrot.slane %v2212, %v2216
        %v2219 = vmul.f32 %v2196, %v2217
        %v2220 = vmul.f32 %v2198, %v2217
        %v2221 = vmul.f32 %v2200, %v2217
        %v2222 = vmul.f32 %v2202, %v2217
        %v2223 = vmul.f32 %v2204, %v2217
        %v2224 = vmul.f32 %v2206, %v2217
        %v2225 = vmul.f32 %v2208, %v2217
        %v2226 = vmul.f32 %v2210, %v2217
        %2227 = vrot.lane.b32.xlu0 %v1990, 124
        %v2228 = vpop.permute.xlu0 %2227
        %2229 = vrot.lane.b32.xlu0 %v1993, 124
        %v2230 = vpop.permute.xlu0 %2229
        %2231 = vrot.lane.b32.xlu0 %v1998, 124
        %v2232 = vpop.permute.xlu0 %2231
        %2233 = vrot.lane.b32.xlu0 %v2001, 124
        %v2234 = vpop.permute.xlu0 %2233
        %2235 = vrot.lane.b32.xlu0 %v2006, 124
        %v2236 = vpop.permute.xlu0 %2235
        %2237 = vrot.lane.b32.xlu0 %v2009, 124
        %v2238 = vpop.permute.xlu0 %2237
        %2239 = vrot.lane.b32.xlu0 %v2014, 124
        %v2240 = vpop.permute.xlu0 %2239
        %2241 = vrot.lane.b32.xlu0 %v2017, 124
        %v2242 = vpop.permute.xlu0 %2241
        %s2243 = scalar_lea.vmem %s11, 7
        %v2244 = vld [vmem:[%s2243] sm:$0x1]
        %v2246 = vlaneseq
        %v2247 = vshrl.u32 %v2246, 7
        %v2248 = vsub.s32 0, %v2247
        %v2249 = vrot.slane %v2244, %v2248
        %v2251 = vmul.f32 %v2228, %v2249
        %v2252 = vmul.f32 %v2230, %v2249
        %v2253 = vmul.f32 %v2232, %v2249
        %v2254 = vmul.f32 %v2234, %v2249
        %v2255 = vmul.f32 %v2236, %v2249
        %v2256 = vmul.f32 %v2238, %v2249
        %v2257 = vmul.f32 %v2240, %v2249
        %v2258 = vmul.f32 %v2242, %v2249
        %2259 = vrot.lane.b32.xlu0 %v1990, 123
        %v2260 = vpop.permute.xlu0 %2259
        %2261 = vrot.lane.b32.xlu0 %v1993, 123
        %v2262 = vpop.permute.xlu0 %2261
        %2263 = vrot.lane.b32.xlu0 %v1998, 123
        %v2264 = vpop.permute.xlu0 %2263
        %2265 = vrot.lane.b32.xlu0 %v2001, 123
        %v2266 = vpop.permute.xlu0 %2265
        %2267 = vrot.lane.b32.xlu0 %v2006, 123
        %v2268 = vpop.permute.xlu0 %2267
        %2269 = vrot.lane.b32.xlu0 %v2009, 123
        %v2270 = vpop.permute.xlu0 %2269
        %2271 = vrot.lane.b32.xlu0 %v2014, 123
        %v2272 = vpop.permute.xlu0 %2271
        %2273 = vrot.lane.b32.xlu0 %v2017, 123
        %v2274 = vpop.permute.xlu0 %2273
        %s2275 = scalar_lea.vmem %s11, 8
        %v2276 = vld [vmem:[%s2275] sm:$0x1]
        %v2278 = vlaneseq
        %v2279 = vshrl.u32 %v2278, 7
        %v2280 = vsub.s32 0, %v2279
        %v2281 = vrot.slane %v2276, %v2280
        %v2283 = vmul.f32 %v2260, %v2281
        %v2284 = vmul.f32 %v2262, %v2281
        %v2285 = vmul.f32 %v2264, %v2281
        %v2286 = vmul.f32 %v2266, %v2281
        %v2287 = vmul.f32 %v2268, %v2281
        %v2288 = vmul.f32 %v2270, %v2281
        %v2289 = vmul.f32 %v2272, %v2281
        %v2290 = vmul.f32 %v2274, %v2281
        %v2291 = vpack.c.bf16 %v2044, %v2043
        %v2292 = vpack.c.bf16 %v2046, %v2045
        %v2293 = vpack.c.bf16 %v2048, %v2047
        %v2294 = vpack.c.bf16 %v2050, %v2049
        %v2295 = vpack.c.bf16 %v2076, %v2075
        %v2296 = vpack.c.bf16 %v2078, %v2077
        %v2297 = vpack.c.bf16 %v2080, %v2079
        %v2298 = vpack.c.bf16 %v2082, %v2081
        %v2299 = vpack.c.bf16 %v2108, %v2107
        %v2300 = vpack.c.bf16 %v2110, %v2109
        %v2301 = vpack.c.bf16 %v2112, %v2111
        %v2302 = vpack.c.bf16 %v2114, %v2113
        %v2303 = vpack.c.bf16 %v2140, %v2139
        %v2304 = vpack.c.bf16 %v2142, %v2141
        %v2305 = vpack.c.bf16 %v2144, %v2143
        %v2306 = vpack.c.bf16 %v2146, %v2145
        %v2307 = vpack.c.bf16 %v2156, %v2155
        %v2308 = vpack.c.bf16 %v2158, %v2157
        %v2309 = vpack.c.bf16 %v2160, %v2159
        %v2310 = vpack.c.bf16 %v2162, %v2161
        %v2311 = vpack.c.bf16 %v2188, %v2187
        %v2312 = vpack.c.bf16 %v2190, %v2189
        %v2313 = vpack.c.bf16 %v2192, %v2191
        %v2314 = vpack.c.bf16 %v2194, %v2193
        %v2315 = vpack.c.bf16 %v2220, %v2219
        %v2316 = vpack.c.bf16 %v2222, %v2221
        %v2317 = vpack.c.bf16 %v2224, %v2223
        %v2318 = vpack.c.bf16 %v2226, %v2225
        %v2319 = vpack.c.bf16 %v2252, %v2251
        %v2320 = vpack.c.bf16 %v2254, %v2253
        %v2321 = vpack.c.bf16 %v2256, %v2255
        %v2322 = vpack.c.bf16 %v2258, %v2257
        %v2323 = vpack.c.bf16 %v2284, %v2283
        %v2324 = vpack.c.bf16 %v2286, %v2285
        %v2325 = vpack.c.bf16 %v2288, %v2287
        %v2326 = vpack.c.bf16 %v2290, %v2289
        %v2327 = vld [vmem:[%s9] sm:$0xff]
        %v2328 = vld [vmem:[%s9 + $0x8] sm:$0xff]
        %v2329 = vld [vmem:[%s9 + $0x10] sm:$0xf]
        %v2330 = vld [vmem:[%s9 + $0x14] sm:$0xff]
        %v2331 = vld [vmem:[%s9 + $0x1c] sm:$0xff]
        %v2332 = vld [vmem:[%s9 + $0x24] sm:$0xf]
        %v2333 = vld [vmem:[%s9 + $0x28] sm:$0xff]
        %v2334 = vld [vmem:[%s9 + $0x30] sm:$0xff]
        %v2335 = vld [vmem:[%s9 + $0x38] sm:$0xf]
        %v2336 = vld [vmem:[%s9 + $0x3c] sm:$0xff]
        %v2337 = vld [vmem:[%s9 + $0x44] sm:$0xff]
        %v2338 = vld [vmem:[%s9 + $0x4c] sm:$0xf]
        %v2339 = vld [vmem:[%s9 + $0x50] sm:$0xff]
        %v2340 = vld [vmem:[%s9 + $0x58] sm:$0xff]
        %v2341 = vld [vmem:[%s9 + $0x60] sm:$0xf]
        %v2342 = vld [vmem:[%s9 + $0x64] sm:$0xff]
        %v2343 = vld [vmem:[%s9 + $0x6c] sm:$0xff]
        %v2344 = vld [vmem:[%s9 + $0x74] sm:$0xf]
        %v2345 = vld [vmem:[%s9 + $0x78] sm:$0xff]
        %v2346 = vld [vmem:[%s9 + $0x80] sm:$0xff]
        %v2347 = vld [vmem:[%s9 + $0x88] sm:$0xf]
        %v2348 = vld [vmem:[%s9 + $0x8c] sm:$0xff]
        %v2349 = vld [vmem:[%s9 + $0x94] sm:$0xff]
        %v2350 = vld [vmem:[%s9 + $0x9c] sm:$0xf]
        %v2351 = vld [vmem:[%s9 + $0xa0] sm:$0xff]
        %v2352 = vld [vmem:[%s9 + $0xa8] sm:$0xff]
        %v2353 = vld [vmem:[%s9 + $0xb0] sm:$0xf]
        %v2354 = vld [vmem:[%s9 + $0xb4] sm:$0xff]
        %v2355 = vld [vmem:[%s9 + $0xbc] sm:$0xff]
        %v2356 = vld [vmem:[%s9 + $0xc4] sm:$0xf]
        %v2357 = vld [vmem:[%s9 + $0xc8] sm:$0xff]
        %v2358 = vld [vmem:[%s9 + $0xd0] sm:$0xff]
        %v2359 = vld [vmem:[%s9 + $0xd8] sm:$0xf]
        %v2360 = vld [vmem:[%s9 + $0xdc] sm:$0xff]
        %v2361 = vld [vmem:[%s9 + $0xe4] sm:$0xff]
        %v2362 = vld [vmem:[%s9 + $0xec] sm:$0xf]
        %v2363 = vld [vmem:[%s9 + $0xf0] sm:$0xff]
        %v2364 = vld [vmem:[%s9 + $0xf8] sm:$0xff]
        %v2365 = vld [vmem:[%s9 + $0x100] sm:$0xf]
        %v2366 = vld [vmem:[%s9 + $0x104] sm:$0xff]
        %v2367 = vld [vmem:[%s9 + $0x10c] sm:$0xff]
        %v2368 = vld [vmem:[%s9 + $0x114] sm:$0xf]
        %v2369 = vld [vmem:[%s9 + $0x118] sm:$0xff]
        %v2370 = vld [vmem:[%s9 + $0x120] sm:$0xff]
        %v2371 = vld [vmem:[%s9 + $0x128] sm:$0xf]
        %v2372 = vld [vmem:[%s9 + $0x12c] sm:$0xff]
        %v2373 = vld [vmem:[%s9 + $0x134] sm:$0xff]
        %v2374 = vld [vmem:[%s9 + $0x13c] sm:$0xf]
        %v2375 = vld [vmem:[%s10] sm:$0xff]
        %v2376 = vld [vmem:[%s10 + $0x8] sm:$0xff]
        %v2377 = vld [vmem:[%s10 + $0x10] sm:$0xff]
        %v2378 = vld [vmem:[%s10 + $0x18] sm:$0xff]
        %v2379 = vld [vmem:[%s10 + $0x20] sm:$0xff]
        %v2380 = vld [vmem:[%s10 + $0x28] sm:$0xff]
        %v2381 = vld [vmem:[%s10 + $0x30] sm:$0xff]
        %v2382 = vld [vmem:[%s10 + $0x38] sm:$0xff]
        %v2383 = vld [vmem:[%s10 + $0x40] sm:$0xff]
        %v2384 = vld [vmem:[%s10 + $0x48] sm:$0xff]
        %v2385 = vld [vmem:[%s10 + $0x50] sm:$0xff]
        %v2386 = vld [vmem:[%s10 + $0x58] sm:$0xff]
        %v2387 = vld [vmem:[%s10 + $0x60] sm:$0xff]
        %v2388 = vld [vmem:[%s10 + $0x68] sm:$0xff]
        %v2389 = vld [vmem:[%s10 + $0x70] sm:$0xff]
        %v2390 = vld [vmem:[%s10 + $0x78] sm:$0xff]
        %2392 = vset.pattern.permute.xlu0 0
        %2393 = vperm.xlu0 %2392, %v2375
        %v2394 = vpop.permute.xlu0 %2393
        %2397 = vset.pattern.permute.xlu0 0
        %2398 = vperm.xlu0 %2397, %v2376
        %v2399 = vpop.permute.xlu0 %2398
        %2402 = vset.pattern.permute.xlu0 0
        %2403 = vperm.xlu0 %2402, %v2377
        %v2404 = vpop.permute.xlu0 %2403
        %2407 = vset.pattern.permute.xlu0 0
        %2408 = vperm.xlu0 %2407, %v2378
        %v2409 = vpop.permute.xlu0 %2408
        %2412 = vset.pattern.permute.xlu0 0
        %2413 = vperm.xlu0 %2412, %v2379
        %v2414 = vpop.permute.xlu0 %2413
        %2417 = vset.pattern.permute.xlu0 0
        %2418 = vperm.xlu0 %2417, %v2380
        %v2419 = vpop.permute.xlu0 %2418
        %2422 = vset.pattern.permute.xlu0 0
        %2423 = vperm.xlu0 %2422, %v2381
        %v2424 = vpop.permute.xlu0 %2423
        %2427 = vset.pattern.permute.xlu0 0
        %2428 = vperm.xlu0 %2427, %v2382
        %v2429 = vpop.permute.xlu0 %2428
        %2432 = vset.pattern.permute.xlu0 0
        %2433 = vperm.xlu0 %2432, %v2383
        %v2434 = vpop.permute.xlu0 %2433
        %2437 = vset.pattern.permute.xlu0 0
        %2438 = vperm.xlu0 %2437, %v2384
        %v2439 = vpop.permute.xlu0 %2438
        %2442 = vset.pattern.permute.xlu0 0
        %2443 = vperm.xlu0 %2442, %v2385
        %v2444 = vpop.permute.xlu0 %2443
        %2447 = vset.pattern.permute.xlu0 0
        %2448 = vperm.xlu0 %2447, %v2386
        %v2449 = vpop.permute.xlu0 %2448
        %2452 = vset.pattern.permute.xlu0 0
        %2453 = vperm.xlu0 %2452, %v2387
        %v2454 = vpop.permute.xlu0 %2453
        %2457 = vset.pattern.permute.xlu0 0
        %2458 = vperm.xlu0 %2457, %v2388
        %v2459 = vpop.permute.xlu0 %2458
        %2462 = vset.pattern.permute.xlu0 0
        %2463 = vperm.xlu0 %2462, %v2389
        %v2464 = vpop.permute.xlu0 %2463
        %2467 = vset.pattern.permute.xlu0 0
        %2468 = vperm.xlu0 %2467, %v2390
        %v2469 = vpop.permute.xlu0 %2468
        %v2519 = vunpack.c.l.b16 %v2327
        %v2520 = vunpack.c.h.b16 %v2327
        %v2521 = vunpack.c.l.b16 %v2328
        %v2522 = vunpack.c.h.b16 %v2328
        %v2523 = vunpack.c.l.b16 %v2329
        %v2524 = vunpack.c.l.b16 %v2330
        %v2525 = vunpack.c.h.b16 %v2330
        %v2526 = vunpack.c.l.b16 %v2331
        %v2527 = vunpack.c.h.b16 %v2331
        %v2528 = vunpack.c.l.b16 %v2332
        %v2529 = vunpack.c.l.b16 %v2333
        %v2530 = vunpack.c.h.b16 %v2333
        %v2531 = vunpack.c.l.b16 %v2334
        %v2532 = vunpack.c.h.b16 %v2334
        %v2533 = vunpack.c.l.b16 %v2335
        %v2534 = vunpack.c.l.b16 %v2336
        %v2535 = vunpack.c.h.b16 %v2336
        %v2536 = vunpack.c.l.b16 %v2337
        %v2537 = vunpack.c.h.b16 %v2337
        %v2538 = vunpack.c.l.b16 %v2338
        %v2539 = vunpack.c.l.b16 %v2339
        %v2540 = vunpack.c.h.b16 %v2339
        %v2541 = vunpack.c.l.b16 %v2340
        %v2542 = vunpack.c.h.b16 %v2340
        %v2543 = vunpack.c.l.b16 %v2341
        %v2544 = vunpack.c.l.b16 %v2342
        %v2545 = vunpack.c.h.b16 %v2342
        %v2546 = vunpack.c.l.b16 %v2343
        %v2547 = vunpack.c.h.b16 %v2343
        %v2548 = vunpack.c.l.b16 %v2344
        %v2549 = vunpack.c.l.b16 %v2345
        %v2550 = vunpack.c.h.b16 %v2345
        %v2551 = vunpack.c.l.b16 %v2346
        %v2552 = vunpack.c.h.b16 %v2346
        %v2553 = vunpack.c.l.b16 %v2347
        %v2554 = vunpack.c.l.b16 %v2348
        %v2555 = vunpack.c.h.b16 %v2348
        %v2556 = vunpack.c.l.b16 %v2349
        %v2557 = vunpack.c.h.b16 %v2349
        %v2558 = vunpack.c.l.b16 %v2350
        %v2559 = vunpack.c.l.b16 %v2351
        %v2560 = vunpack.c.h.b16 %v2351
        %v2561 = vunpack.c.l.b16 %v2352
        %v2562 = vunpack.c.h.b16 %v2352
        %v2563 = vunpack.c.l.b16 %v2353
        %v2564 = vunpack.c.l.b16 %v2354
        %v2565 = vunpack.c.h.b16 %v2354
        %v2566 = vunpack.c.l.b16 %v2355
        %v2567 = vunpack.c.h.b16 %v2355
        %v2568 = vunpack.c.l.b16 %v2356
        %v2569 = vunpack.c.l.b16 %v2357
        %v2570 = vunpack.c.h.b16 %v2357
        %v2571 = vunpack.c.l.b16 %v2358
        %v2572 = vunpack.c.h.b16 %v2358
        %v2573 = vunpack.c.l.b16 %v2359
        %v2574 = vunpack.c.l.b16 %v2360
        %v2575 = vunpack.c.h.b16 %v2360
        %v2576 = vunpack.c.l.b16 %v2361
        %v2577 = vunpack.c.h.b16 %v2361
        %v2578 = vunpack.c.l.b16 %v2362
        %v2579 = vunpack.c.l.b16 %v2363
        %v2580 = vunpack.c.h.b16 %v2363
        %v2581 = vunpack.c.l.b16 %v2364
        %v2582 = vunpack.c.h.b16 %v2364
        %v2583 = vunpack.c.l.b16 %v2365
        %v2584 = vunpack.c.l.b16 %v2366
        %v2585 = vunpack.c.h.b16 %v2366
        %v2586 = vunpack.c.l.b16 %v2367
        %v2587 = vunpack.c.h.b16 %v2367
        %v2588 = vunpack.c.l.b16 %v2368
        %v2589 = vunpack.c.l.b16 %v2369
        %v2590 = vunpack.c.h.b16 %v2369
        %v2591 = vunpack.c.l.b16 %v2370
        %v2592 = vunpack.c.h.b16 %v2370
        %v2593 = vunpack.c.l.b16 %v2371
        %v2594 = vunpack.c.l.b16 %v2372
        %v2595 = vunpack.c.h.b16 %v2372
        %v2596 = vunpack.c.l.b16 %v2373
        %v2597 = vunpack.c.h.b16 %v2373
        %v2598 = vunpack.c.l.b16 %v2374
        %v2599 = vpack.c.b16 %v2524, %v2519
        %v2600 = vpack.c.b16 %v2525, %v2520
        %v2601 = vpack.c.b16 %v2526, %v2521
        %v2602 = vpack.c.b16 %v2527, %v2522
        %v2603 = vpack.c.b16 %v2528, %v2523
        %v2604 = vpack.c.b16 %v2534, %v2529
        %v2605 = vpack.c.b16 %v2535, %v2530
        %v2606 = vpack.c.b16 %v2536, %v2531
        %v2607 = vpack.c.b16 %v2537, %v2532
        %v2608 = vpack.c.b16 %v2538, %v2533
        %v2609 = vpack.c.b16 %v2544, %v2539
        %v2610 = vpack.c.b16 %v2545, %v2540
        %v2611 = vpack.c.b16 %v2546, %v2541
        %v2612 = vpack.c.b16 %v2547, %v2542
        %v2613 = vpack.c.b16 %v2548, %v2543
        %v2614 = vpack.c.b16 %v2554, %v2549
        %v2615 = vpack.c.b16 %v2555, %v2550
        %v2616 = vpack.c.b16 %v2556, %v2551
        %v2617 = vpack.c.b16 %v2557, %v2552
        %v2618 = vpack.c.b16 %v2558, %v2553
        %v2619 = vpack.c.b16 %v2564, %v2559
        %v2620 = vpack.c.b16 %v2565, %v2560
        %v2621 = vpack.c.b16 %v2566, %v2561
        %v2622 = vpack.c.b16 %v2567, %v2562
        %v2623 = vpack.c.b16 %v2568, %v2563
        %v2624 = vpack.c.b16 %v2574, %v2569
        %v2625 = vpack.c.b16 %v2575, %v2570
        %v2626 = vpack.c.b16 %v2576, %v2571
        %v2627 = vpack.c.b16 %v2577, %v2572
        %v2628 = vpack.c.b16 %v2578, %v2573
        %v2629 = vpack.c.b16 %v2584, %v2579
        %v2630 = vpack.c.b16 %v2585, %v2580
        %v2631 = vpack.c.b16 %v2586, %v2581
        %v2632 = vpack.c.b16 %v2587, %v2582
        %v2633 = vpack.c.b16 %v2588, %v2583
        %v2634 = vpack.c.b16 %v2594, %v2589
        %v2635 = vpack.c.b16 %v2595, %v2590
        %v2636 = vpack.c.b16 %v2596, %v2591
        %v2637 = vpack.c.b16 %v2597, %v2592
        %v2638 = vpack.c.b16 %v2598, %v2593
        %vm2671 = vcmask 523264
        %v2673 = vsel %vm2671, %v2603, 0
        %v2676 = vsel %vm2671, %v2608, 0
        %v2679 = vsel %vm2671, %v2613, 0
        %v2682 = vsel %vm2671, %v2618, 0
        %v2685 = vsel %vm2671, %v2623, 0
        %v2688 = vsel %vm2671, %v2628, 0
        %v2691 = vsel %vm2671, %v2633, 0
        %v2694 = vsel %vm2671, %v2638, 0
        %2696 = vmatprep.subr.bf16.mxu0 0
        %2697 = vmatpush1.bf16.msra.mxu0 %v2298
        %2698 = vmatprep.subr.bf16.mxu0 0
        %2699 = vmatpush1.bf16.msra.mxu0 %v2297
        %2700 = vmatprep.subr.bf16.mxu0 0
        %2701 = vmatpush1.bf16.msra.mxu0 %v2296
        %2702 = vmatprep.subr.bf16.mxu0 0
        %2703 = vmatpush1.bf16.msra.mxu0 %v2295
        %2704 = vmatprep.subr.bf16.mxu0 0
        %2705 = vmatpush1.bf16.msra.mxu0 %v2294
        %2706 = vmatprep.subr.bf16.mxu0 0
        %2707 = vmatpush1.bf16.msra.mxu0 %v2293
        %2708 = vmatprep.subr.bf16.mxu0 0
        %2709 = vmatpush1.bf16.msra.mxu0 %v2292
        %2710 = vmatprep.subr.bf16.mxu0 0
        %2711 = vmatpush1.bf16.msra.mxu0 %v2291
        %2712 = vmatprep.subr.bf16.mxu0 0
        %2713 = vmatpush2.bf16.msra.mxu0 %v2306
        %2714 = vmatprep.subr.bf16.mxu0 0
        %2715 = vmatpush2.bf16.msra.mxu0 %v2305
        %2716 = vmatprep.subr.bf16.mxu0 0
        %2717 = vmatpush2.bf16.msra.mxu0 %v2304
        %2718 = vmatprep.subr.bf16.mxu0 0
        %2719 = vmatpush2.bf16.msra.mxu0 %v2303
        %2720 = vmatprep.subr.bf16.mxu0 0
        %2721 = vmatpush2.bf16.msra.mxu0 %v2302
        %2722 = vmatprep.subr.bf16.mxu0 0
        %2723 = vmatpush2.bf16.msra.mxu0 %v2301
        %2724 = vmatprep.subr.bf16.mxu0 0
        %2725 = vmatpush2.bf16.msra.mxu0 %v2300
        %2726 = vmatprep.subr.bf16.mxu0 0
        %2727 = vmatpush2.bf16.msra.mxu0 %v2299
        %2728 = vmatprep.mubr.bf16.mxu0 %v2600
        %2729 = vmatmul.mubr.bf16.gmra.mxu0 %v2599
        %v2730 = vpop.f32.mrf.mxu0
        %v2731 = vadd.f32 %v2394, %v2730
        %v2732 = vpop.f32.mrf.mxu0
        %v2733 = vpop.f32.mrf.mxu0
        %v2734 = vadd.f32 %v2399, %v2733
        %v2735 = vpop.f32.mrf.mxu0
        %2736 = vmatprep.mubr.bf16.mxu0 %v2605
        %2737 = vmatmul.mubr.bf16.gmra.mxu0 %v2604
        %v2738 = vpop.f32.mrf.mxu0
        %v2739 = vadd.f32 %v2404, %v2738
        %v2740 = vpop.f32.mrf.mxu0
        %v2741 = vpop.f32.mrf.mxu0
        %v2742 = vadd.f32 %v2409, %v2741
        %v2743 = vpop.f32.mrf.mxu0
        %2744 = vmatprep.mubr.bf16.mxu0 %v2610
        %2745 = vmatmul.mubr.bf16.gmra.mxu0 %v2609
        %v2746 = vpop.f32.mrf.mxu0
        %v2747 = vadd.f32 %v2414, %v2746
        %v2748 = vpop.f32.mrf.mxu0
        %v2749 = vpop.f32.mrf.mxu0
        %v2750 = vadd.f32 %v2419, %v2749
        %v2751 = vpop.f32.mrf.mxu0
        %2752 = vmatprep.mubr.bf16.mxu0 %v2615
        %2753 = vmatmul.mubr.bf16.gmra.mxu0 %v2614
        %v2754 = vpop.f32.mrf.mxu0
        %v2755 = vadd.f32 %v2424, %v2754
        %v2756 = vpop.f32.mrf.mxu0
        %v2757 = vpop.f32.mrf.mxu0
        %v2758 = vadd.f32 %v2429, %v2757
        %v2759 = vpop.f32.mrf.mxu0
        %2760 = vmatprep.mubr.bf16.mxu0 %v2620
        %2761 = vmatmul.mubr.bf16.gmra.mxu0 %v2619
        %v2762 = vpop.f32.mrf.mxu0
        %v2763 = vadd.f32 %v2434, %v2762
        %v2764 = vpop.f32.mrf.mxu0
        %v2765 = vpop.f32.mrf.mxu0
        %v2766 = vadd.f32 %v2439, %v2765
        %v2767 = vpop.f32.mrf.mxu0
        %2768 = vmatprep.mubr.bf16.mxu0 %v2625
        %2769 = vmatmul.mubr.bf16.gmra.mxu0 %v2624
        %v2770 = vpop.f32.mrf.mxu0
        %v2771 = vadd.f32 %v2444, %v2770
        %v2772 = vpop.f32.mrf.mxu0
        %v2773 = vpop.f32.mrf.mxu0
        %v2774 = vadd.f32 %v2449, %v2773
        %v2775 = vpop.f32.mrf.mxu0
        %2776 = vmatprep.mubr.bf16.mxu0 %v2630
        %2777 = vmatmul.mubr.bf16.gmra.mxu0 %v2629
        %v2778 = vpop.f32.mrf.mxu0
        %v2779 = vadd.f32 %v2454, %v2778
        %v2780 = vpop.f32.mrf.mxu0
        %v2781 = vpop.f32.mrf.mxu0
        %v2782 = vadd.f32 %v2459, %v2781
        %v2783 = vpop.f32.mrf.mxu0
        %2784 = vmatprep.mubr.bf16.mxu0 %v2635
        %2785 = vmatmul.mubr.bf16.gmra.mxu0 %v2634
        %v2786 = vpop.f32.mrf.mxu0
        %v2787 = vadd.f32 %v2464, %v2786
        %v2788 = vpop.f32.mrf.mxu0
        %v2789 = vpop.f32.mrf.mxu0
        %v2790 = vadd.f32 %v2469, %v2789
        %v2791 = vpop.f32.mrf.mxu0
        %2792 = vdwg.mxu0
        %2793 = vmatprep.subr.bf16.mxu0 0
        %2794 = vmatpush1.bf16.msra.mxu0 %v2314
        %2795 = vmatprep.subr.bf16.mxu0 0
        %2796 = vmatpush1.bf16.msra.mxu0 %v2313
        %2797 = vmatprep.subr.bf16.mxu0 0
        %2798 = vmatpush1.bf16.msra.mxu0 %v2312
        %2799 = vmatprep.subr.bf16.mxu0 0
        %2800 = vmatpush1.bf16.msra.mxu0 %v2311
        %2801 = vmatprep.subr.bf16.mxu0 0
        %2802 = vmatpush1.bf16.msra.mxu0 %v2310
        %2803 = vmatprep.subr.bf16.mxu0 0
        %2804 = vmatpush1.bf16.msra.mxu0 %v2309
        %2805 = vmatprep.subr.bf16.mxu0 0
        %2806 = vmatpush1.bf16.msra.mxu0 %v2308
        %2807 = vmatprep.subr.bf16.mxu0 0
        %2808 = vmatpush1.bf16.msra.mxu0 %v2307
        %2809 = vmatprep.subr.bf16.mxu0 0
        %2810 = vmatpush2.bf16.msra.mxu0 %v2322
        %2811 = vmatprep.subr.bf16.mxu0 0
        %2812 = vmatpush2.bf16.msra.mxu0 %v2321
        %2813 = vmatprep.subr.bf16.mxu0 0
        %2814 = vmatpush2.bf16.msra.mxu0 %v2320
        %2815 = vmatprep.subr.bf16.mxu0 0
        %2816 = vmatpush2.bf16.msra.mxu0 %v2319
        %2817 = vmatprep.subr.bf16.mxu0 0
        %2818 = vmatpush2.bf16.msra.mxu0 %v2318
        %2819 = vmatprep.subr.bf16.mxu0 0
        %2820 = vmatpush2.bf16.msra.mxu0 %v2317
        %2821 = vmatprep.subr.bf16.mxu0 0
        %2822 = vmatpush2.bf16.msra.mxu0 %v2316
        %2823 = vmatprep.subr.bf16.mxu0 0
        %2824 = vmatpush2.bf16.msra.mxu0 %v2315
        %2825 = vmatprep.mubr.bf16.mxu0 %v2602
        %2826 = vmatmul.mubr.bf16.gmra.mxu0 %v2601
        %v2827 = vpop.f32.mrf.mxu0
        %v2828 = vadd.f32 %v2731, %v2827
        %v2829 = vpop.f32.mrf.mxu0
        %v2830 = vpop.f32.mrf.mxu0
        %v2831 = vadd.f32 %v2734, %v2830
        %v2832 = vpop.f32.mrf.mxu0
        %2833 = vmatprep.mubr.bf16.mxu0 %v2607
        %2834 = vmatmul.mubr.bf16.gmra.mxu0 %v2606
        %v2835 = vpop.f32.mrf.mxu0
        %v2836 = vadd.f32 %v2739, %v2835
        %v2837 = vpop.f32.mrf.mxu0
        %v2838 = vpop.f32.mrf.mxu0
        %v2839 = vadd.f32 %v2742, %v2838
        %v2840 = vpop.f32.mrf.mxu0
        %2841 = vmatprep.mubr.bf16.mxu0 %v2612
        %2842 = vmatmul.mubr.bf16.gmra.mxu0 %v2611
        %v2843 = vpop.f32.mrf.mxu0
        %v2844 = vadd.f32 %v2747, %v2843
        %v2845 = vpop.f32.mrf.mxu0
        %v2846 = vpop.f32.mrf.mxu0
        %v2847 = vadd.f32 %v2750, %v2846
        %v2848 = vpop.f32.mrf.mxu0
        %2849 = vmatprep.mubr.bf16.mxu0 %v2617
        %2850 = vmatmul.mubr.bf16.gmra.mxu0 %v2616
        %v2851 = vpop.f32.mrf.mxu0
        %v2852 = vadd.f32 %v2755, %v2851
        %v2853 = vpop.f32.mrf.mxu0
        %v2854 = vpop.f32.mrf.mxu0
        %v2855 = vadd.f32 %v2758, %v2854
        %v2856 = vpop.f32.mrf.mxu0
        %2857 = vmatprep.mubr.bf16.mxu0 %v2622
        %2858 = vmatmul.mubr.bf16.gmra.mxu0 %v2621
        %v2859 = vpop.f32.mrf.mxu0
        %v2860 = vadd.f32 %v2763, %v2859
        %v2861 = vpop.f32.mrf.mxu0
        %v2862 = vpop.f32.mrf.mxu0
        %v2863 = vadd.f32 %v2766, %v2862
        %v2864 = vpop.f32.mrf.mxu0
        %2865 = vmatprep.mubr.bf16.mxu0 %v2627
        %2866 = vmatmul.mubr.bf16.gmra.mxu0 %v2626
        %v2867 = vpop.f32.mrf.mxu0
        %v2868 = vadd.f32 %v2771, %v2867
        %v2869 = vpop.f32.mrf.mxu0
        %v2870 = vpop.f32.mrf.mxu0
        %v2871 = vadd.f32 %v2774, %v2870
        %v2872 = vpop.f32.mrf.mxu0
        %2873 = vmatprep.mubr.bf16.mxu0 %v2632
        %2874 = vmatmul.mubr.bf16.gmra.mxu0 %v2631
        %v2875 = vpop.f32.mrf.mxu0
        %v2876 = vadd.f32 %v2779, %v2875
        %v2877 = vpop.f32.mrf.mxu0
        %v2878 = vpop.f32.mrf.mxu0
        %v2879 = vadd.f32 %v2782, %v2878
        %v2880 = vpop.f32.mrf.mxu0
        %2881 = vmatprep.mubr.bf16.mxu0 %v2637
        %2882 = vmatmul.mubr.bf16.gmra.mxu0 %v2636
        %v2883 = vpop.f32.mrf.mxu0
        %v2884 = vadd.f32 %v2787, %v2883
        %v2885 = vpop.f32.mrf.mxu0
        %v2886 = vpop.f32.mrf.mxu0
        %v2887 = vadd.f32 %v2790, %v2886
        %v2888 = vpop.f32.mrf.mxu0
        %2889 = vdwg.mxu0
        %2890 = vmatprep.subr.bf16.mxu0 0
        %2891 = vmatpush1.bf16.msra.mxu0 0
        %2892 = vmatprep.subr.bf16.mxu0 0
        %2893 = vmatpush1.bf16.msra.mxu0 0
        %2894 = vmatprep.subr.bf16.mxu0 0
        %2895 = vmatpush1.bf16.msra.mxu0 0
        %2896 = vmatprep.subr.bf16.mxu0 0
        %2897 = vmatpush1.bf16.msra.mxu0 0
        %2898 = vmatprep.subr.bf16.mxu0 0
        %2899 = vmatpush1.bf16.msra.mxu0 %v2326
        %2900 = vmatprep.subr.bf16.mxu0 0
        %2901 = vmatpush1.bf16.msra.mxu0 %v2325
        %2902 = vmatprep.subr.bf16.mxu0 0
        %2903 = vmatpush1.bf16.msra.mxu0 %v2324
        %2904 = vmatprep.subr.bf16.mxu0 0
        %2905 = vmatpush1.bf16.msra.mxu0 %v2323
        %2906 = vmatprep.subr.bf16.mxu0 0
        %2907 = vmatpush2.bf16.msra.mxu0 0
        %2908 = vmatprep.subr.bf16.mxu0 0
        %2909 = vmatpush2.bf16.msra.mxu0 0
        %2910 = vmatprep.subr.bf16.mxu0 0
        %2911 = vmatpush2.bf16.msra.mxu0 0
        %2912 = vmatprep.subr.bf16.mxu0 0
        %2913 = vmatpush2.bf16.msra.mxu0 0
        %2914 = vmatprep.subr.bf16.mxu0 0
        %2915 = vmatpush2.bf16.msra.mxu0 0
        %2916 = vmatprep.subr.bf16.mxu0 0
        %2917 = vmatpush2.bf16.msra.mxu0 0
        %2918 = vmatprep.subr.bf16.mxu0 0
        %2919 = vmatpush2.bf16.msra.mxu0 0
        %2920 = vmatprep.subr.bf16.mxu0 0
        %2921 = vmatpush2.bf16.msra.mxu0 0
        %2922 = vmatprep.mubr.bf16.mxu0 0
        %2923 = vmatmul.mubr.bf16.gmra.mxu0 %v2673
        %v2924 = vpop.f32.mrf.mxu0
        %v2925 = vadd.f32 %v2828, %v2924
        %v2926 = vpop.f32.mrf.mxu0
        %v2927 = vpop.f32.mrf.mxu0
        %v2928 = vadd.f32 %v2831, %v2927
        %v2929 = vpop.f32.mrf.mxu0
        %2930 = vmatprep.mubr.bf16.mxu0 0
        %2931 = vmatmul.mubr.bf16.gmra.mxu0 %v2676
        %v2932 = vpop.f32.mrf.mxu0
        %v2933 = vadd.f32 %v2836, %v2932
        %v2934 = vpop.f32.mrf.mxu0
        %v2935 = vpop.f32.mrf.mxu0
        %v2936 = vadd.f32 %v2839, %v2935
        %v2937 = vpop.f32.mrf.mxu0
        %2938 = vmatprep.mubr.bf16.mxu0 0
        %2939 = vmatmul.mubr.bf16.gmra.mxu0 %v2679
        %v2940 = vpop.f32.mrf.mxu0
        %v2941 = vadd.f32 %v2844, %v2940
        %v2942 = vpop.f32.mrf.mxu0
        %v2943 = vpop.f32.mrf.mxu0
        %v2944 = vadd.f32 %v2847, %v2943
        %v2945 = vpop.f32.mrf.mxu0
        %2946 = vmatprep.mubr.bf16.mxu0 0
        %2947 = vmatmul.mubr.bf16.gmra.mxu0 %v2682
        %v2948 = vpop.f32.mrf.mxu0
        %v2949 = vadd.f32 %v2852, %v2948
        %v2950 = vpop.f32.mrf.mxu0
        %v2951 = vpop.f32.mrf.mxu0
        %v2952 = vadd.f32 %v2855, %v2951
        %v2953 = vpop.f32.mrf.mxu0
        %2954 = vmatprep.mubr.bf16.mxu0 0
        %2955 = vmatmul.mubr.bf16.gmra.mxu0 %v2685
        %v2956 = vpop.f32.mrf.mxu0
        %v2957 = vadd.f32 %v2860, %v2956
        %v2958 = vpop.f32.mrf.mxu0
        %v2959 = vpop.f32.mrf.mxu0
        %v2960 = vadd.f32 %v2863, %v2959
        %v2961 = vpop.f32.mrf.mxu0
        %2962 = vmatprep.mubr.bf16.mxu0 0
        %2963 = vmatmul.mubr.bf16.gmra.mxu0 %v2688
        %v2964 = vpop.f32.mrf.mxu0
        %v2965 = vadd.f32 %v2868, %v2964
        %v2966 = vpop.f32.mrf.mxu0
        %v2967 = vpop.f32.mrf.mxu0
        %v2968 = vadd.f32 %v2871, %v2967
        %v2969 = vpop.f32.mrf.mxu0
        %2970 = vmatprep.mubr.bf16.mxu0 0
        %2971 = vmatmul.mubr.bf16.gmra.mxu0 %v2691
        %v2972 = vpop.f32.mrf.mxu0
        %v2973 = vadd.f32 %v2876, %v2972
        %v2974 = vpop.f32.mrf.mxu0
        %v2975 = vpop.f32.mrf.mxu0
        %v2976 = vadd.f32 %v2879, %v2975
        %v2977 = vpop.f32.mrf.mxu0
        %2978 = vmatprep.mubr.bf16.mxu0 0
        %2979 = vmatmul.mubr.bf16.gmra.mxu0 %v2694
        %v2980 = vpop.f32.mrf.mxu0
        %v2981 = vadd.f32 %v2884, %v2980
        %v2982 = vpop.f32.mrf.mxu0
        %v2983 = vpop.f32.mrf.mxu0
        %v2984 = vadd.f32 %v2887, %v2983
        %v2985 = vpop.f32.mrf.mxu0
        %2986 = vdwg.mxu0
        %v2987 = vmax.f32 %v2925, 0.0
        %v2988 = vmax.f32 %v2928, 0.0
        %v2989 = vmax.f32 %v2933, 0.0
        %v2990 = vmax.f32 %v2936, 0.0
        %v2991 = vmax.f32 %v2941, 0.0
        %v2992 = vmax.f32 %v2944, 0.0
        %v2993 = vmax.f32 %v2949, 0.0
        %v2994 = vmax.f32 %v2952, 0.0
        %v2995 = vmax.f32 %v2957, 0.0
        %v2996 = vmax.f32 %v2960, 0.0
        %v2997 = vmax.f32 %v2965, 0.0
        %v2998 = vmax.f32 %v2968, 0.0
        %v2999 = vmax.f32 %v2973, 0.0
        %v3000 = vmax.f32 %v2976, 0.0
        %v3001 = vmax.f32 %v2981, 0.0
        %v3002 = vmax.f32 %v2984, 0.0
        %v3003 = vmul.f32 %v2987, %v2153
        %v3004 = vmul.f32 %v2988, %v2153
        %v3005 = vmul.f32 %v2989, %v2153
        %v3006 = vmul.f32 %v2990, %v2153
        %v3007 = vmul.f32 %v2991, %v2153
        %v3008 = vmul.f32 %v2992, %v2153
        %v3009 = vmul.f32 %v2993, %v2153
        %v3010 = vmul.f32 %v2994, %v2153
        %v3011 = vmul.f32 %v2995, %v2153
        %v3012 = vmul.f32 %v2996, %v2153
        %v3013 = vmul.f32 %v2997, %v2153
        %v3014 = vmul.f32 %v2998, %v2153
        %v3015 = vmul.f32 %v2999, %v2153
        %v3016 = vmul.f32 %v3000, %v2153
        %v3017 = vmul.f32 %v3001, %v2153
        %v3018 = vmul.f32 %v3002, %v2153
        %3019 = vadd.xlane.f32.xlu0 %v3003
        %v3020 = vpop.xlane.xlu0 %3019
        %3021 = vadd.xlane.f32.xlu0 %v3004
        %v3022 = vpop.xlane.xlu0 %3021
        %3023 = vadd.xlane.f32.xlu0 %v3005
        %v3024 = vpop.xlane.xlu0 %3023
        %3025 = vadd.xlane.f32.xlu0 %v3006
        %v3026 = vpop.xlane.xlu0 %3025
        %3027 = vadd.xlane.f32.xlu0 %v3007
        %v3028 = vpop.xlane.xlu0 %3027
        %3029 = vadd.xlane.f32.xlu0 %v3008
        %v3030 = vpop.xlane.xlu0 %3029
        %3031 = vadd.xlane.f32.xlu0 %v3009
        %v3032 = vpop.xlane.xlu0 %3031
        %3033 = vadd.xlane.f32.xlu0 %v3010
        %v3034 = vpop.xlane.xlu0 %3033
        %3035 = vadd.xlane.f32.xlu0 %v3011
        %v3036 = vpop.xlane.xlu0 %3035
        %3037 = vadd.xlane.f32.xlu0 %v3012
        %v3038 = vpop.xlane.xlu0 %3037
        %3039 = vadd.xlane.f32.xlu0 %v3013
        %v3040 = vpop.xlane.xlu0 %3039
        %3041 = vadd.xlane.f32.xlu0 %v3014
        %v3042 = vpop.xlane.xlu0 %3041
        %3043 = vadd.xlane.f32.xlu0 %v3015
        %v3044 = vpop.xlane.xlu0 %3043
        %3045 = vadd.xlane.f32.xlu0 %v3016
        %v3046 = vpop.xlane.xlu0 %3045
        %3047 = vadd.xlane.f32.xlu0 %v3017
        %v3048 = vpop.xlane.xlu0 %3047
        %3049 = vadd.xlane.f32.xlu0 %v3018
        %v3050 = vpop.xlane.xlu0 %3049
        %v3051 = vmul.f32 %v3020, 0.0625
        %v3052 = vmul.f32 %v3022, 0.0625
        %v3053 = vmul.f32 %v3024, 0.0625
        %v3054 = vmul.f32 %v3026, 0.0625
        %v3055 = vmul.f32 %v3028, 0.0625
        %v3056 = vmul.f32 %v3030, 0.0625
        %v3057 = vmul.f32 %v3032, 0.0625
        %v3058 = vmul.f32 %v3034, 0.0625
        %v3059 = vmul.f32 %v3036, 0.0625
        %v3060 = vmul.f32 %v3038, 0.0625
        %v3061 = vmul.f32 %v3040, 0.0625
        %v3062 = vmul.f32 %v3042, 0.0625
        %v3063 = vmul.f32 %v3044, 0.0625
        %v3064 = vmul.f32 %v3046, 0.0625
        %v3065 = vmul.f32 %v3048, 0.0625
        %v3066 = vmul.f32 %v3050, 0.0625
        %v3067 = vld [vmem:[%s12] sm:$0xff]
        %v3068 = vld [vmem:[%s12 + $0x8] sm:$0xff]
        %v3069 = vld [vmem:[%s12 + $0x10] sm:$0xff]
        %v3070 = vld [vmem:[%s12 + $0x18] sm:$0xff]
        %v3071 = vld [vmem:[%s12 + $0x20] sm:$0xff]
        %v3072 = vld [vmem:[%s12 + $0x28] sm:$0xff]
        %v3073 = vld [vmem:[%s12 + $0x30] sm:$0xff]
        %v3074 = vld [vmem:[%s12 + $0x38] sm:$0xff]
        %v3075 = vld [vmem:[%s12 + $0x40] sm:$0xff]
        %v3076 = vld [vmem:[%s12 + $0x48] sm:$0xff]
        %v3077 = vld [vmem:[%s12 + $0x50] sm:$0xff]
        %v3078 = vld [vmem:[%s12 + $0x58] sm:$0xff]
        %v3079 = vld [vmem:[%s12 + $0x60] sm:$0xff]
        %v3080 = vld [vmem:[%s12 + $0x68] sm:$0xff]
        %v3081 = vld [vmem:[%s12 + $0x70] sm:$0xff]
        %v3082 = vld [vmem:[%s12 + $0x78] sm:$0xff]
        %v3083 = vmul.f32 %v3051, %v3067
        %v3084 = vmul.f32 %v3052, %v3068
        %v3085 = vmul.f32 %v3053, %v3069
        %v3086 = vmul.f32 %v3054, %v3070
        %v3087 = vmul.f32 %v3055, %v3071
        %v3088 = vmul.f32 %v3056, %v3072
        %v3089 = vmul.f32 %v3057, %v3073
        %v3090 = vmul.f32 %v3058, %v3074
        %v3091 = vmul.f32 %v3059, %v3075
        %v3092 = vmul.f32 %v3060, %v3076
        %v3093 = vmul.f32 %v3061, %v3077
        %v3094 = vmul.f32 %v3062, %v3078
        %v3095 = vmul.f32 %v3063, %v3079
        %v3096 = vmul.f32 %v3064, %v3080
        %v3097 = vmul.f32 %v3065, %v3081
        %v3098 = vmul.f32 %v3066, %v3082
        %v3099 = vadd.f32 %v3083, %v3084
        %v3100 = vadd.f32 %v3099, %v3085
        %v3101 = vadd.f32 %v3100, %v3086
        %v3102 = vadd.f32 %v3101, %v3087
        %v3103 = vadd.f32 %v3102, %v3088
        %v3104 = vadd.f32 %v3103, %v3089
        %v3105 = vadd.f32 %v3104, %v3090
        %v3106 = vadd.f32 %v3105, %v3091
        %v3107 = vadd.f32 %v3106, %v3092
        %v3108 = vadd.f32 %v3107, %v3093
        %v3109 = vadd.f32 %v3108, %v3094
        %v3110 = vadd.f32 %v3109, %v3095
        %v3111 = vadd.f32 %v3110, %v3096
        %v3112 = vadd.f32 %v3111, %v3097
        %v3113 = vadd.f32 %v3112, %v3098
        %v3114 = vrot.slane %v3113, 4
        %v3115 = vadd.f32 %v3113, %v3114
        %v3116 = vrot.slane %v3115, 2
        %v3117 = vadd.f32 %v3115, %v3116
        %v3118 = vrot.slane %v3117, 1
        %v3119 = vadd.f32 %v3117, %v3118
        %v3120 = vld [vmem:[%s13] sm:$0x1]
        %v3121 = vadd.f32 %v3119, %v3120
        %3122 = vst [vmem:[%s457] sm:$0x1] %v3121
        %s3123 = sand.u32 %s335, 1
        %s3124 = scalar_lea.sflag [#allocation3], %s3123
        %s3125 = sand.u32 %s335, 1
        %s3126 = scalar_lea.vmem [#allocation2], %s3125
        // Predicated region
        $region77: #{simple_classifier_forward.1} parent=75 // pred_check
          %p3127 = pneg %p345
        $region78: #{simple_classifier_forward.1} parent=75 // pred_check_branch
          %3129 = sbr.rel (%p3127) target = $region80
        $region79: #{simple_classifier_forward.1} parent=75 // pred_region
          %s3131 = ssub.s32 16, 16
          %3132 = vsyncadd %s3124, %s3131
          %s3133 = smul.addr %s28, 16
          %s3134 = scalar_lea.hbm %s14, %s3133
          %s3136 = sshll.u32 %s3126, 4
          %s3137 = int_to_ptr.vmem [resolvable:$true] %s3136
          %3139 = dma.vmem_to_hbm [thread:$0]  %s3137, 16, %s3134, %s3124
        $region80: #{simple_classifier_forward.1} parent=75 // pred_fallthru
          _
      $region76: #{simple_classifier_forward.1} parent=5 // pred_fallthru
        _
      %p3140 = scmp.le.s32.totalorder 2, %s23
      // Predicated region
      $region81: #{simple_classifier_forward.1} parent=5 // pred_check
        %p3141 = pneg %p3140
      $region82: #{simple_classifier_forward.1} parent=5 // pred_check_branch
        %3143 = sbr.rel (%p3141) target = $region84
      $region83: #{simple_classifier_forward.1} parent=5 // pred_region
        %s3144 = ssub.s32 %s23, 2
        // Predicated region
        $region85: #{simple_classifier_forward.1} parent=83 // pred_check
          %p3145 = pneg %p351
        $region86: #{simple_classifier_forward.1} parent=83 // pred_check_branch
          %3147 = sbr.rel (%p3145) target = $region88
        $region87: #{simple_classifier_forward.1} parent=83 // pred_region
          %s3148 = sand.u32 %s336, 1
          %s3149 = scalar_lea.sflag [#allocation3], %s3148
          %s3150 = sand.u32 %s336, 1
          %s3151 = scalar_lea.vmem [#allocation2], %s3150
          %3152 = dma.done %s3149, 16
        $region88: #{simple_classifier_forward.1} parent=83 // pred_fallthru
          _
      $region84: #{simple_classifier_forward.1} parent=5 // pred_fallthru
        _
    $region6: #{simple_classifier_forward.1} parent=1 // loop_footer
      %s27 = sadd.s32 1, %s23
    $region7: #{simple_classifier_forward.1} parent=1 // loop_footer_branch
      %22 = sbr.rel target = $region3
    $region8: #{simple_classifier_forward.1} parent=1 // loop_exit
      _
    %3153 = vsyncpa [#allocation3], 1
    %s3154 = scalar_lea.sflag [#allocation3], 1
    %3155 = vsyncpa %s3154, 1

</llo_original>
